<compile_context>
chip_gen: v7x
topology: tpu7x:2x2x1
jax: 0.10.0
libtpu: 0.0.40
codegen_flags: <defaults>
</compile_context>

<pallas_src>
import functools

import jax
import jax.numpy as jnp
from jax import lax
from jax.experimental import pallas as pl
from jax.experimental.pallas import tpu as pltpu


_VMEM = pl.BlockSpec(memory_space=pltpu.MemorySpace.VMEM)
_BN_EPS = 1e-5


# ----------------------------- Pallas kernels ------------------------------

def conv_pool_kernel(p_ref, w_ref, b_ref, o_ref):
    """Fused conv (im2col matmul) + folded-BN bias + ReLU + 2x2 max-pool.

    p_ref: (4, T, K) bf16  patch blocks, one per pooling offset (ph, pw)
    w_ref: (K, C)    bf16  BN-folded conv weights
    b_ref: (1, C)    f32   BN-folded bias
    o_ref: (T, C)    f32   pooled activation, rows ordered (b, oh2, ow2)
    """
    w = w_ref[...]
    m = jnp.dot(p_ref[0], w, preferred_element_type=jnp.float32)
    for q in range(1, 4):
        m = jnp.maximum(m, jnp.dot(p_ref[q], w, preferred_element_type=jnp.float32))
    # max-pool == max over the 4 pooling-offset matmuls; bias add + ReLU commute
    # with the max (BN scale is already folded into w, so it is inside each dot).
    o_ref[...] = jnp.maximum(m + b_ref[...], 0.0)


def conv_pool_head_kernel(p_ref, w_ref, b_ref, e_ref, s_ref, o_ref, *, num_cols):
    """Layer-3 conv+pool fused with the head: y = [x_flat; 0]; softmax(x @ y^T).

    p_ref: (4, T3, K3) bf16, w_ref: (K3, 32) bf16, b_ref: (1, 32) f32
    e_ref: (4, 128, T3) f32 constant row-selectors   (pick sample b, pool pos rs)
    s_ref: (4, 32, 128) f32 constant column scatters (place channel block rs)
    o_ref: (8, 128) f32 softmax probabilities (rows >= B are dummy, cols >= 13 = 0)
    """
    w = w_ref[...]
    m = jnp.dot(p_ref[0], w, preferred_element_type=jnp.float32)
    for q in range(1, 4):
        m = jnp.maximum(m, jnp.dot(p_ref[q], w, preferred_element_type=jnp.float32))
    pooled = jnp.maximum(m + b_ref[...], 0.0)              # (T3, 32), rows (b, r*2+s)

    # Build Y (128, 128): row j (< B) is sample j's flattened features, rows >= B
    # are zero (the zero rows of torch's y). Built with constant scatter matmuls.
    y = jnp.dot(jnp.dot(e_ref[0], pooled, preferred_element_type=jnp.float32),
                s_ref[0], preferred_element_type=jnp.float32)
    for rs in range(1, 4):
        y = y + jnp.dot(jnp.dot(e_ref[rs], pooled, preferred_element_type=jnp.float32),
                        s_ref[rs], preferred_element_type=jnp.float32)

    x8 = y[:8, :]                                          # first 8 rows (>= batch)
    # logits[b, j] = <x_flat[b], y[j]>  ==  x @ y^T (contract last dims on MXU)
    logits = lax.dot_general(x8, y, (((1,), (1,)), ((), ())),
                             preferred_element_type=jnp.float32)       # (8, 128)
    col = lax.broadcasted_iota(jnp.int32, logits.shape, 1)
    logits = jnp.where(col < num_cols, logits, -jnp.inf)   # keep the 13 real columns
    mx = jnp.max(logits, axis=-1, keepdims=True)
    ex = jnp.exp(logits - mx)
    o_ref[...] = ex / jnp.sum(ex, axis=-1, keepdims=True)


# ------------------------------ call wrappers -------------------------------

def conv_pool(patches, w, b):
    _, t, _ = patches.shape
    c = w.shape[1]
    return pl.pallas_call(
        conv_pool_kernel,
        out_shape=jax.ShapeDtypeStruct((t, c), jnp.float32),
        in_specs=[_VMEM, _VMEM, _VMEM],
        out_specs=_VMEM,
    )(patches, w, b)


def conv_pool_head(patches, w, b, e_mat, s_mat, *, num_cols=13):
    n_feat = s_mat.shape[2]
    return pl.pallas_call(
        functools.partial(conv_pool_head_kernel, num_cols=num_cols),
        out_shape=jax.ShapeDtypeStruct((8, n_feat), jnp.float32),
        in_specs=[_VMEM] * 5,
        out_specs=_VMEM,
    )(patches, w, b, e_mat, s_mat)


# ------------------------------- JAX glue -----------------------------------

def _pool_patch_blocks(x):
    """x: (B,H,W,C) f32 -> ((4, B*OH2*OW2, 9*C) bf16, (OH2, OW2)).

    Block q = 2*ph + pw holds the im2col rows of conv outputs at pooling offset
    (ph, pw); the fused kernel max-reduces over q (== 2x2/stride-2 max pool)."""
    B, H, W, C = x.shape
    oh2, ow2 = (H - 2) // 2, (W - 2) // 2
    blocks = []
    for ph in range(2):
        for pw in range(2):
            feats = []
            for i in range(3):
                for j in range(3):
                    sl = x[:, ph + i::2, pw + j::2, :][:, :oh2, :ow2, :]
                    feats.append(sl)                         # (B, oh2, ow2, C)
            p = jnp.stack(feats, axis=3)                     # (B, oh2, ow2, 9, C)
            blocks.append(p.reshape(B * oh2 * ow2, 9 * C))
    return jnp.stack(blocks, axis=0).astype(jnp.bfloat16), (oh2, ow2)


# --------------------------- parameters & prep -------------------------------

def init_params(key):
    """Deterministic synthetic parameters matching the module's layer shapes."""
    convs = [("c1", 3, 8), ("c2", 8, 16), ("c3", 16, 32)]
    params = {}
    for name, cin, cout in convs:
        key, kw_, kb_, kg_, kbt_, km_, kv_ = jax.random.split(key, 7)
        fan_in = 9 * cin
        params[name] = dict(
            w=jax.random.normal(kw_, (3, 3, cin, cout), jnp.float32) / jnp.sqrt(fan_in),
            b=0.01 * jax.random.normal(kb_, (cout,), jnp.float32),
            gamma=1.0 + 0.1 * jax.random.normal(kg_, (cout,), jnp.float32),
            beta=0.1 * jax.random.normal(kbt_, (cout,), jnp.float32),
            mean=0.1 * jax.random.normal(km_, (cout,), jnp.float32),
            var=0.5 + jax.random.uniform(kv_, (cout,), jnp.float32),
        )
    # conv4/conv5/bn4/bn5/fc1 exist in __init__ but are never used in forward().
    return params


def prepare_params(params, batch_size):
    """One-time prep (hoisted out of the forward): fold inference BN into the
    conv weights/bias, cast matmul operands to bf16, build head constants."""
    assert batch_size <= 13, "head requires batch <= 13 (y has 13 rows)"
    prepped = {}
    for name in ("c1", "c2", "c3"):
        p = params[name]
        kh, kw, cin, cout = p["w"].shape
        scale = p["gamma"] * lax.rsqrt(p["var"] + _BN_EPS)
        wmat = (p["w"].reshape(kh * kw * cin, cout) * scale[None, :]).astype(jnp.bfloat16)
        bias = (p["beta"] + (p["b"] - p["mean"]) * scale).reshape(1, cout).astype(jnp.float32)
        prepped[name] = (wmat, bias)

    # Head constants: final activations are (B*4, 32) -> 128 flattened features.
    t3, c3, n_feat, n_rows = 4 * batch_size, 32, 128, 128
    e_mat = jnp.zeros((4, n_rows, t3), jnp.float32)
    s_mat = jnp.zeros((4, c3, n_feat), jnp.float32)
    idx = jnp.arange(c3)
    for rs in range(4):
        for b in range(batch_size):
            e_mat = e_mat.at[rs, b, 4 * b + rs].set(1.0)
        s_mat = s_mat.at[rs, idx, rs * c3 + idx].set(1.0)
    prepped["head"] = (e_mat, s_mat)
    return prepped


# --------------------------------- forward ----------------------------------

@jax.jit
def cnn_forward(x_nchw, prepped):
    """Inference forward of CNN: 3x [conv3x3 -> BN -> ReLU -> maxpool2],
    flatten, (dropout = identity), y = [x; zeros(13-B)], F.linear, softmax."""
    B = x_nchw.shape[0]
    x = jnp.transpose(x_nchw, (0, 2, 3, 1)).astype(jnp.float32)   # NCHW -> NHWC

    for name in ("c1", "c2"):
        p, (oh2, ow2) = _pool_patch_blocks(x)
        a = conv_pool(p, *prepped[name])                  # (B*oh2*ow2, C) f32
        x = a.reshape(B, oh2, ow2, a.shape[-1])

    p3, _ = _pool_patch_blocks(x)
    # TODO(synk): nn.Dropout(p=0.3) applied twice is stochastic in train mode;
    # implemented as identity (inference). BatchNorm uses inference form with
    # synthetic running stats folded into the conv weights.
    probs = conv_pool_head(p3, *prepped["c3"], *prepped["head"])  # (8, 128) f32
    return probs[:B, :13], None


if __name__ == "__main__":
    key = jax.random.PRNGKey(0)
    k_param, k_x = jax.random.split(key)
    params = init_params(k_param)

    # CIFAR-like input: batch=2, 3 channels, 32x32 (the conv/pool chain then
    # yields exactly the 128 flattened features the module's head implies).
    x = jax.random.normal(k_x, (2, 3, 32, 32), jnp.float32)

    prepped = prepare_params(params, batch_size=x.shape[0])
    probs, aux = cnn_forward(x, prepped)
    probs = jax.block_until_ready(probs)

    assert probs.shape == (2, 13)
    assert bool(jnp.all(jnp.isfinite(probs)))
    assert bool(jnp.allclose(jnp.sum(probs, axis=1), 1.0, atol=1e-5))
    assert aux is None
    print("KERNEL_OK")
</pallas_src>

<mosaic_0001>
module attributes {stable_mosaic.version = 11 : i64} {
  func.func @conv_pool_kernel(%arg0: memref<4x450x27xbf16, #tpu.memory_space<vmem>>, %arg1: memref<27x8xbf16, #tpu.memory_space<vmem>>, %arg2: memref<1x8xf32, #tpu.memory_space<vmem>>, %arg3: memref<450x8xf32, #tpu.memory_space<vmem>>) attributes {dimension_semantics = [], scalar_prefetch = 0 : i64, scratch_operands = 0 : i64, tpu.core_type = #tpu.core_type<tc>} {
    %c0 = arith.constant 0 : index
    %c0_0 = arith.constant 0 : index
    %0 = vector.load %arg1[%c0, %c0_0] : memref<27x8xbf16, #tpu.memory_space<vmem>>, vector<27x8xbf16>
    %c0_1 = arith.constant 0 : index
    %c0_2 = arith.constant 0 : index
    %c0_3 = arith.constant 0 : index
    %1 = vector.load %arg0[%c0_1, %c0_2, %c0_3] : memref<4x450x27xbf16, #tpu.memory_space<vmem>>, vector<1x450x27xbf16>
    %2 = vector.shape_cast %1 : vector<1x450x27xbf16> to vector<450x27xbf16>
    %cst = arith.constant dense<0.000000e+00> : vector<450x8xf32>
    %3 = tpu.matmul %2, %0, %cst {dimension_numbers = #tpu.dot_dimension_numbers<[1], [0], [0], [1], [0, 0, 1, 1], [], []>} : vector<450x27xbf16>, vector<27x8xbf16>, vector<450x8xf32> -> vector<450x8xf32>
    %c1 = arith.constant 1 : index
    %c0_4 = arith.constant 0 : index
    %c0_5 = arith.constant 0 : index
    %4 = vector.load %arg0[%c1, %c0_4, %c0_5] : memref<4x450x27xbf16, #tpu.memory_space<vmem>>, vector<1x450x27xbf16>
    %5 = vector.shape_cast %4 : vector<1x450x27xbf16> to vector<450x27xbf16>
    %cst_6 = arith.constant dense<0.000000e+00> : vector<450x8xf32>
    %6 = tpu.matmul %5, %0, %cst_6 {dimension_numbers = #tpu.dot_dimension_numbers<[1], [0], [0], [1], [0, 0, 1, 1], [], []>} : vector<450x27xbf16>, vector<27x8xbf16>, vector<450x8xf32> -> vector<450x8xf32>
    %7 = arith.maximumf %3, %6 : vector<450x8xf32>
    %c2 = arith.constant 2 : index
    %c0_7 = arith.constant 0 : index
    %c0_8 = arith.constant 0 : index
    %8 = vector.load %arg0[%c2, %c0_7, %c0_8] : memref<4x450x27xbf16, #tpu.memory_space<vmem>>, vector<1x450x27xbf16>
    %9 = vector.shape_cast %8 : vector<1x450x27xbf16> to vector<450x27xbf16>
    %cst_9 = arith.constant dense<0.000000e+00> : vector<450x8xf32>
    %10 = tpu.matmul %9, %0, %cst_9 {dimension_numbers = #tpu.dot_dimension_numbers<[1], [0], [0], [1], [0, 0, 1, 1], [], []>} : vector<450x27xbf16>, vector<27x8xbf16>, vector<450x8xf32> -> vector<450x8xf32>
    %11 = arith.maximumf %7, %10 : vector<450x8xf32>
    %c3 = arith.constant 3 : index
    %c0_10 = arith.constant 0 : index
    %c0_11 = arith.constant 0 : index
    %12 = vector.load %arg0[%c3, %c0_10, %c0_11] : memref<4x450x27xbf16, #tpu.memory_space<vmem>>, vector<1x450x27xbf16>
    %13 = vector.shape_cast %12 : vector<1x450x27xbf16> to vector<450x27xbf16>
    %cst_12 = arith.constant dense<0.000000e+00> : vector<450x8xf32>
    %14 = tpu.matmul %13, %0, %cst_12 {dimension_numbers = #tpu.dot_dimension_numbers<[1], [0], [0], [1], [0, 0, 1, 1], [], []>} : vector<450x27xbf16>, vector<27x8xbf16>, vector<450x8xf32> -> vector<450x8xf32>
    %15 = arith.maximumf %11, %14 : vector<450x8xf32>
    %c0_13 = arith.constant 0 : index
    %c0_14 = arith.constant 0 : index
    %16 = vector.load %arg2[%c0_13, %c0_14] : memref<1x8xf32, #tpu.memory_space<vmem>>, vector<1x8xf32>
    %17 = vector.broadcast %16 : vector<1x8xf32> to vector<450x8xf32>
    %18 = arith.addf %15, %17 : vector<450x8xf32>
    %cst_15 = arith.constant 0.000000e+00 : f32
    %19 = vector.broadcast %cst_15 : f32 to vector<450x8xf32>
    %20 = arith.maximumf %18, %19 : vector<450x8xf32>
    %c0_16 = arith.constant 0 : index
    %c0_17 = arith.constant 0 : index
    %21 = vector.load %arg3[%c0_16, %c0_17] : memref<450x8xf32, #tpu.memory_space<vmem>>, vector<450x8xf32>
    tpu.vector_store %arg3[%c0_16, %c0_17], %20 {strides = array<i32>} : memref<450x8xf32, #tpu.memory_space<vmem>>, vector<450x8xf32>,
    return
  }
}

module attributes {stable_mosaic.version = 11 : i64} {
  func.func @conv_pool_kernel(%arg0: memref<4x72x72xbf16, #tpu.memory_space<vmem>>, %arg1: memref<72x16xbf16, #tpu.memory_space<vmem>>, %arg2: memref<1x16xf32, #tpu.memory_space<vmem>>, %arg3: memref<72x16xf32, #tpu.memory_space<vmem>>) attributes {dimension_semantics = [], scalar_prefetch = 0 : i64, scratch_operands = 0 : i64, tpu.core_type = #tpu.core_type<tc>} {
    %c0 = arith.constant 0 : index
    %c0_0 = arith.constant 0 : index
    %0 = vector.load %arg1[%c0, %c0_0] : memref<72x16xbf16, #tpu.memory_space<vmem>>, vector<72x16xbf16>
    %c0_1 = arith.constant 0 : index
    %c0_2 = arith.constant 0 : index
    %c0_3 = arith.constant 0 : index
    %1 = vector.load %arg0[%c0_1, %c0_2, %c0_3] : memref<4x72x72xbf16, #tpu.memory_space<vmem>>, vector<1x72x72xbf16>
    %2 = vector.shape_cast %1 : vector<1x72x72xbf16> to vector<72x72xbf16>
    %cst = arith.constant dense<0.000000e+00> : vector<72x16xf32>
    %3 = tpu.matmul %2, %0, %cst {dimension_numbers = #tpu.dot_dimension_numbers<[1], [0], [0], [1], [0, 0, 1, 1], [], []>} : vector<72x72xbf16>, vector<72x16xbf16>, vector<72x16xf32> -> vector<72x16xf32>
    %c1 = arith.constant 1 : index
    %c0_4 = arith.constant 0 : index
    %c0_5 = arith.constant 0 : index
    %4 = vector.load %arg0[%c1, %c0_4, %c0_5] : memref<4x72x72xbf16, #tpu.memory_space<vmem>>, vector<1x72x72xbf16>
    %5 = vector.shape_cast %4 : vector<1x72x72xbf16> to vector<72x72xbf16>
    %cst_6 = arith.constant dense<0.000000e+00> : vector<72x16xf32>
    %6 = tpu.matmul %5, %0, %cst_6 {dimension_numbers = #tpu.dot_dimension_numbers<[1], [0], [0], [1], [0, 0, 1, 1], [], []>} : vector<72x72xbf16>, vector<72x16xbf16>, vector<72x16xf32> -> vector<72x16xf32>
    %7 = arith.maximumf %3, %6 : vector<72x16xf32>
    %c2 = arith.constant 2 : index
    %c0_7 = arith.constant 0 : index
    %c0_8 = arith.constant 0 : index
    %8 = vector.load %arg0[%c2, %c0_7, %c0_8] : memref<4x72x72xbf16, #tpu.memory_space<vmem>>, vector<1x72x72xbf16>
    %9 = vector.shape_cast %8 : vector<1x72x72xbf16> to vector<72x72xbf16>
    %cst_9 = arith.constant dense<0.000000e+00> : vector<72x16xf32>
    %10 = tpu.matmul %9, %0, %cst_9 {dimension_numbers = #tpu.dot_dimension_numbers<[1], [0], [0], [1], [0, 0, 1, 1], [], []>} : vector<72x72xbf16>, vector<72x16xbf16>, vector<72x16xf32> -> vector<72x16xf32>
    %11 = arith.maximumf %7, %10 : vector<72x16xf32>
    %c3 = arith.constant 3 : index
    %c0_10 = arith.constant 0 : index
    %c0_11 = arith.constant 0 : index
    %12 = vector.load %arg0[%c3, %c0_10, %c0_11] : memref<4x72x72xbf16, #tpu.memory_space<vmem>>, vector<1x72x72xbf16>
    %13 = vector.shape_cast %12 : vector<1x72x72xbf16> to vector<72x72xbf16>
    %cst_12 = arith.constant dense<0.000000e+00> : vector<72x16xf32>
    %14 = tpu.matmul %13, %0, %cst_12 {dimension_numbers = #tpu.dot_dimension_numbers<[1], [0], [0], [1], [0, 0, 1, 1], [], []>} : vector<72x72xbf16>, vector<72x16xbf16>, vector<72x16xf32> -> vector<72x16xf32>
    %15 = arith.maximumf %11, %14 : vector<72x16xf32>
    %c0_13 = arith.constant 0 : index
    %c0_14 = arith.constant 0 : index
    %16 = vector.load %arg2[%c0_13, %c0_14] : memref<1x16xf32, #tpu.memory_space<vmem>>, vector<1x16xf32>
    %17 = vector.broadcast %16 : vector<1x16xf32> to vector<72x16xf32>
    %18 = arith.addf %15, %17 : vector<72x16xf32>
    %cst_15 = arith.constant 0.000000e+00 : f32
    %19 = vector.broadcast %cst_15 : f32 to vector<72x16xf32>
    %20 = arith.maximumf %18, %19 : vector<72x16xf32>
    %c0_16 = arith.constant 0 : index
    %c0_17 = arith.constant 0 : index
    %21 = vector.load %arg3[%c0_16, %c0_17] : memref<72x16xf32, #tpu.memory_space<vmem>>, vector<72x16xf32>
    tpu.vector_store %arg3[%c0_16, %c0_17], %20 {strides = array<i32>} : memref<72x16xf32, #tpu.memory_space<vmem>>, vector<72x16xf32>,
    return
  }
}

module attributes {stable_mosaic.version = 11 : i64} {
  func.func @conv_pool_head_kernel(%arg0: memref<4x8x144xbf16, #tpu.memory_space<vmem>>, %arg1: memref<144x32xbf16, #tpu.memory_space<vmem>>, %arg2: memref<1x32xf32, #tpu.memory_space<vmem>>, %arg3: memref<4x128x8xf32, #tpu.memory_space<vmem>>, %arg4: memref<4x32x128xf32, #tpu.memory_space<vmem>>, %arg5: memref<8x128xf32, #tpu.memory_space<vmem>>) attributes {dimension_semantics = [], scalar_prefetch = 0 : i64, scratch_operands = 0 : i64, tpu.core_type = #tpu.core_type<tc>} {
    %c0 = arith.constant 0 : index
    %c0_0 = arith.constant 0 : index
    %0 = vector.load %arg1[%c0, %c0_0] : memref<144x32xbf16, #tpu.memory_space<vmem>>, vector<144x32xbf16>
    %c0_1 = arith.constant 0 : index
    %c0_2 = arith.constant 0 : index
    %c0_3 = arith.constant 0 : index
    %1 = vector.load %arg0[%c0_1, %c0_2, %c0_3] : memref<4x8x144xbf16, #tpu.memory_space<vmem>>, vector<1x8x144xbf16>
    %2 = vector.shape_cast %1 : vector<1x8x144xbf16> to vector<8x144xbf16>
    %cst = arith.constant dense<0.000000e+00> : vector<8x32xf32>
    %3 = tpu.matmul %2, %0, %cst {dimension_numbers = #tpu.dot_dimension_numbers<[1], [0], [0], [1], [0, 0, 1, 1], [], []>} : vector<8x144xbf16>, vector<144x32xbf16>, vector<8x32xf32> -> vector<8x32xf32>
    %c1 = arith.constant 1 : index
    %c0_4 = arith.constant 0 : index
    %c0_5 = arith.constant 0 : index
    %4 = vector.load %arg0[%c1, %c0_4, %c0_5] : memref<4x8x144xbf16, #tpu.memory_space<vmem>>, vector<1x8x144xbf16>
    %5 = vector.shape_cast %4 : vector<1x8x144xbf16> to vector<8x144xbf16>
    %cst_6 = arith.constant dense<0.000000e+00> : vector<8x32xf32>
    %6 = tpu.matmul %5, %0, %cst_6 {dimension_numbers = #tpu.dot_dimension_numbers<[1], [0], [0], [1], [0, 0, 1, 1], [], []>} : vector<8x144xbf16>, vector<144x32xbf16>, vector<8x32xf32> -> vector<8x32xf32>
    %7 = arith.maximumf %3, %6 : vector<8x32xf32>
    %c2 = arith.constant 2 : index
    %c0_7 = arith.constant 0 : index
    %c0_8 = arith.constant 0 : index
    %8 = vector.load %arg0[%c2, %c0_7, %c0_8] : memref<4x8x144xbf16, #tpu.memory_space<vmem>>, vector<1x8x144xbf16>
    %9 = vector.shape_cast %8 : vector<1x8x144xbf16> to vector<8x144xbf16>
    %cst_9 = arith.constant dense<0.000000e+00> : vector<8x32xf32>
    %10 = tpu.matmul %9, %0, %cst_9 {dimension_numbers = #tpu.dot_dimension_numbers<[1], [0], [0], [1], [0, 0, 1, 1], [], []>} : vector<8x144xbf16>, vector<144x32xbf16>, vector<8x32xf32> -> vector<8x32xf32>
    %11 = arith.maximumf %7, %10 : vector<8x32xf32>
    %c3 = arith.constant 3 : index
    %c0_10 = arith.constant 0 : index
    %c0_11 = arith.constant 0 : index
    %12 = vector.load %arg0[%c3, %c0_10, %c0_11] : memref<4x8x144xbf16, #tpu.memory_space<vmem>>, vector<1x8x144xbf16>
    %13 = vector.shape_cast %12 : vector<1x8x144xbf16> to vector<8x144xbf16>
    %cst_12 = arith.constant dense<0.000000e+00> : vector<8x32xf32>
    %14 = tpu.matmul %13, %0, %cst_12 {dimension_numbers = #tpu.dot_dimension_numbers<[1], [0], [0], [1], [0, 0, 1, 1], [], []>} : vector<8x144xbf16>, vector<144x32xbf16>, vector<8x32xf32> -> vector<8x32xf32>
    %15 = arith.maximumf %11, %14 : vector<8x32xf32>
    %c0_13 = arith.constant 0 : index
    %c0_14 = arith.constant 0 : index
    %16 = vector.load %arg2[%c0_13, %c0_14] : memref<1x32xf32, #tpu.memory_space<vmem>>, vector<1x32xf32>
    %17 = vector.broadcast %16 : vector<1x32xf32> to vector<8x32xf32>
    %18 = arith.addf %15, %17 : vector<8x32xf32>
    %cst_15 = arith.constant 0.000000e+00 : f32
    %19 = vector.broadcast %cst_15 : f32 to vector<8x32xf32>
    %20 = arith.maximumf %18, %19 : vector<8x32xf32>
    %c0_16 = arith.constant 0 : index
    %c0_17 = arith.constant 0 : index
    %c0_18 = arith.constant 0 : index
    %21 = vector.load %arg3[%c0_16, %c0_17, %c0_18] : memref<4x128x8xf32, #tpu.memory_space<vmem>>, vector<1x128x8xf32>
    %22 = vector.shape_cast %21 : vector<1x128x8xf32> to vector<128x8xf32>
    %cst_19 = arith.constant dense<0.000000e+00> : vector<128x32xf32>
    %23 = tpu.matmul %22, %20, %cst_19 {dimension_numbers = #tpu.dot_dimension_numbers<[1], [0], [0], [1], [0, 0, 1, 1], [], []>} : vector<128x8xf32>, vector<8x32xf32>, vector<128x32xf32> -> vector<128x32xf32>
    %c0_20 = arith.constant 0 : index
    %c0_21 = arith.constant 0 : index
    %c0_22 = arith.constant 0 : index
    %24 = vector.load %arg4[%c0_20, %c0_21, %c0_22] : memref<4x32x128xf32, #tpu.memory_space<vmem>>, vector<1x32x128xf32>
    %25 = vector.shape_cast %24 : vector<1x32x128xf32> to vector<32x128xf32>
    %cst_23 = arith.constant dense<0.000000e+00> : vector<128x128xf32>
    %26 = tpu.matmul %23, %25, %cst_23 {dimension_numbers = #tpu.dot_dimension_numbers<[1], [0], [0], [1], [0, 0, 1, 1], [], []>} : vector<128x32xf32>, vector<32x128xf32>, vector<128x128xf32> -> vector<128x128xf32>
    %c1_24 = arith.constant 1 : index
    %c0_25 = arith.constant 0 : index
    %c0_26 = arith.constant 0 : index
    %27 = vector.load %arg3[%c1_24, %c0_25, %c0_26] : memref<4x128x8xf32, #tpu.memory_space<vmem>>, vector<1x128x8xf32>
    %28 = vector.shape_cast %27 : vector<1x128x8xf32> to vector<128x8xf32>
    %cst_27 = arith.constant dense<0.000000e+00> : vector<128x32xf32>
    %29 = tpu.matmul %28, %20, %cst_27 {dimension_numbers = #tpu.dot_dimension_numbers<[1], [0], [0], [1], [0, 0, 1, 1], [], []>} : vector<128x8xf32>, vector<8x32xf32>, vector<128x32xf32> -> vector<128x32xf32>
    %c1_28 = arith.constant 1 : index
    %c0_29 = arith.constant 0 : index
    %c0_30 = arith.constant 0 : index
    %30 = vector.load %arg4[%c1_28, %c0_29, %c0_30] : memref<4x32x128xf32, #tpu.memory_space<vmem>>, vector<1x32x128xf32>
    %31 = vector.shape_cast %30 : vector<1x32x128xf32> to vector<32x128xf32>
    %cst_31 = arith.constant dense<0.000000e+00> : vector<128x128xf32>
    %32 = tpu.matmul %29, %31, %cst_31 {dimension_numbers = #tpu.dot_dimension_numbers<[1], [0], [0], [1], [0, 0, 1, 1], [], []>} : vector<128x32xf32>, vector<32x128xf32>, vector<128x128xf32> -> vector<128x128xf32>
    %33 = arith.addf %26, %32 : vector<128x128xf32>
    %c2_32 = arith.constant 2 : index
    %c0_33 = arith.constant 0 : index
    %c0_34 = arith.constant 0 : index
    %34 = vector.load %arg3[%c2_32, %c0_33, %c0_34] : memref<4x128x8xf32, #tpu.memory_space<vmem>>, vector<1x128x8xf32>
    %35 = vector.shape_cast %34 : vector<1x128x8xf32> to vector<128x8xf32>
    %cst_35 = arith.constant dense<0.000000e+00> : vector<128x32xf32>
    %36 = tpu.matmul %35, %20, %cst_35 {dimension_numbers = #tpu.dot_dimension_numbers<[1], [0], [0], [1], [0, 0, 1, 1], [], []>} : vector<128x8xf32>, vector<8x32xf32>, vector<128x32xf32> -> vector<128x32xf32>
    %c2_36 = arith.constant 2 : index
    %c0_37 = arith.constant 0 : index
    %c0_38 = arith.constant 0 : index
    %37 = vector.load %arg4[%c2_36, %c0_37, %c0_38] : memref<4x32x128xf32, #tpu.memory_space<vmem>>, vector<1x32x128xf32>
    %38 = vector.shape_cast %37 : vector<1x32x128xf32> to vector<32x128xf32>
    %cst_39 = arith.constant dense<0.000000e+00> : vector<128x128xf32>
    %39 = tpu.matmul %36, %38, %cst_39 {dimension_numbers = #tpu.dot_dimension_numbers<[1], [0], [0], [1], [0, 0, 1, 1], [], []>} : vector<128x32xf32>, vector<32x128xf32>, vector<128x128xf32> -> vector<128x128xf32>
    %40 = arith.addf %33, %39 : vector<128x128xf32>
    %c3_40 = arith.constant 3 : index
    %c0_41 = arith.constant 0 : index
    %c0_42 = arith.constant 0 : index
    %41 = vector.load %arg3[%c3_40, %c0_41, %c0_42] : memref<4x128x8xf32, #tpu.memory_space<vmem>>, vector<1x128x8xf32>
    %42 = vector.shape_cast %41 : vector<1x128x8xf32> to vector<128x8xf32>
    %cst_43 = arith.constant dense<0.000000e+00> : vector<128x32xf32>
    %43 = tpu.matmul %42, %20, %cst_43 {dimension_numbers = #tpu.dot_dimension_numbers<[1], [0], [0], [1], [0, 0, 1, 1], [], []>} : vector<128x8xf32>, vector<8x32xf32>, vector<128x32xf32> -> vector<128x32xf32>
    %c3_44 = arith.constant 3 : index
    %c0_45 = arith.constant 0 : index
    %c0_46 = arith.constant 0 : index
    %44 = vector.load %arg4[%c3_44, %c0_45, %c0_46] : memref<4x32x128xf32, #tpu.memory_space<vmem>>, vector<1x32x128xf32>
    %45 = vector.shape_cast %44 : vector<1x32x128xf32> to vector<32x128xf32>
    %cst_47 = arith.constant dense<0.000000e+00> : vector<128x128xf32>
    %46 = tpu.matmul %43, %45, %cst_47 {dimension_numbers = #tpu.dot_dimension_numbers<[1], [0], [0], [1], [0, 0, 1, 1], [], []>} : vector<128x32xf32>, vector<32x128xf32>, vector<128x128xf32> -> vector<128x128xf32>
    %47 = arith.addf %40, %46 : vector<128x128xf32>
    %48 = vector.extract_strided_slice %47 {offsets = [0, 0], sizes = [8, 128], strides = [1, 1]} : vector<128x128xf32> to vector<8x128xf32>
    %cst_48 = arith.constant dense<0.000000e+00> : vector<8x128xf32>
    %49 = tpu.matmul %48, %47, %cst_48 {dimension_numbers = #tpu.dot_dimension_numbers<[1], [1], [0], [0], [0, 0, 1, 0], [], []>} : vector<8x128xf32>, vector<128x128xf32>, vector<8x128xf32> -> vector<8x128xf32>
    %50 = tpu.iota {dimensions = array<i32: 1>} : vector<8x128xi32>
    %c13_i32 = arith.constant 13 : i32
    %51 = vector.broadcast %c13_i32 : i32 to vector<8x128xi32>
    %52 = arith.cmpi slt, %50, %51 : vector<8x128xi32>
    %cst_49 = arith.constant 0xFF800000 : f32
    %53 = vector.broadcast %cst_49 : f32 to vector<8x128xf32>
    %54 = arith.select %52, %49, %53 : vector<8x128xi1>, vector<8x128xf32>
    %cst_50 = arith.constant dense<0xFF800000> : vector<8xf32>
    %55 = vector.multi_reduction <maximumf>, %54, %cst_50 [1] : vector<8x128xf32> to vector<8xf32>
    %56 = vector.shape_cast %55 : vector<8xf32> to vector<8x1xf32>
    %57 = vector.broadcast %56 : vector<8x1xf32> to vector<8x128xf32>
    %58 = arith.subf %54, %57 : vector<8x128xf32>
    %59 = math.exp %58 : vector<8x128xf32>
    %cst_51 = arith.constant dense<0.000000e+00> : vector<8xf32>
    %60 = vector.multi_reduction <add>, %59, %cst_51 [1] : vector<8x128xf32> to vector<8xf32>
    %61 = vector.shape_cast %60 : vector<8xf32> to vector<8x1xf32>
    %62 = vector.broadcast %61 : vector<8x1xf32> to vector<8x128xf32>
    %63 = arith.divf %59, %62 : vector<8x128xf32>
    %c0_52 = arith.constant 0 : index
    %c0_53 = arith.constant 0 : index
    %64 = vector.load %arg5[%c0_52, %c0_53] : memref<8x128xf32, #tpu.memory_space<vmem>>, vector<8x128xf32>
    tpu.vector_store %arg5[%c0_52, %c0_53], %63 {strides = array<i32>} : memref<8x128xf32, #tpu.memory_space<vmem>>, vector<8x128xf32>,
    return
  }
}

</mosaic_0001>

<llo_original>
// kernel: cnn_forward.3
$region0: #{cnn_forward.3}
  #allocation0 [shape = 'u32[]', space=smem, size = 0x4, offset = 0x4, fixed_abs, tag = 'smem constant byte address 0x4 - core index']
  #allocation1 [shape = 'u32[144,128]{1,0:T(1,128)}', space=vmem, size = 0x12000, scoped, tag = 'internal scratch']
  %s0 = inlined_call_operand.vmem [shape: bf16[4,450,27], index: 0, kind: input, shape index: {}]
  %s1 = inlined_call_operand.vmem [shape: bf16[27,8], index: 1, kind: input, shape index: {}]
  %s2 = inlined_call_operand.vmem [shape: f32[1,8], index: 2, kind: input, shape index: {}]
  %s3 = inlined_call_operand.vmem [shape: f32[450,8], index: 3, kind: output, shape index: {}]
  %s4 = sld [smem:[#allocation0]]
  $region22: #{cnn_forward.3} parent=0
    _
  %s6 = ssub.s32 1, %s4
  %s7 = scalar_select 0, %s6, %s4
  // Predicated region
  $region2: #{cnn_forward.3} parent=0 // pred_check
    _
  $region3: #{cnn_forward.3} parent=0 // pred_check_branch
    %9 = sbr.rel (0) target = $region5
  $region4: #{cnn_forward.3} parent=0 // pred_region
    _
  $region5: #{cnn_forward.3} parent=0 // pred_fallthru
    _
  // Predicated region
  $region6: #{cnn_forward.3} parent=0 // pred_check
    _
  $region7: #{cnn_forward.3} parent=0 // pred_check_branch
    %11 = sbr.rel (0) target = $region9
  $region8: #{cnn_forward.3} parent=0 // pred_region
    _
  $region9: #{cnn_forward.3} parent=0 // pred_fallthru
    _
  // Predicated region
  $region10: #{cnn_forward.3} parent=0 // pred_check
    _
  $region11: #{cnn_forward.3} parent=0 // pred_check_branch
    %13 = sbr.rel (0) target = $region13
  $region12: #{cnn_forward.3} parent=0 // pred_region
    _
  $region13: #{cnn_forward.3} parent=0 // pred_fallthru
    _
  %v15 = vld [vmem:[%s1] sm:$0xf]
  %v16 = vld [vmem:[%s1 + $0x4] sm:$0xf]
  %v17 = vld [vmem:[%s1 + $0x8] sm:$0xf]
  %v18 = vld [vmem:[%s1 + $0xc] sm:$0x3]
  %v19 = vld [vmem:[%s0] sm:$0xf]
  %v20 = vld [vmem:[%s0 + $0x4] sm:$0xf]
  %v21 = vld [vmem:[%s0 + $0x8] sm:$0xf]
  %v22 = vld [vmem:[%s0 + $0xc] sm:$0xf]
  %v23 = vld [vmem:[%s0 + $0x10] sm:$0xf]
  %v24 = vld [vmem:[%s0 + $0x14] sm:$0xf]
  %v25 = vld [vmem:[%s0 + $0x18] sm:$0xf]
  %v26 = vld [vmem:[%s0 + $0x1c] sm:$0xf]
  %v27 = vld [vmem:[%s0 + $0x20] sm:$0xf]
  %v28 = vld [vmem:[%s0 + $0x24] sm:$0xf]
  %v29 = vld [vmem:[%s0 + $0x28] sm:$0xf]
  %v30 = vld [vmem:[%s0 + $0x2c] sm:$0xf]
  %v31 = vld [vmem:[%s0 + $0x30] sm:$0xf]
  %v32 = vld [vmem:[%s0 + $0x34] sm:$0xf]
  %v33 = vld [vmem:[%s0 + $0x38] sm:$0xf]
  %v34 = vld [vmem:[%s0 + $0x3c] sm:$0xf]
  %v35 = vld [vmem:[%s0 + $0x40] sm:$0xf]
  %v36 = vld [vmem:[%s0 + $0x44] sm:$0xf]
  %v37 = vld [vmem:[%s0 + $0x48] sm:$0xf]
  %v38 = vld [vmem:[%s0 + $0x4c] sm:$0xf]
  %v39 = vld [vmem:[%s0 + $0x50] sm:$0xf]
  %v40 = vld [vmem:[%s0 + $0x54] sm:$0xf]
  %v41 = vld [vmem:[%s0 + $0x58] sm:$0xf]
  %v42 = vld [vmem:[%s0 + $0x5c] sm:$0xf]
  %v43 = vld [vmem:[%s0 + $0x60] sm:$0xf]
  %v44 = vld [vmem:[%s0 + $0x64] sm:$0xf]
  %v45 = vld [vmem:[%s0 + $0x68] sm:$0xf]
  %v46 = vld [vmem:[%s0 + $0x6c] sm:$0xf]
  %v47 = vld [vmem:[%s0 + $0x70] sm:$0xf]
  %v48 = vld [vmem:[%s0 + $0x74] sm:$0xf]
  %v49 = vld [vmem:[%s0 + $0x78] sm:$0xf]
  %v50 = vld [vmem:[%s0 + $0x7c] sm:$0xf]
  %v51 = vld [vmem:[%s0 + $0x80] sm:$0xf]
  %v52 = vld [vmem:[%s0 + $0x84] sm:$0xf]
  %v53 = vld [vmem:[%s0 + $0x88] sm:$0xf]
  %v54 = vld [vmem:[%s0 + $0x8c] sm:$0xf]
  %v55 = vld [vmem:[%s0 + $0x90] sm:$0xf]
  %v56 = vld [vmem:[%s0 + $0x94] sm:$0xf]
  %v57 = vld [vmem:[%s0 + $0x98] sm:$0xf]
  %v58 = vld [vmem:[%s0 + $0x9c] sm:$0xf]
  %v59 = vld [vmem:[%s0 + $0xa0] sm:$0xf]
  %v60 = vld [vmem:[%s0 + $0xa4] sm:$0xf]
  %v61 = vld [vmem:[%s0 + $0xa8] sm:$0xf]
  %v62 = vld [vmem:[%s0 + $0xac] sm:$0xf]
  %v63 = vld [vmem:[%s0 + $0xb0] sm:$0xf]
  %v64 = vld [vmem:[%s0 + $0xb4] sm:$0xf]
  %v65 = vld [vmem:[%s0 + $0xb8] sm:$0xf]
  %v66 = vld [vmem:[%s0 + $0xbc] sm:$0xf]
  %v67 = vld [vmem:[%s0 + $0xc0] sm:$0xf]
  %v68 = vld [vmem:[%s0 + $0xc4] sm:$0xf]
  %v69 = vld [vmem:[%s0 + $0xc8] sm:$0xf]
  %v70 = vld [vmem:[%s0 + $0xcc] sm:$0xf]
  %v71 = vld [vmem:[%s0 + $0xd0] sm:$0xf]
  %v72 = vld [vmem:[%s0 + $0xd4] sm:$0xf]
  %v73 = vld [vmem:[%s0 + $0xd8] sm:$0xf]
  %v74 = vld [vmem:[%s0 + $0xdc] sm:$0xf]
  %v75 = vld [vmem:[%s0 + $0xe0] sm:$0x1]
  %v133 = vunpack.c.l.b16 %v19
  %v134 = vunpack.c.l.b16 %v20
  %v135 = vunpack.c.l.b16 %v21
  %v136 = vunpack.c.l.b16 %v22
  %v137 = vunpack.c.l.b16 %v23
  %v138 = vunpack.c.l.b16 %v24
  %v139 = vunpack.c.l.b16 %v25
  %v140 = vunpack.c.l.b16 %v26
  %v141 = vunpack.c.l.b16 %v27
  %v142 = vunpack.c.l.b16 %v28
  %v143 = vunpack.c.l.b16 %v29
  %v144 = vunpack.c.l.b16 %v30
  %v145 = vunpack.c.l.b16 %v31
  %v146 = vunpack.c.l.b16 %v32
  %v147 = vunpack.c.l.b16 %v33
  %v148 = vunpack.c.l.b16 %v34
  %v149 = vunpack.c.l.b16 %v35
  %v150 = vunpack.c.l.b16 %v36
  %v151 = vunpack.c.l.b16 %v37
  %v152 = vunpack.c.l.b16 %v38
  %v153 = vunpack.c.l.b16 %v39
  %v154 = vunpack.c.l.b16 %v40
  %v155 = vunpack.c.l.b16 %v41
  %v156 = vunpack.c.l.b16 %v42
  %v157 = vunpack.c.l.b16 %v43
  %v158 = vunpack.c.l.b16 %v44
  %v159 = vunpack.c.l.b16 %v45
  %v160 = vunpack.c.l.b16 %v46
  %v161 = vunpack.c.l.b16 %v47
  %v162 = vunpack.c.l.b16 %v48
  %v163 = vunpack.c.l.b16 %v49
  %v164 = vunpack.c.l.b16 %v50
  %v165 = vunpack.c.l.b16 %v51
  %v166 = vunpack.c.l.b16 %v52
  %v167 = vunpack.c.l.b16 %v53
  %v168 = vunpack.c.l.b16 %v54
  %v169 = vunpack.c.l.b16 %v55
  %v170 = vunpack.c.l.b16 %v56
  %v171 = vunpack.c.l.b16 %v57
  %v172 = vunpack.c.l.b16 %v58
  %v173 = vunpack.c.l.b16 %v59
  %v174 = vunpack.c.l.b16 %v60
  %v175 = vunpack.c.l.b16 %v61
  %v176 = vunpack.c.l.b16 %v62
  %v177 = vunpack.c.l.b16 %v63
  %v178 = vunpack.c.l.b16 %v64
  %v179 = vunpack.c.l.b16 %v65
  %v180 = vunpack.c.l.b16 %v66
  %v181 = vunpack.c.l.b16 %v67
  %v182 = vunpack.c.l.b16 %v68
  %v183 = vunpack.c.l.b16 %v69
  %v184 = vunpack.c.l.b16 %v70
  %v185 = vunpack.c.l.b16 %v71
  %v186 = vunpack.c.l.b16 %v72
  %v187 = vunpack.c.l.b16 %v73
  %v188 = vunpack.c.l.b16 %v74
  %v189 = vunpack.c.l.b16 %v75
  %v190 = vpack.c.b16 %v134, %v133
  %v191 = vpack.c.b16 %v136, %v135
  %v192 = vpack.c.b16 %v138, %v137
  %v193 = vpack.c.b16 %v140, %v139
  %v194 = vpack.c.b16 %v142, %v141
  %v195 = vpack.c.b16 %v144, %v143
  %v196 = vpack.c.b16 %v146, %v145
  %v197 = vpack.c.b16 %v148, %v147
  %v198 = vpack.c.b16 %v150, %v149
  %v199 = vpack.c.b16 %v152, %v151
  %v200 = vpack.c.b16 %v154, %v153
  %v201 = vpack.c.b16 %v156, %v155
  %v202 = vpack.c.b16 %v158, %v157
  %v203 = vpack.c.b16 %v160, %v159
  %v204 = vpack.c.b16 %v162, %v161
  %v205 = vpack.c.b16 %v164, %v163
  %v206 = vpack.c.b16 %v166, %v165
  %v207 = vpack.c.b16 %v168, %v167
  %v208 = vpack.c.b16 %v170, %v169
  %v209 = vpack.c.b16 %v172, %v171
  %v210 = vpack.c.b16 %v174, %v173
  %v211 = vpack.c.b16 %v176, %v175
  %v212 = vpack.c.b16 %v178, %v177
  %v213 = vpack.c.b16 %v180, %v179
  %v214 = vpack.c.b16 %v182, %v181
  %v215 = vpack.c.b16 %v184, %v183
  %v216 = vpack.c.b16 %v186, %v185
  %v217 = vpack.c.b16 %v188, %v187
  %v218 = vpack.c.b16 %v189, %v189
  %v223 = vunpack.c.l.b16 %v15
  %v224 = vunpack.c.l.b16 %v16
  %v225 = vunpack.c.l.b16 %v17
  %v226 = vunpack.c.l.b16 %v18
  %v227 = vpack.c.b16 %v224, %v223
  %v228 = vpack.c.b16 %v226, %v225
  %vm230 = vcmask 220160
  %v232 = vsel %vm230, %v190, 0
  %v235 = vsel %vm230, %v191, 0
  %v238 = vsel %vm230, %v192, 0
  %v241 = vsel %vm230, %v193, 0
  %v244 = vsel %vm230, %v194, 0
  %v247 = vsel %vm230, %v195, 0
  %v250 = vsel %vm230, %v196, 0
  %v253 = vsel %vm230, %v197, 0
  %v256 = vsel %vm230, %v198, 0
  %v259 = vsel %vm230, %v199, 0
  %v262 = vsel %vm230, %v200, 0
  %v265 = vsel %vm230, %v201, 0
  %v268 = vsel %vm230, %v202, 0
  %v271 = vsel %vm230, %v203, 0
  %v274 = vsel %vm230, %v204, 0
  %v277 = vsel %vm230, %v205, 0
  %v280 = vsel %vm230, %v206, 0
  %v283 = vsel %vm230, %v207, 0
  %v286 = vsel %vm230, %v208, 0
  %v289 = vsel %vm230, %v209, 0
  %v292 = vsel %vm230, %v210, 0
  %v295 = vsel %vm230, %v211, 0
  %v298 = vsel %vm230, %v212, 0
  %v301 = vsel %vm230, %v213, 0
  %v304 = vsel %vm230, %v214, 0
  %v307 = vsel %vm230, %v215, 0
  %v310 = vsel %vm230, %v216, 0
  %v313 = vsel %vm230, %v217, 0
  %v316 = vsel %vm230, %v218, 0
  %vm318 = vcmask 1044480
  %vm319 = vcmask 1045504
  %v320 = vsel %vm318, 4294967295, 65535
  %v321 = vsel %vm319, %v320, 0
  %v323 = vand.u32 %v228, %v321
  %325 = vmatprep.subr.bf16.mxu0 0
  %326 = vmatpush1.bf16.msra.mxu0 %v227
  %327 = vmatprep.subr.bf16.mxu0 0
  %328 = vmatpush1.bf16.msra.mxu0 %v323
  %329 = vmatprep.subr.bf16.mxu0 0
  %330 = vmatpush1.bf16.msra.mxu0 0
  %331 = vmatprep.subr.bf16.mxu0 0
  %332 = vmatpush1.bf16.msra.mxu0 0
  %333 = vmatprep.subr.bf16.mxu0 0
  %334 = vmatpush1.bf16.msra.mxu0 0
  %335 = vmatprep.subr.bf16.mxu0 0
  %336 = vmatpush1.bf16.msra.mxu0 0
  %337 = vmatprep.subr.bf16.mxu0 0
  %338 = vmatpush1.bf16.msra.mxu0 0
  %339 = vmatprep.subr.bf16.mxu0 0
  %340 = vmatpush1.bf16.msra.mxu0 0
  %341 = vmatprep.subr.bf16.mxu0 0
  %342 = vmatpush1.bf16.msra.mxu0 0
  %343 = vmatprep.subr.bf16.mxu0 0
  %344 = vmatpush1.bf16.msra.mxu0 0
  %345 = vmatprep.subr.bf16.mxu0 0
  %346 = vmatpush1.bf16.msra.mxu0 0
  %347 = vmatprep.subr.bf16.mxu0 0
  %348 = vmatpush1.bf16.msra.mxu0 0
  %349 = vmatprep.subr.bf16.mxu0 0
  %350 = vmatpush1.bf16.msra.mxu0 0
  %351 = vmatprep.subr.bf16.mxu0 0
  %352 = vmatpush1.bf16.msra.mxu0 0
  %353 = vmatprep.subr.bf16.mxu0 0
  %354 = vmatpush1.bf16.msra.mxu0 0
  %355 = vmatprep.subr.bf16.mxu0 0
  %356 = vmatpush1.bf16.msra.mxu0 0
  %357 = vmatprep.mubr.bf16.mxu0 0
  %358 = vmatmul.mubr.bf16.gmra.mrb[0].mxu0 %v232
  %v359 = vpop.f32.mrb[0].mxu0
  %v360 = vadd.f32 0.0, %v359
  %v361 = vpop.f32.mrb[0].mxu0
  %v362 = vpop.f32.mrb[0].mxu0
  %v363 = vadd.f32 0.0, %v362
  %v364 = vpop.f32.mrb[0].mxu0
  %365 = vmatprep.mubr.bf16.mxu0 0
  %366 = vmatmul.mubr.bf16.gmra.mrb[0].mxu0 %v235
  %v367 = vpop.f32.mrb[0].mxu0
  %v368 = vadd.f32 0.0, %v367
  %v369 = vpop.f32.mrb[0].mxu0
  %v370 = vpop.f32.mrb[0].mxu0
  %v371 = vadd.f32 0.0, %v370
  %v372 = vpop.f32.mrb[0].mxu0
  %373 = vmatprep.mubr.bf16.mxu0 0
  %374 = vmatmul.mubr.bf16.gmra.mrb[0].mxu0 %v238
  %v375 = vpop.f32.mrb[0].mxu0
  %v376 = vadd.f32 0.0, %v375
  %v377 = vpop.f32.mrb[0].mxu0
  %v378 = vpop.f32.mrb[0].mxu0
  %v379 = vadd.f32 0.0, %v378
  %v380 = vpop.f32.mrb[0].mxu0
  %381 = vmatprep.mubr.bf16.mxu0 0
  %382 = vmatmul.mubr.bf16.gmra.mrb[0].mxu0 %v241
  %v383 = vpop.f32.mrb[0].mxu0
  %v384 = vadd.f32 0.0, %v383
  %v385 = vpop.f32.mrb[0].mxu0
  %v386 = vpop.f32.mrb[0].mxu0
  %v387 = vadd.f32 0.0, %v386
  %v388 = vpop.f32.mrb[0].mxu0
  %389 = vmatprep.mubr.bf16.mxu0 0
  %390 = vmatmul.mubr.bf16.gmra.mrb[0].mxu0 %v244
  %v391 = vpop.f32.mrb[0].mxu0
  %v392 = vadd.f32 0.0, %v391
  %v393 = vpop.f32.mrb[0].mxu0
  %v394 = vpop.f32.mrb[0].mxu0
  %v395 = vadd.f32 0.0, %v394
  %v396 = vpop.f32.mrb[0].mxu0
  %397 = vmatprep.mubr.bf16.mxu0 0
  %398 = vmatmul.mubr.bf16.gmra.mrb[0].mxu0 %v247
  %v399 = vpop.f32.mrb[0].mxu0
  %v400 = vadd.f32 0.0, %v399
  %v401 = vpop.f32.mrb[0].mxu0
  %v402 = vpop.f32.mrb[0].mxu0
  %v403 = vadd.f32 0.0, %v402
  %v404 = vpop.f32.mrb[0].mxu0
  %405 = vmatprep.mubr.bf16.mxu0 0
  %406 = vmatmul.mubr.bf16.gmra.mrb[0].mxu0 %v250
  %v407 = vpop.f32.mrb[0].mxu0
  %v408 = vadd.f32 0.0, %v407
  %v409 = vpop.f32.mrb[0].mxu0
  %v410 = vpop.f32.mrb[0].mxu0
  %v411 = vadd.f32 0.0, %v410
  %v412 = vpop.f32.mrb[0].mxu0
  %413 = vmatprep.mubr.bf16.mxu0 0
  %414 = vmatmul.mubr.bf16.gmra.mrb[0].mxu0 %v253
  %v415 = vpop.f32.mrb[0].mxu0
  %v416 = vadd.f32 0.0, %v415
  %v417 = vpop.f32.mrb[0].mxu0
  %v418 = vpop.f32.mrb[0].mxu0
  %v419 = vadd.f32 0.0, %v418
  %v420 = vpop.f32.mrb[0].mxu0
  %421 = vmatprep.mubr.bf16.mxu0 0
  %422 = vmatmul.mubr.bf16.gmra.mrb[0].mxu0 %v256
  %v423 = vpop.f32.mrb[0].mxu0
  %v424 = vadd.f32 0.0, %v423
  %v425 = vpop.f32.mrb[0].mxu0
  %v426 = vpop.f32.mrb[0].mxu0
  %v427 = vadd.f32 0.0, %v426
  %v428 = vpop.f32.mrb[0].mxu0
  %429 = vmatprep.mubr.bf16.mxu0 0
  %430 = vmatmul.mubr.bf16.gmra.mrb[0].mxu0 %v259
  %v431 = vpop.f32.mrb[0].mxu0
  %v432 = vadd.f32 0.0, %v431
  %v433 = vpop.f32.mrb[0].mxu0
  %v434 = vpop.f32.mrb[0].mxu0
  %v435 = vadd.f32 0.0, %v434
  %v436 = vpop.f32.mrb[0].mxu0
  %437 = vmatprep.mubr.bf16.mxu0 0
  %438 = vmatmul.mubr.bf16.gmra.mrb[0].mxu0 %v262
  %v439 = vpop.f32.mrb[0].mxu0
  %v440 = vadd.f32 0.0, %v439
  %v441 = vpop.f32.mrb[0].mxu0
  %v442 = vpop.f32.mrb[0].mxu0
  %v443 = vadd.f32 0.0, %v442
  %v444 = vpop.f32.mrb[0].mxu0
  %445 = vmatprep.mubr.bf16.mxu0 0
  %446 = vmatmul.mubr.bf16.gmra.mrb[0].mxu0 %v265
  %v447 = vpop.f32.mrb[0].mxu0
  %v448 = vadd.f32 0.0, %v447
  %v449 = vpop.f32.mrb[0].mxu0
  %v450 = vpop.f32.mrb[0].mxu0
  %v451 = vadd.f32 0.0, %v450
  %v452 = vpop.f32.mrb[0].mxu0
  %453 = vmatprep.mubr.bf16.mxu0 0
  %454 = vmatmul.mubr.bf16.gmra.mrb[0].mxu0 %v268
  %v455 = vpop.f32.mrb[0].mxu0
  %v456 = vadd.f32 0.0, %v455
  %v457 = vpop.f32.mrb[0].mxu0
  %v458 = vpop.f32.mrb[0].mxu0
  %v459 = vadd.f32 0.0, %v458
  %v460 = vpop.f32.mrb[0].mxu0
  %461 = vmatprep.mubr.bf16.mxu0 0
  %462 = vmatmul.mubr.bf16.gmra.mrb[0].mxu0 %v271
  %v463 = vpop.f32.mrb[0].mxu0
  %v464 = vadd.f32 0.0, %v463
  %v465 = vpop.f32.mrb[0].mxu0
  %v466 = vpop.f32.mrb[0].mxu0
  %v467 = vadd.f32 0.0, %v466
  %v468 = vpop.f32.mrb[0].mxu0
  %469 = vmatprep.mubr.bf16.mxu0 0
  %470 = vmatmul.mubr.bf16.gmra.mrb[0].mxu0 %v274
  %v471 = vpop.f32.mrb[0].mxu0
  %v472 = vadd.f32 0.0, %v471
  %v473 = vpop.f32.mrb[0].mxu0
  %v474 = vpop.f32.mrb[0].mxu0
  %v475 = vadd.f32 0.0, %v474
  %v476 = vpop.f32.mrb[0].mxu0
  %477 = vmatprep.mubr.bf16.mxu0 0
  %478 = vmatmul.mubr.bf16.gmra.mrb[0].mxu0 %v277
  %v479 = vpop.f32.mrb[0].mxu0
  %v480 = vadd.f32 0.0, %v479
  %v481 = vpop.f32.mrb[0].mxu0
  %v482 = vpop.f32.mrb[0].mxu0
  %v483 = vadd.f32 0.0, %v482
  %v484 = vpop.f32.mrb[0].mxu0
  %485 = vmatprep.mubr.bf16.mxu0 0
  %486 = vmatmul.mubr.bf16.gmra.mrb[0].mxu0 %v280
  %v487 = vpop.f32.mrb[0].mxu0
  %v488 = vadd.f32 0.0, %v487
  %v489 = vpop.f32.mrb[0].mxu0
  %v490 = vpop.f32.mrb[0].mxu0
  %v491 = vadd.f32 0.0, %v490
  %v492 = vpop.f32.mrb[0].mxu0
  %493 = vmatprep.mubr.bf16.mxu0 0
  %494 = vmatmul.mubr.bf16.gmra.mrb[0].mxu0 %v283
  %v495 = vpop.f32.mrb[0].mxu0
  %v496 = vadd.f32 0.0, %v495
  %v497 = vpop.f32.mrb[0].mxu0
  %v498 = vpop.f32.mrb[0].mxu0
  %v499 = vadd.f32 0.0, %v498
  %v500 = vpop.f32.mrb[0].mxu0
  %501 = vmatprep.mubr.bf16.mxu0 0
  %502 = vmatmul.mubr.bf16.gmra.mrb[0].mxu0 %v286
  %v503 = vpop.f32.mrb[0].mxu0
  %v504 = vadd.f32 0.0, %v503
  %v505 = vpop.f32.mrb[0].mxu0
  %v506 = vpop.f32.mrb[0].mxu0
  %v507 = vadd.f32 0.0, %v506
  %v508 = vpop.f32.mrb[0].mxu0
  %509 = vmatprep.mubr.bf16.mxu0 0
  %510 = vmatmul.mubr.bf16.gmra.mrb[0].mxu0 %v289
  %v511 = vpop.f32.mrb[0].mxu0
  %v512 = vadd.f32 0.0, %v511
  %v513 = vpop.f32.mrb[0].mxu0
  %v514 = vpop.f32.mrb[0].mxu0
  %v515 = vadd.f32 0.0, %v514
  %v516 = vpop.f32.mrb[0].mxu0
  %517 = vmatprep.mubr.bf16.mxu0 0
  %518 = vmatmul.mubr.bf16.gmra.mrb[0].mxu0 %v292
  %v519 = vpop.f32.mrb[0].mxu0
  %v520 = vadd.f32 0.0, %v519
  %v521 = vpop.f32.mrb[0].mxu0
  %v522 = vpop.f32.mrb[0].mxu0
  %v523 = vadd.f32 0.0, %v522
  %v524 = vpop.f32.mrb[0].mxu0
  %525 = vmatprep.mubr.bf16.mxu0 0
  %526 = vmatmul.mubr.bf16.gmra.mrb[0].mxu0 %v295
  %v527 = vpop.f32.mrb[0].mxu0
  %v528 = vadd.f32 0.0, %v527
  %v529 = vpop.f32.mrb[0].mxu0
  %v530 = vpop.f32.mrb[0].mxu0
  %v531 = vadd.f32 0.0, %v530
  %v532 = vpop.f32.mrb[0].mxu0
  %533 = vmatprep.mubr.bf16.mxu0 0
  %534 = vmatmul.mubr.bf16.gmra.mrb[0].mxu0 %v298
  %v535 = vpop.f32.mrb[0].mxu0
  %v536 = vadd.f32 0.0, %v535
  %v537 = vpop.f32.mrb[0].mxu0
  %v538 = vpop.f32.mrb[0].mxu0
  %v539 = vadd.f32 0.0, %v538
  %v540 = vpop.f32.mrb[0].mxu0
  %541 = vmatprep.mubr.bf16.mxu0 0
  %542 = vmatmul.mubr.bf16.gmra.mrb[0].mxu0 %v301
  %v543 = vpop.f32.mrb[0].mxu0
  %v544 = vadd.f32 0.0, %v543
  %v545 = vpop.f32.mrb[0].mxu0
  %v546 = vpop.f32.mrb[0].mxu0
  %v547 = vadd.f32 0.0, %v546
  %v548 = vpop.f32.mrb[0].mxu0
  %549 = vmatprep.mubr.bf16.mxu0 0
  %550 = vmatmul.mubr.bf16.gmra.mrb[0].mxu0 %v304
  %v551 = vpop.f32.mrb[0].mxu0
  %v552 = vadd.f32 0.0, %v551
  %v553 = vpop.f32.mrb[0].mxu0
  %v554 = vpop.f32.mrb[0].mxu0
  %v555 = vadd.f32 0.0, %v554
  %v556 = vpop.f32.mrb[0].mxu0
  %557 = vmatprep.mubr.bf16.mxu0 0
  %558 = vmatmul.mubr.bf16.gmra.mrb[0].mxu0 %v307
  %v559 = vpop.f32.mrb[0].mxu0
  %v560 = vadd.f32 0.0, %v559
  %v561 = vpop.f32.mrb[0].mxu0
  %v562 = vpop.f32.mrb[0].mxu0
  %v563 = vadd.f32 0.0, %v562
  %v564 = vpop.f32.mrb[0].mxu0
  %565 = vmatprep.mubr.bf16.mxu0 0
  %566 = vmatmul.mubr.bf16.gmra.mrb[0].mxu0 %v310
  %v567 = vpop.f32.mrb[0].mxu0
  %v568 = vadd.f32 0.0, %v567
  %v569 = vpop.f32.mrb[0].mxu0
  %v570 = vpop.f32.mrb[0].mxu0
  %v571 = vadd.f32 0.0, %v570
  %v572 = vpop.f32.mrb[0].mxu0
  %573 = vmatprep.mubr.bf16.mxu0 0
  %574 = vmatmul.mubr.bf16.gmra.mrb[0].mxu0 %v313
  %v575 = vpop.f32.mrb[0].mxu0
  %v576 = vadd.f32 0.0, %v575
  %v577 = vpop.f32.mrb[0].mxu0
  %v578 = vpop.f32.mrb[0].mxu0
  %v579 = vadd.f32 0.0, %v578
  %v580 = vpop.f32.mrb[0].mxu0
  %581 = vmatprep.mubr.bf16.mxu0 0
  %582 = vmatmul.mubr.bf16.gmra.mrb[0].mxu0 %v316
  %v583 = vpop.f32.mrb[0].mxu0
  %v584 = vadd.f32 0.0, %v583
  %v585 = vpop.f32.mrb[0].mxu0
  %v586 = vpop.f32.mrb[0].mxu0
  %v587 = vpop.f32.mrb[0].mxu0
  %588 = vdwg.mxu0
  %s589 = scalar_lea.vmem %s0, 228
  %v590 = vld [vmem:[%s589] sm:$0xf]
  %v591 = vld [vmem:[%s589 + $0x4] sm:$0xf]
  %v592 = vld [vmem:[%s589 + $0x8] sm:$0xf]
  %v593 = vld [vmem:[%s589 + $0xc] sm:$0xf]
  %v594 = vld [vmem:[%s589 + $0x10] sm:$0xf]
  %v595 = vld [vmem:[%s589 + $0x14] sm:$0xf]
  %v596 = vld [vmem:[%s589 + $0x18] sm:$0xf]
  %v597 = vld [vmem:[%s589 + $0x1c] sm:$0xf]
  %v598 = vld [vmem:[%s589 + $0x20] sm:$0xf]
  %v599 = vld [vmem:[%s589 + $0x24] sm:$0xf]
  %v600 = vld [vmem:[%s589 + $0x28] sm:$0xf]
  %v601 = vld [vmem:[%s589 + $0x2c] sm:$0xf]
  %v602 = vld [vmem:[%s589 + $0x30] sm:$0xf]
  %v603 = vld [vmem:[%s589 + $0x34] sm:$0xf]
  %v604 = vld [vmem:[%s589 + $0x38] sm:$0xf]
  %v605 = vld [vmem:[%s589 + $0x3c] sm:$0xf]
  %v606 = vld [vmem:[%s589 + $0x40] sm:$0xf]
  %v607 = vld [vmem:[%s589 + $0x44] sm:$0xf]
  %v608 = vld [vmem:[%s589 + $0x48] sm:$0xf]
  %v609 = vld [vmem:[%s589 + $0x4c] sm:$0xf]
  %v610 = vld [vmem:[%s589 + $0x50] sm:$0xf]
  %v611 = vld [vmem:[%s589 + $0x54] sm:$0xf]
  %v612 = vld [vmem:[%s589 + $0x58] sm:$0xf]
  %v613 = vld [vmem:[%s589 + $0x5c] sm:$0xf]
  %v614 = vld [vmem:[%s589 + $0x60] sm:$0xf]
  %v615 = vld [vmem:[%s589 + $0x64] sm:$0xf]
  %v616 = vld [vmem:[%s589 + $0x68] sm:$0xf]
  %v617 = vld [vmem:[%s589 + $0x6c] sm:$0xf]
  %v618 = vld [vmem:[%s589 + $0x70] sm:$0xf]
  %v619 = vld [vmem:[%s589 + $0x74] sm:$0xf]
  %v620 = vld [vmem:[%s589 + $0x78] sm:$0xf]
  %v621 = vld [vmem:[%s589 + $0x7c] sm:$0xf]
  %v622 = vld [vmem:[%s589 + $0x80] sm:$0xf]
  %v623 = vld [vmem:[%s589 + $0x84] sm:$0xf]
  %v624 = vld [vmem:[%s589 + $0x88] sm:$0xf]
  %v625 = vld [vmem:[%s589 + $0x8c] sm:$0xf]
  %v626 = vld [vmem:[%s589 + $0x90] sm:$0xf]
  %v627 = vld [vmem:[%s589 + $0x94] sm:$0xf]
  %v628 = vld [vmem:[%s589 + $0x98] sm:$0xf]
  %v629 = vld [vmem:[%s589 + $0x9c] sm:$0xf]
  %v630 = vld [vmem:[%s589 + $0xa0] sm:$0xf]
  %v631 = vld [vmem:[%s589 + $0xa4] sm:$0xf]
  %v632 = vld [vmem:[%s589 + $0xa8] sm:$0xf]
  %v633 = vld [vmem:[%s589 + $0xac] sm:$0xf]
  %v634 = vld [vmem:[%s589 + $0xb0] sm:$0xf]
  %v635 = vld [vmem:[%s589 + $0xb4] sm:$0xf]
  %v636 = vld [vmem:[%s589 + $0xb8] sm:$0xf]
  %v637 = vld [vmem:[%s589 + $0xbc] sm:$0xf]
  %v638 = vld [vmem:[%s589 + $0xc0] sm:$0xf]
  %v639 = vld [vmem:[%s589 + $0xc4] sm:$0xf]
  %v640 = vld [vmem:[%s589 + $0xc8] sm:$0xf]
  %v641 = vld [vmem:[%s589 + $0xcc] sm:$0xf]
  %v642 = vld [vmem:[%s589 + $0xd0] sm:$0xf]
  %v643 = vld [vmem:[%s589 + $0xd4] sm:$0xf]
  %v644 = vld [vmem:[%s589 + $0xd8] sm:$0xf]
  %v645 = vld [vmem:[%s589 + $0xdc] sm:$0xf]
  %v646 = vld [vmem:[%s589 + $0xe0] sm:$0x1]
  %v704 = vunpack.c.l.b16 %v590
  %v705 = vunpack.c.l.b16 %v591
  %v706 = vunpack.c.l.b16 %v592
  %v707 = vunpack.c.l.b16 %v593
  %v708 = vunpack.c.l.b16 %v594
  %v709 = vunpack.c.l.b16 %v595
  %v710 = vunpack.c.l.b16 %v596
  %v711 = vunpack.c.l.b16 %v597
  %v712 = vunpack.c.l.b16 %v598
  %v713 = vunpack.c.l.b16 %v599
  %v714 = vunpack.c.l.b16 %v600
  %v715 = vunpack.c.l.b16 %v601
  %v716 = vunpack.c.l.b16 %v602
  %v717 = vunpack.c.l.b16 %v603
  %v718 = vunpack.c.l.b16 %v604
  %v719 = vunpack.c.l.b16 %v605
  %v720 = vunpack.c.l.b16 %v606
  %v721 = vunpack.c.l.b16 %v607
  %v722 = vunpack.c.l.b16 %v608
  %v723 = vunpack.c.l.b16 %v609
  %v724 = vunpack.c.l.b16 %v610
  %v725 = vunpack.c.l.b16 %v611
  %v726 = vunpack.c.l.b16 %v612
  %v727 = vunpack.c.l.b16 %v613
  %v728 = vunpack.c.l.b16 %v614
  %v729 = vunpack.c.l.b16 %v615
  %v730 = vunpack.c.l.b16 %v616
  %v731 = vunpack.c.l.b16 %v617
  %v732 = vunpack.c.l.b16 %v618
  %v733 = vunpack.c.l.b16 %v619
  %v734 = vunpack.c.l.b16 %v620
  %v735 = vunpack.c.l.b16 %v621
  %v736 = vunpack.c.l.b16 %v622
  %v737 = vunpack.c.l.b16 %v623
  %v738 = vunpack.c.l.b16 %v624
  %v739 = vunpack.c.l.b16 %v625
  %v740 = vunpack.c.l.b16 %v626
  %v741 = vunpack.c.l.b16 %v627
  %v742 = vunpack.c.l.b16 %v628
  %v743 = vunpack.c.l.b16 %v629
  %v744 = vunpack.c.l.b16 %v630
  %v745 = vunpack.c.l.b16 %v631
  %v746 = vunpack.c.l.b16 %v632
  %v747 = vunpack.c.l.b16 %v633
  %v748 = vunpack.c.l.b16 %v634
  %v749 = vunpack.c.l.b16 %v635
  %v750 = vunpack.c.l.b16 %v636
  %v751 = vunpack.c.l.b16 %v637
  %v752 = vunpack.c.l.b16 %v638
  %v753 = vunpack.c.l.b16 %v639
  %v754 = vunpack.c.l.b16 %v640
  %v755 = vunpack.c.l.b16 %v641
  %v756 = vunpack.c.l.b16 %v642
  %v757 = vunpack.c.l.b16 %v643
  %v758 = vunpack.c.l.b16 %v644
  %v759 = vunpack.c.l.b16 %v645
  %v760 = vunpack.c.l.b16 %v646
  %v761 = vpack.c.b16 %v705, %v704
  %v762 = vpack.c.b16 %v707, %v706
  %v763 = vpack.c.b16 %v709, %v708
  %v764 = vpack.c.b16 %v711, %v710
  %v765 = vpack.c.b16 %v713, %v712
  %v766 = vpack.c.b16 %v715, %v714
  %v767 = vpack.c.b16 %v717, %v716
  %v768 = vpack.c.b16 %v719, %v718
  %v769 = vpack.c.b16 %v721, %v720
  %v770 = vpack.c.b16 %v723, %v722
  %v771 = vpack.c.b16 %v725, %v724
  %v772 = vpack.c.b16 %v727, %v726
  %v773 = vpack.c.b16 %v729, %v728
  %v774 = vpack.c.b16 %v731, %v730
  %v775 = vpack.c.b16 %v733, %v732
  %v776 = vpack.c.b16 %v735, %v734
  %v777 = vpack.c.b16 %v737, %v736
  %v778 = vpack.c.b16 %v739, %v738
  %v779 = vpack.c.b16 %v741, %v740
  %v780 = vpack.c.b16 %v743, %v742
  %v781 = vpack.c.b16 %v745, %v744
  %v782 = vpack.c.b16 %v747, %v746
  %v783 = vpack.c.b16 %v749, %v748
  %v784 = vpack.c.b16 %v751, %v750
  %v785 = vpack.c.b16 %v753, %v752
  %v786 = vpack.c.b16 %v755, %v754
  %v787 = vpack.c.b16 %v757, %v756
  %v788 = vpack.c.b16 %v759, %v758
  %v789 = vpack.c.b16 %v760, %v760
  %v791 = vsel %vm230, %v761, 0
  %v794 = vsel %vm230, %v762, 0
  %v797 = vsel %vm230, %v763, 0
  %v800 = vsel %vm230, %v764, 0
  %v803 = vsel %vm230, %v765, 0
  %v806 = vsel %vm230, %v766, 0
  %v809 = vsel %vm230, %v767, 0
  %v812 = vsel %vm230, %v768, 0
  %v815 = vsel %vm230, %v769, 0
  %v818 = vsel %vm230, %v770, 0
  %v821 = vsel %vm230, %v771, 0
  %v824 = vsel %vm230, %v772, 0
  %v827 = vsel %vm230, %v773, 0
  %v830 = vsel %vm230, %v774, 0
  %v833 = vsel %vm230, %v775, 0
  %v836 = vsel %vm230, %v776, 0
  %v839 = vsel %vm230, %v777, 0
  %v842 = vsel %vm230, %v778, 0
  %v845 = vsel %vm230, %v779, 0
  %v848 = vsel %vm230, %v780, 0
  %v851 = vsel %vm230, %v781, 0
  %v854 = vsel %vm230, %v782, 0
  %v857 = vsel %vm230, %v783, 0
  %v860 = vsel %vm230, %v784, 0
  %v863 = vsel %vm230, %v785, 0
  %v866 = vsel %vm230, %v786, 0
  %v869 = vsel %vm230, %v787, 0
  %v872 = vsel %vm230, %v788, 0
  %v875 = vsel %vm230, %v789, 0
  %877 = vmatprep.subr.bf16.mxu0 0
  %878 = vmatpush1.bf16.msra.mxu0 %v227
  %879 = vmatprep.subr.bf16.mxu0 0
  %880 = vmatpush1.bf16.msra.mxu0 %v323
  %881 = vmatprep.subr.bf16.mxu0 0
  %882 = vmatpush1.bf16.msra.mxu0 0
  %883 = vmatprep.subr.bf16.mxu0 0
  %884 = vmatpush1.bf16.msra.mxu0 0
  %885 = vmatprep.subr.bf16.mxu0 0
  %886 = vmatpush1.bf16.msra.mxu0 0
  %887 = vmatprep.subr.bf16.mxu0 0
  %888 = vmatpush1.bf16.msra.mxu0 0
  %889 = vmatprep.subr.bf16.mxu0 0
  %890 = vmatpush1.bf16.msra.mxu0 0
  %891 = vmatprep.subr.bf16.mxu0 0
  %892 = vmatpush1.bf16.msra.mxu0 0
  %893 = vmatprep.subr.bf16.mxu0 0
  %894 = vmatpush1.bf16.msra.mxu0 0
  %895 = vmatprep.subr.bf16.mxu0 0
  %896 = vmatpush1.bf16.msra.mxu0 0
  %897 = vmatprep.subr.bf16.mxu0 0
  %898 = vmatpush1.bf16.msra.mxu0 0
  %899 = vmatprep.subr.bf16.mxu0 0
  %900 = vmatpush1.bf16.msra.mxu0 0
  %901 = vmatprep.subr.bf16.mxu0 0
  %902 = vmatpush1.bf16.msra.mxu0 0
  %903 = vmatprep.subr.bf16.mxu0 0
  %904 = vmatpush1.bf16.msra.mxu0 0
  %905 = vmatprep.subr.bf16.mxu0 0
  %906 = vmatpush1.bf16.msra.mxu0 0
  %907 = vmatprep.subr.bf16.mxu0 0
  %908 = vmatpush1.bf16.msra.mxu0 0
  %909 = vmatprep.mubr.bf16.mxu0 0
  %910 = vmatmul.mubr.bf16.gmra.mrb[0].mxu0 %v791
  %v911 = vpop.f32.mrb[0].mxu0
  %v912 = vadd.f32 0.0, %v911
  %v913 = vpop.f32.mrb[0].mxu0
  %v914 = vpop.f32.mrb[0].mxu0
  %v915 = vadd.f32 0.0, %v914
  %v916 = vpop.f32.mrb[0].mxu0
  %917 = vmatprep.mubr.bf16.mxu0 0
  %918 = vmatmul.mubr.bf16.gmra.mrb[0].mxu0 %v794
  %v919 = vpop.f32.mrb[0].mxu0
  %v920 = vadd.f32 0.0, %v919
  %v921 = vpop.f32.mrb[0].mxu0
  %v922 = vpop.f32.mrb[0].mxu0
  %v923 = vadd.f32 0.0, %v922
  %v924 = vpop.f32.mrb[0].mxu0
  %925 = vmatprep.mubr.bf16.mxu0 0
  %926 = vmatmul.mubr.bf16.gmra.mrb[0].mxu0 %v797
  %v927 = vpop.f32.mrb[0].mxu0
  %v928 = vadd.f32 0.0, %v927
  %v929 = vpop.f32.mrb[0].mxu0
  %v930 = vpop.f32.mrb[0].mxu0
  %v931 = vadd.f32 0.0, %v930
  %v932 = vpop.f32.mrb[0].mxu0
  %933 = vmatprep.mubr.bf16.mxu0 0
  %934 = vmatmul.mubr.bf16.gmra.mrb[0].mxu0 %v800
  %v935 = vpop.f32.mrb[0].mxu0
  %v936 = vadd.f32 0.0, %v935
  %v937 = vpop.f32.mrb[0].mxu0
  %v938 = vpop.f32.mrb[0].mxu0
  %v939 = vadd.f32 0.0, %v938
  %v940 = vpop.f32.mrb[0].mxu0
  %941 = vmatprep.mubr.bf16.mxu0 0
  %942 = vmatmul.mubr.bf16.gmra.mrb[0].mxu0 %v803
  %v943 = vpop.f32.mrb[0].mxu0
  %v944 = vadd.f32 0.0, %v943
  %v945 = vpop.f32.mrb[0].mxu0
  %v946 = vpop.f32.mrb[0].mxu0
  %v947 = vadd.f32 0.0, %v946
  %v948 = vpop.f32.mrb[0].mxu0
  %949 = vmatprep.mubr.bf16.mxu0 0
  %950 = vmatmul.mubr.bf16.gmra.mrb[0].mxu0 %v806
  %v951 = vpop.f32.mrb[0].mxu0
  %v952 = vadd.f32 0.0, %v951
  %v953 = vpop.f32.mrb[0].mxu0
  %v954 = vpop.f32.mrb[0].mxu0
  %v955 = vadd.f32 0.0, %v954
  %v956 = vpop.f32.mrb[0].mxu0
  %957 = vmatprep.mubr.bf16.mxu0 0
  %958 = vmatmul.mubr.bf16.gmra.mrb[0].mxu0 %v809
  %v959 = vpop.f32.mrb[0].mxu0
  %v960 = vadd.f32 0.0, %v959
  %v961 = vpop.f32.mrb[0].mxu0
  %v962 = vpop.f32.mrb[0].mxu0
  %v963 = vadd.f32 0.0, %v962
  %v964 = vpop.f32.mrb[0].mxu0
  %965 = vmatprep.mubr.bf16.mxu0 0
  %966 = vmatmul.mubr.bf16.gmra.mrb[0].mxu0 %v812
  %v967 = vpop.f32.mrb[0].mxu0
  %v968 = vadd.f32 0.0, %v967
  %v969 = vpop.f32.mrb[0].mxu0
  %v970 = vpop.f32.mrb[0].mxu0
  %v971 = vadd.f32 0.0, %v970
  %v972 = vpop.f32.mrb[0].mxu0
  %973 = vmatprep.mubr.bf16.mxu0 0
  %974 = vmatmul.mubr.bf16.gmra.mrb[0].mxu0 %v815
  %v975 = vpop.f32.mrb[0].mxu0
  %v976 = vadd.f32 0.0, %v975
  %v977 = vpop.f32.mrb[0].mxu0
  %v978 = vpop.f32.mrb[0].mxu0
  %v979 = vadd.f32 0.0, %v978
  %v980 = vpop.f32.mrb[0].mxu0
  %981 = vmatprep.mubr.bf16.mxu0 0
  %982 = vmatmul.mubr.bf16.gmra.mrb[0].mxu0 %v818
  %v983 = vpop.f32.mrb[0].mxu0
  %v984 = vadd.f32 0.0, %v983
  %v985 = vpop.f32.mrb[0].mxu0
  %v986 = vpop.f32.mrb[0].mxu0
  %v987 = vadd.f32 0.0, %v986
  %v988 = vpop.f32.mrb[0].mxu0
  %989 = vmatprep.mubr.bf16.mxu0 0
  %990 = vmatmul.mubr.bf16.gmra.mrb[0].mxu0 %v821
  %v991 = vpop.f32.mrb[0].mxu0
  %v992 = vadd.f32 0.0, %v991
  %v993 = vpop.f32.mrb[0].mxu0
  %v994 = vpop.f32.mrb[0].mxu0
  %v995 = vadd.f32 0.0, %v994
  %v996 = vpop.f32.mrb[0].mxu0
  %997 = vmatprep.mubr.bf16.mxu0 0
  %998 = vmatmul.mubr.bf16.gmra.mrb[0].mxu0 %v824
  %v999 = vpop.f32.mrb[0].mxu0
  %v1000 = vadd.f32 0.0, %v999
  %v1001 = vpop.f32.mrb[0].mxu0
  %v1002 = vpop.f32.mrb[0].mxu0
  %v1003 = vadd.f32 0.0, %v1002
  %v1004 = vpop.f32.mrb[0].mxu0
  %1005 = vmatprep.mubr.bf16.mxu0 0
  %1006 = vmatmul.mubr.bf16.gmra.mrb[0].mxu0 %v827
  %v1007 = vpop.f32.mrb[0].mxu0
  %v1008 = vadd.f32 0.0, %v1007
  %v1009 = vpop.f32.mrb[0].mxu0
  %v1010 = vpop.f32.mrb[0].mxu0
  %v1011 = vadd.f32 0.0, %v1010
  %v1012 = vpop.f32.mrb[0].mxu0
  %1013 = vmatprep.mubr.bf16.mxu0 0
  %1014 = vmatmul.mubr.bf16.gmra.mrb[0].mxu0 %v830
  %v1015 = vpop.f32.mrb[0].mxu0
  %v1016 = vadd.f32 0.0, %v1015
  %v1017 = vpop.f32.mrb[0].mxu0
  %v1018 = vpop.f32.mrb[0].mxu0
  %v1019 = vadd.f32 0.0, %v1018
  %v1020 = vpop.f32.mrb[0].mxu0
  %1021 = vmatprep.mubr.bf16.mxu0 0
  %1022 = vmatmul.mubr.bf16.gmra.mrb[0].mxu0 %v833
  %v1023 = vpop.f32.mrb[0].mxu0
  %v1024 = vadd.f32 0.0, %v1023
  %v1025 = vpop.f32.mrb[0].mxu0
  %v1026 = vpop.f32.mrb[0].mxu0
  %v1027 = vadd.f32 0.0, %v1026
  %v1028 = vpop.f32.mrb[0].mxu0
  %1029 = vmatprep.mubr.bf16.mxu0 0
  %1030 = vmatmul.mubr.bf16.gmra.mrb[0].mxu0 %v836
  %v1031 = vpop.f32.mrb[0].mxu0
  %v1032 = vadd.f32 0.0, %v1031
  %v1033 = vpop.f32.mrb[0].mxu0
  %v1034 = vpop.f32.mrb[0].mxu0
  %v1035 = vadd.f32 0.0, %v1034
  %v1036 = vpop.f32.mrb[0].mxu0
  %1037 = vmatprep.mubr.bf16.mxu0 0
  %1038 = vmatmul.mubr.bf16.gmra.mrb[0].mxu0 %v839
  %v1039 = vpop.f32.mrb[0].mxu0
  %v1040 = vadd.f32 0.0, %v1039
  %v1041 = vpop.f32.mrb[0].mxu0
  %v1042 = vpop.f32.mrb[0].mxu0
  %v1043 = vadd.f32 0.0, %v1042
  %v1044 = vpop.f32.mrb[0].mxu0
  %1045 = vmatprep.mubr.bf16.mxu0 0
  %1046 = vmatmul.mubr.bf16.gmra.mrb[0].mxu0 %v842
  %v1047 = vpop.f32.mrb[0].mxu0
  %v1048 = vadd.f32 0.0, %v1047
  %v1049 = vpop.f32.mrb[0].mxu0
  %v1050 = vpop.f32.mrb[0].mxu0
  %v1051 = vadd.f32 0.0, %v1050
  %v1052 = vpop.f32.mrb[0].mxu0
  %1053 = vmatprep.mubr.bf16.mxu0 0
  %1054 = vmatmul.mubr.bf16.gmra.mrb[0].mxu0 %v845
  %v1055 = vpop.f32.mrb[0].mxu0
  %v1056 = vadd.f32 0.0, %v1055
  %v1057 = vpop.f32.mrb[0].mxu0
  %v1058 = vpop.f32.mrb[0].mxu0
  %v1059 = vadd.f32 0.0, %v1058
  %v1060 = vpop.f32.mrb[0].mxu0
  %1061 = vmatprep.mubr.bf16.mxu0 0
  %1062 = vmatmul.mubr.bf16.gmra.mrb[0].mxu0 %v848
  %v1063 = vpop.f32.mrb[0].mxu0
  %v1064 = vadd.f32 0.0, %v1063
  %v1065 = vpop.f32.mrb[0].mxu0
  %v1066 = vpop.f32.mrb[0].mxu0
  %v1067 = vadd.f32 0.0, %v1066
  %v1068 = vpop.f32.mrb[0].mxu0
  %1069 = vmatprep.mubr.bf16.mxu0 0
  %1070 = vmatmul.mubr.bf16.gmra.mrb[0].mxu0 %v851
  %v1071 = vpop.f32.mrb[0].mxu0
  %v1072 = vadd.f32 0.0, %v1071
  %v1073 = vpop.f32.mrb[0].mxu0
  %v1074 = vpop.f32.mrb[0].mxu0
  %v1075 = vadd.f32 0.0, %v1074
  %v1076 = vpop.f32.mrb[0].mxu0
  %1077 = vmatprep.mubr.bf16.mxu0 0
  %1078 = vmatmul.mubr.bf16.gmra.mrb[0].mxu0 %v854
  %v1079 = vpop.f32.mrb[0].mxu0
  %v1080 = vadd.f32 0.0, %v1079
  %v1081 = vpop.f32.mrb[0].mxu0
  %v1082 = vpop.f32.mrb[0].mxu0
  %v1083 = vadd.f32 0.0, %v1082
  %v1084 = vpop.f32.mrb[0].mxu0
  %1085 = vmatprep.mubr.bf16.mxu0 0
  %1086 = vmatmul.mubr.bf16.gmra.mrb[0].mxu0 %v857
  %v1087 = vpop.f32.mrb[0].mxu0
  %v1088 = vadd.f32 0.0, %v1087
  %v1089 = vpop.f32.mrb[0].mxu0
  %v1090 = vpop.f32.mrb[0].mxu0
  %v1091 = vadd.f32 0.0, %v1090
  %v1092 = vpop.f32.mrb[0].mxu0
  %1093 = vmatprep.mubr.bf16.mxu0 0
  %1094 = vmatmul.mubr.bf16.gmra.mrb[0].mxu0 %v860
  %v1095 = vpop.f32.mrb[0].mxu0
  %v1096 = vadd.f32 0.0, %v1095
  %v1097 = vpop.f32.mrb[0].mxu0
  %v1098 = vpop.f32.mrb[0].mxu0
  %v1099 = vadd.f32 0.0, %v1098
  %v1100 = vpop.f32.mrb[0].mxu0
  %1101 = vmatprep.mubr.bf16.mxu0 0
  %1102 = vmatmul.mubr.bf16.gmra.mrb[0].mxu0 %v863
  %v1103 = vpop.f32.mrb[0].mxu0
  %v1104 = vadd.f32 0.0, %v1103
  %v1105 = vpop.f32.mrb[0].mxu0
  %v1106 = vpop.f32.mrb[0].mxu0
  %v1107 = vadd.f32 0.0, %v1106
  %v1108 = vpop.f32.mrb[0].mxu0
  %1109 = vmatprep.mubr.bf16.mxu0 0
  %1110 = vmatmul.mubr.bf16.gmra.mrb[0].mxu0 %v866
  %v1111 = vpop.f32.mrb[0].mxu0
  %v1112 = vadd.f32 0.0, %v1111
  %v1113 = vpop.f32.mrb[0].mxu0
  %v1114 = vpop.f32.mrb[0].mxu0
  %v1115 = vadd.f32 0.0, %v1114
  %v1116 = vpop.f32.mrb[0].mxu0
  %1117 = vmatprep.mubr.bf16.mxu0 0
  %1118 = vmatmul.mubr.bf16.gmra.mrb[0].mxu0 %v869
  %v1119 = vpop.f32.mrb[0].mxu0
  %v1120 = vadd.f32 0.0, %v1119
  %v1121 = vpop.f32.mrb[0].mxu0
  %v1122 = vpop.f32.mrb[0].mxu0
  %v1123 = vadd.f32 0.0, %v1122
  %v1124 = vpop.f32.mrb[0].mxu0
  %1125 = vmatprep.mubr.bf16.mxu0 0
  %1126 = vmatmul.mubr.bf16.gmra.mrb[0].mxu0 %v872
  %v1127 = vpop.f32.mrb[0].mxu0
  %v1128 = vadd.f32 0.0, %v1127
  %v1129 = vpop.f32.mrb[0].mxu0
  %v1130 = vpop.f32.mrb[0].mxu0
  %v1131 = vadd.f32 0.0, %v1130
  %v1132 = vpop.f32.mrb[0].mxu0
  %1133 = vmatprep.mubr.bf16.mxu0 0
  %1134 = vmatmul.mubr.bf16.gmra.mrb[0].mxu0 %v875
  %v1135 = vpop.f32.mrb[0].mxu0
  %v1136 = vadd.f32 0.0, %v1135
  %v1137 = vpop.f32.mrb[0].mxu0
  %v1138 = vpop.f32.mrb[0].mxu0
  %v1139 = vpop.f32.mrb[0].mxu0
  %1140 = vdwg.mxu0
  %v1141 = vmax.f32 %v360, %v912
  %v1142 = vmax.f32 %v363, %v915
  %v1143 = vmax.f32 %v368, %v920
  %v1144 = vmax.f32 %v371, %v923
  %v1145 = vmax.f32 %v376, %v928
  %v1146 = vmax.f32 %v379, %v931
  %v1147 = vmax.f32 %v384, %v936
  %v1148 = vmax.f32 %v387, %v939
  %v1149 = vmax.f32 %v392, %v944
  %v1150 = vmax.f32 %v395, %v947
  %v1151 = vmax.f32 %v400, %v952
  %v1152 = vmax.f32 %v403, %v955
  %v1153 = vmax.f32 %v408, %v960
  %v1154 = vmax.f32 %v411, %v963
  %v1155 = vmax.f32 %v416, %v968
  %v1156 = vmax.f32 %v419, %v971
  %v1157 = vmax.f32 %v424, %v976
  %v1158 = vmax.f32 %v427, %v979
  %v1159 = vmax.f32 %v432, %v984
  %v1160 = vmax.f32 %v435, %v987
  %v1161 = vmax.f32 %v440, %v992
  %v1162 = vmax.f32 %v443, %v995
  %v1163 = vmax.f32 %v448, %v1000
  %v1164 = vmax.f32 %v451, %v1003
  %v1165 = vmax.f32 %v456, %v1008
  %v1166 = vmax.f32 %v459, %v1011
  %v1167 = vmax.f32 %v464, %v1016
  %v1168 = vmax.f32 %v467, %v1019
  %v1169 = vmax.f32 %v472, %v1024
  %v1170 = vmax.f32 %v475, %v1027
  %v1171 = vmax.f32 %v480, %v1032
  %v1172 = vmax.f32 %v483, %v1035
  %v1173 = vmax.f32 %v488, %v1040
  %v1174 = vmax.f32 %v491, %v1043
  %v1175 = vmax.f32 %v496, %v1048
  %v1176 = vmax.f32 %v499, %v1051
  %v1177 = vmax.f32 %v504, %v1056
  %v1178 = vmax.f32 %v507, %v1059
  %v1179 = vmax.f32 %v512, %v1064
  %v1180 = vmax.f32 %v515, %v1067
  %v1181 = vmax.f32 %v520, %v1072
  %v1182 = vmax.f32 %v523, %v1075
  %v1183 = vmax.f32 %v528, %v1080
  %v1184 = vmax.f32 %v531, %v1083
  %v1185 = vmax.f32 %v536, %v1088
  %v1186 = vmax.f32 %v539, %v1091
  %v1187 = vmax.f32 %v544, %v1096
  %v1188 = vmax.f32 %v547, %v1099
  %v1189 = vmax.f32 %v552, %v1104
  %v1190 = vmax.f32 %v555, %v1107
  %v1191 = vmax.f32 %v560, %v1112
  %v1192 = vmax.f32 %v563, %v1115
  %v1193 = vmax.f32 %v568, %v1120
  %v1194 = vmax.f32 %v571, %v1123
  %v1195 = vmax.f32 %v576, %v1128
  %v1196 = vmax.f32 %v579, %v1131
  %v1197 = vmax.f32 %v584, %v1136
  %s1198 = scalar_lea.vmem %s0, 456
  %v1199 = vld [vmem:[%s1198] sm:$0xf]
  %v1200 = vld [vmem:[%s1198 + $0x4] sm:$0xf]
  %v1201 = vld [vmem:[%s1198 + $0x8] sm:$0xf]
  %v1202 = vld [vmem:[%s1198 + $0xc] sm:$0xf]
  %v1203 = vld [vmem:[%s1198 + $0x10] sm:$0xf]
  %v1204 = vld [vmem:[%s1198 + $0x14] sm:$0xf]
  %v1205 = vld [vmem:[%s1198 + $0x18] sm:$0xf]
  %v1206 = vld [vmem:[%s1198 + $0x1c] sm:$0xf]
  %v1207 = vld [vmem:[%s1198 + $0x20] sm:$0xf]
  %v1208 = vld [vmem:[%s1198 + $0x24] sm:$0xf]
  %v1209 = vld [vmem:[%s1198 + $0x28] sm:$0xf]
  %v1210 = vld [vmem:[%s1198 + $0x2c] sm:$0xf]
  %v1211 = vld [vmem:[%s1198 + $0x30] sm:$0xf]
  %v1212 = vld [vmem:[%s1198 + $0x34] sm:$0xf]
  %v1213 = vld [vmem:[%s1198 + $0x38] sm:$0xf]
  %v1214 = vld [vmem:[%s1198 + $0x3c] sm:$0xf]
  %v1215 = vld [vmem:[%s1198 + $0x40] sm:$0xf]
  %v1216 = vld [vmem:[%s1198 + $0x44] sm:$0xf]
  %v1217 = vld [vmem:[%s1198 + $0x48] sm:$0xf]
  %v1218 = vld [vmem:[%s1198 + $0x4c] sm:$0xf]
  %v1219 = vld [vmem:[%s1198 + $0x50] sm:$0xf]
  %v1220 = vld [vmem:[%s1198 + $0x54] sm:$0xf]
  %v1221 = vld [vmem:[%s1198 + $0x58] sm:$0xf]
  %v1222 = vld [vmem:[%s1198 + $0x5c] sm:$0xf]
  %v1223 = vld [vmem:[%s1198 + $0x60] sm:$0xf]
  %v1224 = vld [vmem:[%s1198 + $0x64] sm:$0xf]
  %v1225 = vld [vmem:[%s1198 + $0x68] sm:$0xf]
  %v1226 = vld [vmem:[%s1198 + $0x6c] sm:$0xf]
  %v1227 = vld [vmem:[%s1198 + $0x70] sm:$0xf]
  %v1228 = vld [vmem:[%s1198 + $0x74] sm:$0xf]
  %v1229 = vld [vmem:[%s1198 + $0x78] sm:$0xf]
  %v1230 = vld [vmem:[%s1198 + $0x7c] sm:$0xf]
  %v1231 = vld [vmem:[%s1198 + $0x80] sm:$0xf]
  %v1232 = vld [vmem:[%s1198 + $0x84] sm:$0xf]
  %v1233 = vld [vmem:[%s1198 + $0x88] sm:$0xf]
  %v1234 = vld [vmem:[%s1198 + $0x8c] sm:$0xf]
  %v1235 = vld [vmem:[%s1198 + $0x90] sm:$0xf]
  %v1236 = vld [vmem:[%s1198 + $0x94] sm:$0xf]
  %v1237 = vld [vmem:[%s1198 + $0x98] sm:$0xf]
  %v1238 = vld [vmem:[%s1198 + $0x9c] sm:$0xf]
  %v1239 = vld [vmem:[%s1198 + $0xa0] sm:$0xf]
  %v1240 = vld [vmem:[%s1198 + $0xa4] sm:$0xf]
  %v1241 = vld [vmem:[%s1198 + $0xa8] sm:$0xf]
  %v1242 = vld [vmem:[%s1198 + $0xac] sm:$0xf]
  %v1243 = vld [vmem:[%s1198 + $0xb0] sm:$0xf]
  %v1244 = vld [vmem:[%s1198 + $0xb4] sm:$0xf]
  %v1245 = vld [vmem:[%s1198 + $0xb8] sm:$0xf]
  %v1246 = vld [vmem:[%s1198 + $0xbc] sm:$0xf]
  %v1247 = vld [vmem:[%s1198 + $0xc0] sm:$0xf]
  %v1248 = vld [vmem:[%s1198 + $0xc4] sm:$0xf]
  %v1249 = vld [vmem:[%s1198 + $0xc8] sm:$0xf]
  %v1250 = vld [vmem:[%s1198 + $0xcc] sm:$0xf]
  %v1251 = vld [vmem:[%s1198 + $0xd0] sm:$0xf]
  %v1252 = vld [vmem:[%s1198 + $0xd4] sm:$0xf]
  %v1253 = vld [vmem:[%s1198 + $0xd8] sm:$0xf]
  %v1254 = vld [vmem:[%s1198 + $0xdc] sm:$0xf]
  %v1255 = vld [vmem:[%s1198 + $0xe0] sm:$0x1]
  %v1313 = vunpack.c.l.b16 %v1199
  %v1314 = vunpack.c.l.b16 %v1200
  %v1315 = vunpack.c.l.b16 %v1201
  %v1316 = vunpack.c.l.b16 %v1202
  %v1317 = vunpack.c.l.b16 %v1203
  %v1318 = vunpack.c.l.b16 %v1204
  %v1319 = vunpack.c.l.b16 %v1205
  %v1320 = vunpack.c.l.b16 %v1206
  %v1321 = vunpack.c.l.b16 %v1207
  %v1322 = vunpack.c.l.b16 %v1208
  %v1323 = vunpack.c.l.b16 %v1209
  %v1324 = vunpack.c.l.b16 %v1210
  %v1325 = vunpack.c.l.b16 %v1211
  %v1326 = vunpack.c.l.b16 %v1212
  %v1327 = vunpack.c.l.b16 %v1213
  %v1328 = vunpack.c.l.b16 %v1214
  %v1329 = vunpack.c.l.b16 %v1215
  %v1330 = vunpack.c.l.b16 %v1216
  %v1331 = vunpack.c.l.b16 %v1217
  %v1332 = vunpack.c.l.b16 %v1218
  %v1333 = vunpack.c.l.b16 %v1219
  %v1334 = vunpack.c.l.b16 %v1220
  %v1335 = vunpack.c.l.b16 %v1221
  %v1336 = vunpack.c.l.b16 %v1222
  %v1337 = vunpack.c.l.b16 %v1223
  %v1338 = vunpack.c.l.b16 %v1224
  %v1339 = vunpack.c.l.b16 %v1225
  %v1340 = vunpack.c.l.b16 %v1226
  %v1341 = vunpack.c.l.b16 %v1227
  %v1342 = vunpack.c.l.b16 %v1228
  %v1343 = vunpack.c.l.b16 %v1229
  %v1344 = vunpack.c.l.b16 %v1230
  %v1345 = vunpack.c.l.b16 %v1231
  %v1346 = vunpack.c.l.b16 %v1232
  %v1347 = vunpack.c.l.b16 %v1233
  %v1348 = vunpack.c.l.b16 %v1234
  %v1349 = vunpack.c.l.b16 %v1235
  %v1350 = vunpack.c.l.b16 %v1236
  %v1351 = vunpack.c.l.b16 %v1237
  %v1352 = vunpack.c.l.b16 %v1238
  %v1353 = vunpack.c.l.b16 %v1239
  %v1354 = vunpack.c.l.b16 %v1240
  %v1355 = vunpack.c.l.b16 %v1241
  %v1356 = vunpack.c.l.b16 %v1242
  %v1357 = vunpack.c.l.b16 %v1243
  %v1358 = vunpack.c.l.b16 %v1244
  %v1359 = vunpack.c.l.b16 %v1245
  %v1360 = vunpack.c.l.b16 %v1246
  %v1361 = vunpack.c.l.b16 %v1247
  %v1362 = vunpack.c.l.b16 %v1248
  %v1363 = vunpack.c.l.b16 %v1249
  %v1364 = vunpack.c.l.b16 %v1250
  %v1365 = vunpack.c.l.b16 %v1251
  %v1366 = vunpack.c.l.b16 %v1252
  %v1367 = vunpack.c.l.b16 %v1253
  %v1368 = vunpack.c.l.b16 %v1254
  %v1369 = vunpack.c.l.b16 %v1255
  %v1370 = vpack.c.b16 %v1314, %v1313
  %v1371 = vpack.c.b16 %v1316, %v1315
  %v1372 = vpack.c.b16 %v1318, %v1317
  %v1373 = vpack.c.b16 %v1320, %v1319
  %v1374 = vpack.c.b16 %v1322, %v1321
  %v1375 = vpack.c.b16 %v1324, %v1323
  %v1376 = vpack.c.b16 %v1326, %v1325
  %v1377 = vpack.c.b16 %v1328, %v1327
  %v1378 = vpack.c.b16 %v1330, %v1329
  %v1379 = vpack.c.b16 %v1332, %v1331
  %v1380 = vpack.c.b16 %v1334, %v1333
  %v1381 = vpack.c.b16 %v1336, %v1335
  %v1382 = vpack.c.b16 %v1338, %v1337
  %v1383 = vpack.c.b16 %v1340, %v1339
  %v1384 = vpack.c.b16 %v1342, %v1341
  %v1385 = vpack.c.b16 %v1344, %v1343
  %v1386 = vpack.c.b16 %v1346, %v1345
  %v1387 = vpack.c.b16 %v1348, %v1347
  %v1388 = vpack.c.b16 %v1350, %v1349
  %v1389 = vpack.c.b16 %v1352, %v1351
  %v1390 = vpack.c.b16 %v1354, %v1353
  %v1391 = vpack.c.b16 %v1356, %v1355
  %v1392 = vpack.c.b16 %v1358, %v1357
  %v1393 = vpack.c.b16 %v1360, %v1359
  %v1394 = vpack.c.b16 %v1362, %v1361
  %v1395 = vpack.c.b16 %v1364, %v1363
  %v1396 = vpack.c.b16 %v1366, %v1365
  %v1397 = vpack.c.b16 %v1368, %v1367
  %v1398 = vpack.c.b16 %v1369, %v1369
  %v1400 = vsel %vm230, %v1370, 0
  %v1403 = vsel %vm230, %v1371, 0
  %v1406 = vsel %vm230, %v1372, 0
  %v1409 = vsel %vm230, %v1373, 0
  %v1412 = vsel %vm230, %v1374, 0
  %v1415 = vsel %vm230, %v1375, 0
  %v1418 = vsel %vm230, %v1376, 0
  %v1421 = vsel %vm230, %v1377, 0
  %v1424 = vsel %vm230, %v1378, 0
  %v1427 = vsel %vm230, %v1379, 0
  %v1430 = vsel %vm230, %v1380, 0
  %v1433 = vsel %vm230, %v1381, 0
  %v1436 = vsel %vm230, %v1382, 0
  %v1439 = vsel %vm230, %v1383, 0
  %v1442 = vsel %vm230, %v1384, 0
  %v1445 = vsel %vm230, %v1385, 0
  %v1448 = vsel %vm230, %v1386, 0
  %v1451 = vsel %vm230, %v1387, 0
  %v1454 = vsel %vm230, %v1388, 0
  %v1457 = vsel %vm230, %v1389, 0
  %v1460 = vsel %vm230, %v1390, 0
  %v1463 = vsel %vm230, %v1391, 0
  %v1466 = vsel %vm230, %v1392, 0
  %v1469 = vsel %vm230, %v1393, 0
  %v1472 = vsel %vm230, %v1394, 0
  %v1475 = vsel %vm230, %v1395, 0
  %v1478 = vsel %vm230, %v1396, 0
  %v1481 = vsel %vm230, %v1397, 0
  %v1484 = vsel %vm230, %v1398, 0
  %1486 = vmatprep.subr.bf16.mxu0 0
  %1487 = vmatpush1.bf16.msra.mxu0 %v227
  %1488 = vmatprep.subr.bf16.mxu0 0
  %1489 = vmatpush1.bf16.msra.mxu0 %v323
  %1490 = vmatprep.subr.bf16.mxu0 0
  %1491 = vmatpush1.bf16.msra.mxu0 0
  %1492 = vmatprep.subr.bf16.mxu0 0
  %1493 = vmatpush1.bf16.msra.mxu0 0
  %1494 = vmatprep.subr.bf16.mxu0 0
  %1495 = vmatpush1.bf16.msra.mxu0 0
  %1496 = vmatprep.subr.bf16.mxu0 0
  %1497 = vmatpush1.bf16.msra.mxu0 0
  %1498 = vmatprep.subr.bf16.mxu0 0
  %1499 = vmatpush1.bf16.msra.mxu0 0
  %1500 = vmatprep.subr.bf16.mxu0 0
  %1501 = vmatpush1.bf16.msra.mxu0 0
  %1502 = vmatprep.subr.bf16.mxu0 0
  %1503 = vmatpush1.bf16.msra.mxu0 0
  %1504 = vmatprep.subr.bf16.mxu0 0
  %1505 = vmatpush1.bf16.msra.mxu0 0
  %1506 = vmatprep.subr.bf16.mxu0 0
  %1507 = vmatpush1.bf16.msra.mxu0 0
  %1508 = vmatprep.subr.bf16.mxu0 0
  %1509 = vmatpush1.bf16.msra.mxu0 0
  %1510 = vmatprep.subr.bf16.mxu0 0
  %1511 = vmatpush1.bf16.msra.mxu0 0
  %1512 = vmatprep.subr.bf16.mxu0 0
  %1513 = vmatpush1.bf16.msra.mxu0 0
  %1514 = vmatprep.subr.bf16.mxu0 0
  %1515 = vmatpush1.bf16.msra.mxu0 0
  %1516 = vmatprep.subr.bf16.mxu0 0
  %1517 = vmatpush1.bf16.msra.mxu0 0
  %1518 = vmatprep.mubr.bf16.mxu0 0
  %1519 = vmatmul.mubr.bf16.gmra.mrb[0].mxu0 %v1400
  %v1520 = vpop.f32.mrb[0].mxu0
  %v1521 = vadd.f32 0.0, %v1520
  %v1522 = vpop.f32.mrb[0].mxu0
  %v1523 = vpop.f32.mrb[0].mxu0
  %v1524 = vadd.f32 0.0, %v1523
  %v1525 = vpop.f32.mrb[0].mxu0
  %1526 = vmatprep.mubr.bf16.mxu0 0
  %1527 = vmatmul.mubr.bf16.gmra.mrb[0].mxu0 %v1403
  %v1528 = vpop.f32.mrb[0].mxu0
  %v1529 = vadd.f32 0.0, %v1528
  %v1530 = vpop.f32.mrb[0].mxu0
  %v1531 = vpop.f32.mrb[0].mxu0
  %v1532 = vadd.f32 0.0, %v1531
  %v1533 = vpop.f32.mrb[0].mxu0
  %1534 = vmatprep.mubr.bf16.mxu0 0
  %1535 = vmatmul.mubr.bf16.gmra.mrb[0].mxu0 %v1406
  %v1536 = vpop.f32.mrb[0].mxu0
  %v1537 = vadd.f32 0.0, %v1536
  %v1538 = vpop.f32.mrb[0].mxu0
  %v1539 = vpop.f32.mrb[0].mxu0
  %v1540 = vadd.f32 0.0, %v1539
  %v1541 = vpop.f32.mrb[0].mxu0
  %1542 = vmatprep.mubr.bf16.mxu0 0
  %1543 = vmatmul.mubr.bf16.gmra.mrb[0].mxu0 %v1409
  %v1544 = vpop.f32.mrb[0].mxu0
  %v1545 = vadd.f32 0.0, %v1544
  %v1546 = vpop.f32.mrb[0].mxu0
  %v1547 = vpop.f32.mrb[0].mxu0
  %v1548 = vadd.f32 0.0, %v1547
  %v1549 = vpop.f32.mrb[0].mxu0
  %1550 = vmatprep.mubr.bf16.mxu0 0
  %1551 = vmatmul.mubr.bf16.gmra.mrb[0].mxu0 %v1412
  %v1552 = vpop.f32.mrb[0].mxu0
  %v1553 = vadd.f32 0.0, %v1552
  %v1554 = vpop.f32.mrb[0].mxu0
  %v1555 = vpop.f32.mrb[0].mxu0
  %v1556 = vadd.f32 0.0, %v1555
  %v1557 = vpop.f32.mrb[0].mxu0
  %1558 = vmatprep.mubr.bf16.mxu0 0
  %1559 = vmatmul.mubr.bf16.gmra.mrb[0].mxu0 %v1415
  %v1560 = vpop.f32.mrb[0].mxu0
  %v1561 = vadd.f32 0.0, %v1560
  %v1562 = vpop.f32.mrb[0].mxu0
  %v1563 = vpop.f32.mrb[0].mxu0
  %v1564 = vadd.f32 0.0, %v1563
  %v1565 = vpop.f32.mrb[0].mxu0
  %1566 = vmatprep.mubr.bf16.mxu0 0
  %1567 = vmatmul.mubr.bf16.gmra.mrb[0].mxu0 %v1418
  %v1568 = vpop.f32.mrb[0].mxu0
  %v1569 = vadd.f32 0.0, %v1568
  %v1570 = vpop.f32.mrb[0].mxu0
  %v1571 = vpop.f32.mrb[0].mxu0
  %v1572 = vadd.f32 0.0, %v1571
  %v1573 = vpop.f32.mrb[0].mxu0
  %1574 = vmatprep.mubr.bf16.mxu0 0
  %1575 = vmatmul.mubr.bf16.gmra.mrb[0].mxu0 %v1421
  %v1576 = vpop.f32.mrb[0].mxu0
  %v1577 = vadd.f32 0.0, %v1576
  %v1578 = vpop.f32.mrb[0].mxu0
  %v1579 = vpop.f32.mrb[0].mxu0
  %v1580 = vadd.f32 0.0, %v1579
  %v1581 = vpop.f32.mrb[0].mxu0
  %1582 = vmatprep.mubr.bf16.mxu0 0
  %1583 = vmatmul.mubr.bf16.gmra.mrb[0].mxu0 %v1424
  %v1584 = vpop.f32.mrb[0].mxu0
  %v1585 = vadd.f32 0.0, %v1584
  %v1586 = vpop.f32.mrb[0].mxu0
  %v1587 = vpop.f32.mrb[0].mxu0
  %v1588 = vadd.f32 0.0, %v1587
  %v1589 = vpop.f32.mrb[0].mxu0
  %1590 = vmatprep.mubr.bf16.mxu0 0
  %1591 = vmatmul.mubr.bf16.gmra.mrb[0].mxu0 %v1427
  %v1592 = vpop.f32.mrb[0].mxu0
  %v1593 = vadd.f32 0.0, %v1592
  %v1594 = vpop.f32.mrb[0].mxu0
  %v1595 = vpop.f32.mrb[0].mxu0
  %v1596 = vadd.f32 0.0, %v1595
  %v1597 = vpop.f32.mrb[0].mxu0
  %1598 = vmatprep.mubr.bf16.mxu0 0
  %1599 = vmatmul.mubr.bf16.gmra.mrb[0].mxu0 %v1430
  %v1600 = vpop.f32.mrb[0].mxu0
  %v1601 = vadd.f32 0.0, %v1600
  %v1602 = vpop.f32.mrb[0].mxu0
  %v1603 = vpop.f32.mrb[0].mxu0
  %v1604 = vadd.f32 0.0, %v1603
  %v1605 = vpop.f32.mrb[0].mxu0
  %1606 = vmatprep.mubr.bf16.mxu0 0
  %1607 = vmatmul.mubr.bf16.gmra.mrb[0].mxu0 %v1433
  %v1608 = vpop.f32.mrb[0].mxu0
  %v1609 = vadd.f32 0.0, %v1608
  %v1610 = vpop.f32.mrb[0].mxu0
  %v1611 = vpop.f32.mrb[0].mxu0
  %v1612 = vadd.f32 0.0, %v1611
  %v1613 = vpop.f32.mrb[0].mxu0
  %1614 = vmatprep.mubr.bf16.mxu0 0
  %1615 = vmatmul.mubr.bf16.gmra.mrb[0].mxu0 %v1436
  %v1616 = vpop.f32.mrb[0].mxu0
  %v1617 = vadd.f32 0.0, %v1616
  %v1618 = vpop.f32.mrb[0].mxu0
  %v1619 = vpop.f32.mrb[0].mxu0
  %v1620 = vadd.f32 0.0, %v1619
  %v1621 = vpop.f32.mrb[0].mxu0
  %1622 = vmatprep.mubr.bf16.mxu0 0
  %1623 = vmatmul.mubr.bf16.gmra.mrb[0].mxu0 %v1439
  %v1624 = vpop.f32.mrb[0].mxu0
  %v1625 = vadd.f32 0.0, %v1624
  %v1626 = vpop.f32.mrb[0].mxu0
  %v1627 = vpop.f32.mrb[0].mxu0
  %v1628 = vadd.f32 0.0, %v1627
  %v1629 = vpop.f32.mrb[0].mxu0
  %1630 = vmatprep.mubr.bf16.mxu0 0
  %1631 = vmatmul.mubr.bf16.gmra.mrb[0].mxu0 %v1442
  %v1632 = vpop.f32.mrb[0].mxu0
  %v1633 = vadd.f32 0.0, %v1632
  %v1634 = vpop.f32.mrb[0].mxu0
  %v1635 = vpop.f32.mrb[0].mxu0
  %v1636 = vadd.f32 0.0, %v1635
  %v1637 = vpop.f32.mrb[0].mxu0
  %1638 = vmatprep.mubr.bf16.mxu0 0
  %1639 = vmatmul.mubr.bf16.gmra.mrb[0].mxu0 %v1445
  %v1640 = vpop.f32.mrb[0].mxu0
  %v1641 = vadd.f32 0.0, %v1640
  %v1642 = vpop.f32.mrb[0].mxu0
  %v1643 = vpop.f32.mrb[0].mxu0
  %v1644 = vadd.f32 0.0, %v1643
  %v1645 = vpop.f32.mrb[0].mxu0
  %1646 = vmatprep.mubr.bf16.mxu0 0
  %1647 = vmatmul.mubr.bf16.gmra.mrb[0].mxu0 %v1448
  %v1648 = vpop.f32.mrb[0].mxu0
  %v1649 = vadd.f32 0.0, %v1648
  %v1650 = vpop.f32.mrb[0].mxu0
  %v1651 = vpop.f32.mrb[0].mxu0
  %v1652 = vadd.f32 0.0, %v1651
  %v1653 = vpop.f32.mrb[0].mxu0
  %1654 = vmatprep.mubr.bf16.mxu0 0
  %1655 = vmatmul.mubr.bf16.gmra.mrb[0].mxu0 %v1451
  %v1656 = vpop.f32.mrb[0].mxu0
  %v1657 = vadd.f32 0.0, %v1656
  %v1658 = vpop.f32.mrb[0].mxu0
  %v1659 = vpop.f32.mrb[0].mxu0
  %v1660 = vadd.f32 0.0, %v1659
  %v1661 = vpop.f32.mrb[0].mxu0
  %1662 = vmatprep.mubr.bf16.mxu0 0
  %1663 = vmatmul.mubr.bf16.gmra.mrb[0].mxu0 %v1454
  %v1664 = vpop.f32.mrb[0].mxu0
  %v1665 = vadd.f32 0.0, %v1664
  %v1666 = vpop.f32.mrb[0].mxu0
  %v1667 = vpop.f32.mrb[0].mxu0
  %v1668 = vadd.f32 0.0, %v1667
  %v1669 = vpop.f32.mrb[0].mxu0
  %1670 = vmatprep.mubr.bf16.mxu0 0
  %1671 = vmatmul.mubr.bf16.gmra.mrb[0].mxu0 %v1457
  %v1672 = vpop.f32.mrb[0].mxu0
  %v1673 = vadd.f32 0.0, %v1672
  %v1674 = vpop.f32.mrb[0].mxu0
  %v1675 = vpop.f32.mrb[0].mxu0
  %v1676 = vadd.f32 0.0, %v1675
  %v1677 = vpop.f32.mrb[0].mxu0
  %1678 = vmatprep.mubr.bf16.mxu0 0
  %1679 = vmatmul.mubr.bf16.gmra.mrb[0].mxu0 %v1460
  %v1680 = vpop.f32.mrb[0].mxu0
  %v1681 = vadd.f32 0.0, %v1680
  %v1682 = vpop.f32.mrb[0].mxu0
  %v1683 = vpop.f32.mrb[0].mxu0
  %v1684 = vadd.f32 0.0, %v1683
  %v1685 = vpop.f32.mrb[0].mxu0
  %1686 = vmatprep.mubr.bf16.mxu0 0
  %1687 = vmatmul.mubr.bf16.gmra.mrb[0].mxu0 %v1463
  %v1688 = vpop.f32.mrb[0].mxu0
  %v1689 = vadd.f32 0.0, %v1688
  %v1690 = vpop.f32.mrb[0].mxu0
  %v1691 = vpop.f32.mrb[0].mxu0
  %v1692 = vadd.f32 0.0, %v1691
  %v1693 = vpop.f32.mrb[0].mxu0
  %1694 = vmatprep.mubr.bf16.mxu0 0
  %1695 = vmatmul.mubr.bf16.gmra.mrb[0].mxu0 %v1466
  %v1696 = vpop.f32.mrb[0].mxu0
  %v1697 = vadd.f32 0.0, %v1696
  %v1698 = vpop.f32.mrb[0].mxu0
  %v1699 = vpop.f32.mrb[0].mxu0
  %v1700 = vadd.f32 0.0, %v1699
  %v1701 = vpop.f32.mrb[0].mxu0
  %1702 = vmatprep.mubr.bf16.mxu0 0
  %1703 = vmatmul.mubr.bf16.gmra.mrb[0].mxu0 %v1469
  %v1704 = vpop.f32.mrb[0].mxu0
  %v1705 = vadd.f32 0.0, %v1704
  %v1706 = vpop.f32.mrb[0].mxu0
  %v1707 = vpop.f32.mrb[0].mxu0
  %v1708 = vadd.f32 0.0, %v1707
  %v1709 = vpop.f32.mrb[0].mxu0
  %1710 = vmatprep.mubr.bf16.mxu0 0
  %1711 = vmatmul.mubr.bf16.gmra.mrb[0].mxu0 %v1472
  %v1712 = vpop.f32.mrb[0].mxu0
  %v1713 = vadd.f32 0.0, %v1712
  %v1714 = vpop.f32.mrb[0].mxu0
  %v1715 = vpop.f32.mrb[0].mxu0
  %v1716 = vadd.f32 0.0, %v1715
  %v1717 = vpop.f32.mrb[0].mxu0
  %1718 = vmatprep.mubr.bf16.mxu0 0
  %1719 = vmatmul.mubr.bf16.gmra.mrb[0].mxu0 %v1475
  %v1720 = vpop.f32.mrb[0].mxu0
  %v1721 = vadd.f32 0.0, %v1720
  %v1722 = vpop.f32.mrb[0].mxu0
  %v1723 = vpop.f32.mrb[0].mxu0
  %v1724 = vadd.f32 0.0, %v1723
  %v1725 = vpop.f32.mrb[0].mxu0
  %1726 = vmatprep.mubr.bf16.mxu0 0
  %1727 = vmatmul.mubr.bf16.gmra.mrb[0].mxu0 %v1478
  %v1728 = vpop.f32.mrb[0].mxu0
  %v1729 = vadd.f32 0.0, %v1728
  %v1730 = vpop.f32.mrb[0].mxu0
  %v1731 = vpop.f32.mrb[0].mxu0
  %v1732 = vadd.f32 0.0, %v1731
  %v1733 = vpop.f32.mrb[0].mxu0
  %1734 = vmatprep.mubr.bf16.mxu0 0
  %1735 = vmatmul.mubr.bf16.gmra.mrb[0].mxu0 %v1481
  %v1736 = vpop.f32.mrb[0].mxu0
  %v1737 = vadd.f32 0.0, %v1736
  %v1738 = vpop.f32.mrb[0].mxu0
  %v1739 = vpop.f32.mrb[0].mxu0
  %v1740 = vadd.f32 0.0, %v1739
  %v1741 = vpop.f32.mrb[0].mxu0
  %1742 = vmatprep.mubr.bf16.mxu0 0
  %1743 = vmatmul.mubr.bf16.gmra.mrb[0].mxu0 %v1484
  %v1744 = vpop.f32.mrb[0].mxu0
  %v1745 = vadd.f32 0.0, %v1744
  %v1746 = vpop.f32.mrb[0].mxu0
  %v1747 = vpop.f32.mrb[0].mxu0
  %v1748 = vpop.f32.mrb[0].mxu0
  %1749 = vdwg.mxu0
  %v1750 = vmax.f32 %v1141, %v1521
  %v1751 = vmax.f32 %v1142, %v1524
  %v1752 = vmax.f32 %v1143, %v1529
  %v1753 = vmax.f32 %v1144, %v1532
  %v1754 = vmax.f32 %v1145, %v1537
  %v1755 = vmax.f32 %v1146, %v1540
  %v1756 = vmax.f32 %v1147, %v1545
  %v1757 = vmax.f32 %v1148, %v1548
  %v1758 = vmax.f32 %v1149, %v1553
  %v1759 = vmax.f32 %v1150, %v1556
  %v1760 = vmax.f32 %v1151, %v1561
  %v1761 = vmax.f32 %v1152, %v1564
  %v1762 = vmax.f32 %v1153, %v1569
  %v1763 = vmax.f32 %v1154, %v1572
  %v1764 = vmax.f32 %v1155, %v1577
  %v1765 = vmax.f32 %v1156, %v1580
  %v1766 = vmax.f32 %v1157, %v1585
  %v1767 = vmax.f32 %v1158, %v1588
  %v1768 = vmax.f32 %v1159, %v1593
  %v1769 = vmax.f32 %v1160, %v1596
  %v1770 = vmax.f32 %v1161, %v1601
  %v1771 = vmax.f32 %v1162, %v1604
  %v1772 = vmax.f32 %v1163, %v1609
  %v1773 = vmax.f32 %v1164, %v1612
  %v1774 = vmax.f32 %v1165, %v1617
  %v1775 = vmax.f32 %v1166, %v1620
  %v1776 = vmax.f32 %v1167, %v1625
  %v1777 = vmax.f32 %v1168, %v1628
  %v1778 = vmax.f32 %v1169, %v1633
  %v1779 = vmax.f32 %v1170, %v1636
  %v1780 = vmax.f32 %v1171, %v1641
  %v1781 = vmax.f32 %v1172, %v1644
  %v1782 = vmax.f32 %v1173, %v1649
  %v1783 = vmax.f32 %v1174, %v1652
  %v1784 = vmax.f32 %v1175, %v1657
  %v1785 = vmax.f32 %v1176, %v1660
  %v1786 = vmax.f32 %v1177, %v1665
  %v1787 = vmax.f32 %v1178, %v1668
  %v1788 = vmax.f32 %v1179, %v1673
  %v1789 = vmax.f32 %v1180, %v1676
  %v1790 = vmax.f32 %v1181, %v1681
  %v1791 = vmax.f32 %v1182, %v1684
  %v1792 = vmax.f32 %v1183, %v1689
  %v1793 = vmax.f32 %v1184, %v1692
  %v1794 = vmax.f32 %v1185, %v1697
  %v1795 = vmax.f32 %v1186, %v1700
  %v1796 = vmax.f32 %v1187, %v1705
  %v1797 = vmax.f32 %v1188, %v1708
  %v1798 = vmax.f32 %v1189, %v1713
  %v1799 = vmax.f32 %v1190, %v1716
  %v1800 = vmax.f32 %v1191, %v1721
  %v1801 = vmax.f32 %v1192, %v1724
  %v1802 = vmax.f32 %v1193, %v1729
  %v1803 = vmax.f32 %v1194, %v1732
  %v1804 = vmax.f32 %v1195, %v1737
  %v1805 = vmax.f32 %v1196, %v1740
  %v1806 = vmax.f32 %v1197, %v1745
  %s1807 = scalar_lea.vmem %s0, 684
  %v1808 = vld [vmem:[%s1807] sm:$0xf]
  %v1809 = vld [vmem:[%s1807 + $0x4] sm:$0xf]
  %v1810 = vld [vmem:[%s1807 + $0x8] sm:$0xf]
  %v1811 = vld [vmem:[%s1807 + $0xc] sm:$0xf]
  %v1812 = vld [vmem:[%s1807 + $0x10] sm:$0xf]
  %v1813 = vld [vmem:[%s1807 + $0x14] sm:$0xf]
  %v1814 = vld [vmem:[%s1807 + $0x18] sm:$0xf]
  %v1815 = vld [vmem:[%s1807 + $0x1c] sm:$0xf]
  %v1816 = vld [vmem:[%s1807 + $0x20] sm:$0xf]
  %v1817 = vld [vmem:[%s1807 + $0x24] sm:$0xf]
  %v1818 = vld [vmem:[%s1807 + $0x28] sm:$0xf]
  %v1819 = vld [vmem:[%s1807 + $0x2c] sm:$0xf]
  %v1820 = vld [vmem:[%s1807 + $0x30] sm:$0xf]
  %v1821 = vld [vmem:[%s1807 + $0x34] sm:$0xf]
  %v1822 = vld [vmem:[%s1807 + $0x38] sm:$0xf]
  %v1823 = vld [vmem:[%s1807 + $0x3c] sm:$0xf]
  %v1824 = vld [vmem:[%s1807 + $0x40] sm:$0xf]
  %v1825 = vld [vmem:[%s1807 + $0x44] sm:$0xf]
  %v1826 = vld [vmem:[%s1807 + $0x48] sm:$0xf]
  %v1827 = vld [vmem:[%s1807 + $0x4c] sm:$0xf]
  %v1828 = vld [vmem:[%s1807 + $0x50] sm:$0xf]
  %v1829 = vld [vmem:[%s1807 + $0x54] sm:$0xf]
  %v1830 = vld [vmem:[%s1807 + $0x58] sm:$0xf]
  %v1831 = vld [vmem:[%s1807 + $0x5c] sm:$0xf]
  %v1832 = vld [vmem:[%s1807 + $0x60] sm:$0xf]
  %v1833 = vld [vmem:[%s1807 + $0x64] sm:$0xf]
  %v1834 = vld [vmem:[%s1807 + $0x68] sm:$0xf]
  %v1835 = vld [vmem:[%s1807 + $0x6c] sm:$0xf]
  %v1836 = vld [vmem:[%s1807 + $0x70] sm:$0xf]
  %v1837 = vld [vmem:[%s1807 + $0x74] sm:$0xf]
  %v1838 = vld [vmem:[%s1807 + $0x78] sm:$0xf]
  %v1839 = vld [vmem:[%s1807 + $0x7c] sm:$0xf]
  %v1840 = vld [vmem:[%s1807 + $0x80] sm:$0xf]
  %v1841 = vld [vmem:[%s1807 + $0x84] sm:$0xf]
  %v1842 = vld [vmem:[%s1807 + $0x88] sm:$0xf]
  %v1843 = vld [vmem:[%s1807 + $0x8c] sm:$0xf]
  %v1844 = vld [vmem:[%s1807 + $0x90] sm:$0xf]
  %v1845 = vld [vmem:[%s1807 + $0x94] sm:$0xf]
  %v1846 = vld [vmem:[%s1807 + $0x98] sm:$0xf]
  %v1847 = vld [vmem:[%s1807 + $0x9c] sm:$0xf]
  %v1848 = vld [vmem:[%s1807 + $0xa0] sm:$0xf]
  %v1849 = vld [vmem:[%s1807 + $0xa4] sm:$0xf]
  %v1850 = vld [vmem:[%s1807 + $0xa8] sm:$0xf]
  %v1851 = vld [vmem:[%s1807 + $0xac] sm:$0xf]
  %v1852 = vld [vmem:[%s1807 + $0xb0] sm:$0xf]
  %v1853 = vld [vmem:[%s1807 + $0xb4] sm:$0xf]
  %v1854 = vld [vmem:[%s1807 + $0xb8] sm:$0xf]
  %v1855 = vld [vmem:[%s1807 + $0xbc] sm:$0xf]
  %v1856 = vld [vmem:[%s1807 + $0xc0] sm:$0xf]
  %v1857 = vld [vmem:[%s1807 + $0xc4] sm:$0xf]
  %v1858 = vld [vmem:[%s1807 + $0xc8] sm:$0xf]
  %v1859 = vld [vmem:[%s1807 + $0xcc] sm:$0xf]
  %v1860 = vld [vmem:[%s1807 + $0xd0] sm:$0xf]
  %v1861 = vld [vmem:[%s1807 + $0xd4] sm:$0xf]
  %v1862 = vld [vmem:[%s1807 + $0xd8] sm:$0xf]
  %v1863 = vld [vmem:[%s1807 + $0xdc] sm:$0xf]
  %v1864 = vld [vmem:[%s1807 + $0xe0] sm:$0x1]
  %v1922 = vunpack.c.l.b16 %v1808
  %v1923 = vunpack.c.l.b16 %v1809
  %v1924 = vunpack.c.l.b16 %v1810
  %v1925 = vunpack.c.l.b16 %v1811
  %v1926 = vunpack.c.l.b16 %v1812
  %v1927 = vunpack.c.l.b16 %v1813
  %v1928 = vunpack.c.l.b16 %v1814
  %v1929 = vunpack.c.l.b16 %v1815
  %v1930 = vunpack.c.l.b16 %v1816
  %v1931 = vunpack.c.l.b16 %v1817
  %v1932 = vunpack.c.l.b16 %v1818
  %v1933 = vunpack.c.l.b16 %v1819
  %v1934 = vunpack.c.l.b16 %v1820
  %v1935 = vunpack.c.l.b16 %v1821
  %v1936 = vunpack.c.l.b16 %v1822
  %v1937 = vunpack.c.l.b16 %v1823
  %v1938 = vunpack.c.l.b16 %v1824
  %v1939 = vunpack.c.l.b16 %v1825
  %v1940 = vunpack.c.l.b16 %v1826
  %v1941 = vunpack.c.l.b16 %v1827
  %v1942 = vunpack.c.l.b16 %v1828
  %v1943 = vunpack.c.l.b16 %v1829
  %v1944 = vunpack.c.l.b16 %v1830
  %v1945 = vunpack.c.l.b16 %v1831
  %v1946 = vunpack.c.l.b16 %v1832
  %v1947 = vunpack.c.l.b16 %v1833
  %v1948 = vunpack.c.l.b16 %v1834
  %v1949 = vunpack.c.l.b16 %v1835
  %v1950 = vunpack.c.l.b16 %v1836
  %v1951 = vunpack.c.l.b16 %v1837
  %v1952 = vunpack.c.l.b16 %v1838
  %v1953 = vunpack.c.l.b16 %v1839
  %v1954 = vunpack.c.l.b16 %v1840
  %v1955 = vunpack.c.l.b16 %v1841
  %v1956 = vunpack.c.l.b16 %v1842
  %v1957 = vunpack.c.l.b16 %v1843
  %v1958 = vunpack.c.l.b16 %v1844
  %v1959 = vunpack.c.l.b16 %v1845
  %v1960 = vunpack.c.l.b16 %v1846
  %v1961 = vunpack.c.l.b16 %v1847
  %v1962 = vunpack.c.l.b16 %v1848
  %v1963 = vunpack.c.l.b16 %v1849
  %v1964 = vunpack.c.l.b16 %v1850
  %v1965 = vunpack.c.l.b16 %v1851
  %v1966 = vunpack.c.l.b16 %v1852
  %v1967 = vunpack.c.l.b16 %v1853
  %v1968 = vunpack.c.l.b16 %v1854
  %v1969 = vunpack.c.l.b16 %v1855
  %v1970 = vunpack.c.l.b16 %v1856
  %v1971 = vunpack.c.l.b16 %v1857
  %v1972 = vunpack.c.l.b16 %v1858
  %v1973 = vunpack.c.l.b16 %v1859
  %v1974 = vunpack.c.l.b16 %v1860
  %v1975 = vunpack.c.l.b16 %v1861
  %v1976 = vunpack.c.l.b16 %v1862
  %v1977 = vunpack.c.l.b16 %v1863
  %v1978 = vunpack.c.l.b16 %v1864
  %v1979 = vpack.c.b16 %v1923, %v1922
  %v1980 = vpack.c.b16 %v1925, %v1924
  %v1981 = vpack.c.b16 %v1927, %v1926
  %v1982 = vpack.c.b16 %v1929, %v1928
  %v1983 = vpack.c.b16 %v1931, %v1930
  %v1984 = vpack.c.b16 %v1933, %v1932
  %v1985 = vpack.c.b16 %v1935, %v1934
  %v1986 = vpack.c.b16 %v1937, %v1936
  %v1987 = vpack.c.b16 %v1939, %v1938
  %v1988 = vpack.c.b16 %v1941, %v1940
  %v1989 = vpack.c.b16 %v1943, %v1942
  %v1990 = vpack.c.b16 %v1945, %v1944
  %v1991 = vpack.c.b16 %v1947, %v1946
  %v1992 = vpack.c.b16 %v1949, %v1948
  %v1993 = vpack.c.b16 %v1951, %v1950
  %v1994 = vpack.c.b16 %v1953, %v1952
  %v1995 = vpack.c.b16 %v1955, %v1954
  %v1996 = vpack.c.b16 %v1957, %v1956
  %v1997 = vpack.c.b16 %v1959, %v1958
  %v1998 = vpack.c.b16 %v1961, %v1960
  %v1999 = vpack.c.b16 %v1963, %v1962
  %v2000 = vpack.c.b16 %v1965, %v1964
  %v2001 = vpack.c.b16 %v1967, %v1966
  %v2002 = vpack.c.b16 %v1969, %v1968
  %v2003 = vpack.c.b16 %v1971, %v1970
  %v2004 = vpack.c.b16 %v1973, %v1972
  %v2005 = vpack.c.b16 %v1975, %v1974
  %v2006 = vpack.c.b16 %v1977, %v1976
  %v2007 = vpack.c.b16 %v1978, %v1978
  %v2009 = vsel %vm230, %v1979, 0
  %v2012 = vsel %vm230, %v1980, 0
  %v2015 = vsel %vm230, %v1981, 0
  %v2018 = vsel %vm230, %v1982, 0
  %v2021 = vsel %vm230, %v1983, 0
  %v2024 = vsel %vm230, %v1984, 0
  %v2027 = vsel %vm230, %v1985, 0
  %v2030 = vsel %vm230, %v1986, 0
  %v2033 = vsel %vm230, %v1987, 0
  %v2036 = vsel %vm230, %v1988, 0
  %v2039 = vsel %vm230, %v1989, 0
  %v2042 = vsel %vm230, %v1990, 0
  %v2045 = vsel %vm230, %v1991, 0
  %v2048 = vsel %vm230, %v1992, 0
  %v2051 = vsel %vm230, %v1993, 0
  %v2054 = vsel %vm230, %v1994, 0
  %v2057 = vsel %vm230, %v1995, 0
  %v2060 = vsel %vm230, %v1996, 0
  %v2063 = vsel %vm230, %v1997, 0
  %v2066 = vsel %vm230, %v1998, 0
  %v2069 = vsel %vm230, %v1999, 0
  %v2072 = vsel %vm230, %v2000, 0
  %v2075 = vsel %vm230, %v2001, 0
  %v2078 = vsel %vm230, %v2002, 0
  %v2081 = vsel %vm230, %v2003, 0
  %v2084 = vsel %vm230, %v2004, 0
  %v2087 = vsel %vm230, %v2005, 0
  %v2090 = vsel %vm230, %v2006, 0
  %v2093 = vsel %vm230, %v2007, 0
  %2095 = vmatprep.subr.bf16.mxu0 0
  %2096 = vmatpush1.bf16.msra.mxu0 %v227
  %2097 = vmatprep.subr.bf16.mxu0 0
  %2098 = vmatpush1.bf16.msra.mxu0 %v323
  %2099 = vmatprep.subr.bf16.mxu0 0
  %2100 = vmatpush1.bf16.msra.mxu0 0
  %2101 = vmatprep.subr.bf16.mxu0 0
  %2102 = vmatpush1.bf16.msra.mxu0 0
  %2103 = vmatprep.subr.bf16.mxu0 0
  %2104 = vmatpush1.bf16.msra.mxu0 0
  %2105 = vmatprep.subr.bf16.mxu0 0
  %2106 = vmatpush1.bf16.msra.mxu0 0
  %2107 = vmatprep.subr.bf16.mxu0 0
  %2108 = vmatpush1.bf16.msra.mxu0 0
  %2109 = vmatprep.subr.bf16.mxu0 0
  %2110 = vmatpush1.bf16.msra.mxu0 0
  %2111 = vmatprep.subr.bf16.mxu0 0
  %2112 = vmatpush1.bf16.msra.mxu0 0
  %2113 = vmatprep.subr.bf16.mxu0 0
  %2114 = vmatpush1.bf16.msra.mxu0 0
  %2115 = vmatprep.subr.bf16.mxu0 0
  %2116 = vmatpush1.bf16.msra.mxu0 0
  %2117 = vmatprep.subr.bf16.mxu0 0
  %2118 = vmatpush1.bf16.msra.mxu0 0
  %2119 = vmatprep.subr.bf16.mxu0 0
  %2120 = vmatpush1.bf16.msra.mxu0 0
  %2121 = vmatprep.subr.bf16.mxu0 0
  %2122 = vmatpush1.bf16.msra.mxu0 0
  %2123 = vmatprep.subr.bf16.mxu0 0
  %2124 = vmatpush1.bf16.msra.mxu0 0
  %2125 = vmatprep.subr.bf16.mxu0 0
  %2126 = vmatpush1.bf16.msra.mxu0 0
  %2127 = vmatprep.mubr.bf16.mxu0 0
  %2128 = vmatmul.mubr.bf16.gmra.mrb[0].mxu0 %v2009
  %v2129 = vpop.f32.mrb[0].mxu0
  %v2130 = vadd.f32 0.0, %v2129
  %v2131 = vpop.f32.mrb[0].mxu0
  %v2132 = vpop.f32.mrb[0].mxu0
  %v2133 = vadd.f32 0.0, %v2132
  %v2134 = vpop.f32.mrb[0].mxu0
  %2135 = vmatprep.mubr.bf16.mxu0 0
  %2136 = vmatmul.mubr.bf16.gmra.mrb[0].mxu0 %v2012
  %v2137 = vpop.f32.mrb[0].mxu0
  %v2138 = vadd.f32 0.0, %v2137
  %v2139 = vpop.f32.mrb[0].mxu0
  %v2140 = vpop.f32.mrb[0].mxu0
  %v2141 = vadd.f32 0.0, %v2140
  %v2142 = vpop.f32.mrb[0].mxu0
  %2143 = vmatprep.mubr.bf16.mxu0 0
  %2144 = vmatmul.mubr.bf16.gmra.mrb[0].mxu0 %v2015
  %v2145 = vpop.f32.mrb[0].mxu0
  %v2146 = vadd.f32 0.0, %v2145
  %v2147 = vpop.f32.mrb[0].mxu0
  %v2148 = vpop.f32.mrb[0].mxu0
  %v2149 = vadd.f32 0.0, %v2148
  %v2150 = vpop.f32.mrb[0].mxu0
  %2151 = vmatprep.mubr.bf16.mxu0 0
  %2152 = vmatmul.mubr.bf16.gmra.mrb[0].mxu0 %v2018
  %v2153 = vpop.f32.mrb[0].mxu0
  %v2154 = vadd.f32 0.0, %v2153
  %v2155 = vpop.f32.mrb[0].mxu0
  %v2156 = vpop.f32.mrb[0].mxu0
  %v2157 = vadd.f32 0.0, %v2156
  %v2158 = vpop.f32.mrb[0].mxu0
  %2159 = vmatprep.mubr.bf16.mxu0 0
  %2160 = vmatmul.mubr.bf16.gmra.mrb[0].mxu0 %v2021
  %v2161 = vpop.f32.mrb[0].mxu0
  %v2162 = vadd.f32 0.0, %v2161
  %v2163 = vpop.f32.mrb[0].mxu0
  %v2164 = vpop.f32.mrb[0].mxu0
  %v2165 = vadd.f32 0.0, %v2164
  %v2166 = vpop.f32.mrb[0].mxu0
  %2167 = vmatprep.mubr.bf16.mxu0 0
  %2168 = vmatmul.mubr.bf16.gmra.mrb[0].mxu0 %v2024
  %v2169 = vpop.f32.mrb[0].mxu0
  %v2170 = vadd.f32 0.0, %v2169
  %v2171 = vpop.f32.mrb[0].mxu0
  %v2172 = vpop.f32.mrb[0].mxu0
  %v2173 = vadd.f32 0.0, %v2172
  %v2174 = vpop.f32.mrb[0].mxu0
  %2175 = vmatprep.mubr.bf16.mxu0 0
  %2176 = vmatmul.mubr.bf16.gmra.mrb[0].mxu0 %v2027
  %v2177 = vpop.f32.mrb[0].mxu0
  %v2178 = vadd.f32 0.0, %v2177
  %v2179 = vpop.f32.mrb[0].mxu0
  %v2180 = vpop.f32.mrb[0].mxu0
  %v2181 = vadd.f32 0.0, %v2180
  %v2182 = vpop.f32.mrb[0].mxu0
  %2183 = vmatprep.mubr.bf16.mxu0 0
  %2184 = vmatmul.mubr.bf16.gmra.mrb[0].mxu0 %v2030
  %v2185 = vpop.f32.mrb[0].mxu0
  %v2186 = vadd.f32 0.0, %v2185
  %v2187 = vpop.f32.mrb[0].mxu0
  %v2188 = vpop.f32.mrb[0].mxu0
  %v2189 = vadd.f32 0.0, %v2188
  %v2190 = vpop.f32.mrb[0].mxu0
  %2191 = vmatprep.mubr.bf16.mxu0 0
  %2192 = vmatmul.mubr.bf16.gmra.mrb[0].mxu0 %v2033
  %v2193 = vpop.f32.mrb[0].mxu0
  %v2194 = vadd.f32 0.0, %v2193
  %v2195 = vpop.f32.mrb[0].mxu0
  %v2196 = vpop.f32.mrb[0].mxu0
  %v2197 = vadd.f32 0.0, %v2196
  %v2198 = vpop.f32.mrb[0].mxu0
  %2199 = vmatprep.mubr.bf16.mxu0 0
  %2200 = vmatmul.mubr.bf16.gmra.mrb[0].mxu0 %v2036
  %v2201 = vpop.f32.mrb[0].mxu0
  %v2202 = vadd.f32 0.0, %v2201
  %v2203 = vpop.f32.mrb[0].mxu0
  %v2204 = vpop.f32.mrb[0].mxu0
  %v2205 = vadd.f32 0.0, %v2204
  %v2206 = vpop.f32.mrb[0].mxu0
  %2207 = vmatprep.mubr.bf16.mxu0 0
  %2208 = vmatmul.mubr.bf16.gmra.mrb[0].mxu0 %v2039
  %v2209 = vpop.f32.mrb[0].mxu0
  %v2210 = vadd.f32 0.0, %v2209
  %v2211 = vpop.f32.mrb[0].mxu0
  %v2212 = vpop.f32.mrb[0].mxu0
  %v2213 = vadd.f32 0.0, %v2212
  %v2214 = vpop.f32.mrb[0].mxu0
  %2215 = vmatprep.mubr.bf16.mxu0 0
  %2216 = vmatmul.mubr.bf16.gmra.mrb[0].mxu0 %v2042
  %v2217 = vpop.f32.mrb[0].mxu0
  %v2218 = vadd.f32 0.0, %v2217
  %v2219 = vpop.f32.mrb[0].mxu0
  %v2220 = vpop.f32.mrb[0].mxu0
  %v2221 = vadd.f32 0.0, %v2220
  %v2222 = vpop.f32.mrb[0].mxu0
  %2223 = vmatprep.mubr.bf16.mxu0 0
  %2224 = vmatmul.mubr.bf16.gmra.mrb[0].mxu0 %v2045
  %v2225 = vpop.f32.mrb[0].mxu0
  %v2226 = vadd.f32 0.0, %v2225
  %v2227 = vpop.f32.mrb[0].mxu0
  %v2228 = vpop.f32.mrb[0].mxu0
  %v2229 = vadd.f32 0.0, %v2228
  %v2230 = vpop.f32.mrb[0].mxu0
  %2231 = vmatprep.mubr.bf16.mxu0 0
  %2232 = vmatmul.mubr.bf16.gmra.mrb[0].mxu0 %v2048
  %v2233 = vpop.f32.mrb[0].mxu0
  %v2234 = vadd.f32 0.0, %v2233
  %v2235 = vpop.f32.mrb[0].mxu0
  %v2236 = vpop.f32.mrb[0].mxu0
  %v2237 = vadd.f32 0.0, %v2236
  %v2238 = vpop.f32.mrb[0].mxu0
  %2239 = vmatprep.mubr.bf16.mxu0 0
  %2240 = vmatmul.mubr.bf16.gmra.mrb[0].mxu0 %v2051
  %v2241 = vpop.f32.mrb[0].mxu0
  %v2242 = vadd.f32 0.0, %v2241
  %v2243 = vpop.f32.mrb[0].mxu0
  %v2244 = vpop.f32.mrb[0].mxu0
  %v2245 = vadd.f32 0.0, %v2244
  %v2246 = vpop.f32.mrb[0].mxu0
  %2247 = vmatprep.mubr.bf16.mxu0 0
  %2248 = vmatmul.mubr.bf16.gmra.mrb[0].mxu0 %v2054
  %v2249 = vpop.f32.mrb[0].mxu0
  %v2250 = vadd.f32 0.0, %v2249
  %v2251 = vpop.f32.mrb[0].mxu0
  %v2252 = vpop.f32.mrb[0].mxu0
  %v2253 = vadd.f32 0.0, %v2252
  %v2254 = vpop.f32.mrb[0].mxu0
  %2255 = vmatprep.mubr.bf16.mxu0 0
  %2256 = vmatmul.mubr.bf16.gmra.mrb[0].mxu0 %v2057
  %v2257 = vpop.f32.mrb[0].mxu0
  %v2258 = vadd.f32 0.0, %v2257
  %v2259 = vpop.f32.mrb[0].mxu0
  %v2260 = vpop.f32.mrb[0].mxu0
  %v2261 = vadd.f32 0.0, %v2260
  %v2262 = vpop.f32.mrb[0].mxu0
  %2263 = vmatprep.mubr.bf16.mxu0 0
  %2264 = vmatmul.mubr.bf16.gmra.mrb[0].mxu0 %v2060
  %v2265 = vpop.f32.mrb[0].mxu0
  %v2266 = vadd.f32 0.0, %v2265
  %v2267 = vpop.f32.mrb[0].mxu0
  %v2268 = vpop.f32.mrb[0].mxu0
  %v2269 = vadd.f32 0.0, %v2268
  %v2270 = vpop.f32.mrb[0].mxu0
  %2271 = vmatprep.mubr.bf16.mxu0 0
  %2272 = vmatmul.mubr.bf16.gmra.mrb[0].mxu0 %v2063
  %v2273 = vpop.f32.mrb[0].mxu0
  %v2274 = vadd.f32 0.0, %v2273
  %v2275 = vpop.f32.mrb[0].mxu0
  %v2276 = vpop.f32.mrb[0].mxu0
  %v2277 = vadd.f32 0.0, %v2276
  %v2278 = vpop.f32.mrb[0].mxu0
  %2279 = vmatprep.mubr.bf16.mxu0 0
  %2280 = vmatmul.mubr.bf16.gmra.mrb[0].mxu0 %v2066
  %v2281 = vpop.f32.mrb[0].mxu0
  %v2282 = vadd.f32 0.0, %v2281
  %v2283 = vpop.f32.mrb[0].mxu0
  %v2284 = vpop.f32.mrb[0].mxu0
  %v2285 = vadd.f32 0.0, %v2284
  %v2286 = vpop.f32.mrb[0].mxu0
  %2287 = vmatprep.mubr.bf16.mxu0 0
  %2288 = vmatmul.mubr.bf16.gmra.mrb[0].mxu0 %v2069
  %v2289 = vpop.f32.mrb[0].mxu0
  %v2290 = vadd.f32 0.0, %v2289
  %v2291 = vpop.f32.mrb[0].mxu0
  %v2292 = vpop.f32.mrb[0].mxu0
  %v2293 = vadd.f32 0.0, %v2292
  %v2294 = vpop.f32.mrb[0].mxu0
  %2295 = vmatprep.mubr.bf16.mxu0 0
  %2296 = vmatmul.mubr.bf16.gmra.mrb[0].mxu0 %v2072
  %v2297 = vpop.f32.mrb[0].mxu0
  %v2298 = vadd.f32 0.0, %v2297
  %v2299 = vpop.f32.mrb[0].mxu0
  %v2300 = vpop.f32.mrb[0].mxu0
  %v2301 = vadd.f32 0.0, %v2300
  %v2302 = vpop.f32.mrb[0].mxu0
  %2303 = vmatprep.mubr.bf16.mxu0 0
  %2304 = vmatmul.mubr.bf16.gmra.mrb[0].mxu0 %v2075
  %v2305 = vpop.f32.mrb[0].mxu0
  %v2306 = vadd.f32 0.0, %v2305
  %v2307 = vpop.f32.mrb[0].mxu0
  %v2308 = vpop.f32.mrb[0].mxu0
  %v2309 = vadd.f32 0.0, %v2308
  %v2310 = vpop.f32.mrb[0].mxu0
  %2311 = vmatprep.mubr.bf16.mxu0 0
  %2312 = vmatmul.mubr.bf16.gmra.mrb[0].mxu0 %v2078
  %v2313 = vpop.f32.mrb[0].mxu0
  %v2314 = vadd.f32 0.0, %v2313
  %v2315 = vpop.f32.mrb[0].mxu0
  %v2316 = vpop.f32.mrb[0].mxu0
  %v2317 = vadd.f32 0.0, %v2316
  %v2318 = vpop.f32.mrb[0].mxu0
  %2319 = vmatprep.mubr.bf16.mxu0 0
  %2320 = vmatmul.mubr.bf16.gmra.mrb[0].mxu0 %v2081
  %v2321 = vpop.f32.mrb[0].mxu0
  %v2322 = vadd.f32 0.0, %v2321
  %v2323 = vpop.f32.mrb[0].mxu0
  %v2324 = vpop.f32.mrb[0].mxu0
  %v2325 = vadd.f32 0.0, %v2324
  %v2326 = vpop.f32.mrb[0].mxu0
  %2327 = vmatprep.mubr.bf16.mxu0 0
  %2328 = vmatmul.mubr.bf16.gmra.mrb[0].mxu0 %v2084
  %v2329 = vpop.f32.mrb[0].mxu0
  %v2330 = vadd.f32 0.0, %v2329
  %v2331 = vpop.f32.mrb[0].mxu0
  %v2332 = vpop.f32.mrb[0].mxu0
  %v2333 = vadd.f32 0.0, %v2332
  %v2334 = vpop.f32.mrb[0].mxu0
  %2335 = vmatprep.mubr.bf16.mxu0 0
  %2336 = vmatmul.mubr.bf16.gmra.mrb[0].mxu0 %v2087
  %v2337 = vpop.f32.mrb[0].mxu0
  %v2338 = vadd.f32 0.0, %v2337
  %v2339 = vpop.f32.mrb[0].mxu0
  %v2340 = vpop.f32.mrb[0].mxu0
  %v2341 = vadd.f32 0.0, %v2340
  %v2342 = vpop.f32.mrb[0].mxu0
  %2343 = vmatprep.mubr.bf16.mxu0 0
  %2344 = vmatmul.mubr.bf16.gmra.mrb[0].mxu0 %v2090
  %v2345 = vpop.f32.mrb[0].mxu0
  %v2346 = vadd.f32 0.0, %v2345
  %v2347 = vpop.f32.mrb[0].mxu0
  %v2348 = vpop.f32.mrb[0].mxu0
  %v2349 = vadd.f32 0.0, %v2348
  %v2350 = vpop.f32.mrb[0].mxu0
  %2351 = vmatprep.mubr.bf16.mxu0 0
  %2352 = vmatmul.mubr.bf16.gmra.mrb[0].mxu0 %v2093
  %v2353 = vpop.f32.mrb[0].mxu0
  %v2354 = vadd.f32 0.0, %v2353
  %v2355 = vpop.f32.mrb[0].mxu0
  %v2356 = vpop.f32.mrb[0].mxu0
  %v2357 = vpop.f32.mrb[0].mxu0
  %2358 = vdwg.mxu0
  %v2359 = vmax.f32 %v1750, %v2130
  %v2360 = vmax.f32 %v1751, %v2133
  %v2361 = vmax.f32 %v1752, %v2138
  %v2362 = vmax.f32 %v1753, %v2141
  %v2363 = vmax.f32 %v1754, %v2146
  %v2364 = vmax.f32 %v1755, %v2149
  %v2365 = vmax.f32 %v1756, %v2154
  %v2366 = vmax.f32 %v1757, %v2157
  %v2367 = vmax.f32 %v1758, %v2162
  %v2368 = vmax.f32 %v1759, %v2165
  %v2369 = vmax.f32 %v1760, %v2170
  %v2370 = vmax.f32 %v1761, %v2173
  %v2371 = vmax.f32 %v1762, %v2178
  %v2372 = vmax.f32 %v1763, %v2181
  %v2373 = vmax.f32 %v1764, %v2186
  %v2374 = vmax.f32 %v1765, %v2189
  %v2375 = vmax.f32 %v1766, %v2194
  %v2376 = vmax.f32 %v1767, %v2197
  %v2377 = vmax.f32 %v1768, %v2202
  %v2378 = vmax.f32 %v1769, %v2205
  %v2379 = vmax.f32 %v1770, %v2210
  %v2380 = vmax.f32 %v1771, %v2213
  %v2381 = vmax.f32 %v1772, %v2218
  %v2382 = vmax.f32 %v1773, %v2221
  %v2383 = vmax.f32 %v1774, %v2226
  %v2384 = vmax.f32 %v1775, %v2229
  %v2385 = vmax.f32 %v1776, %v2234
  %v2386 = vmax.f32 %v1777, %v2237
  %v2387 = vmax.f32 %v1778, %v2242
  %v2388 = vmax.f32 %v1779, %v2245
  %v2389 = vmax.f32 %v1780, %v2250
  %v2390 = vmax.f32 %v1781, %v2253
  %v2391 = vmax.f32 %v1782, %v2258
  %v2392 = vmax.f32 %v1783, %v2261
  %v2393 = vmax.f32 %v1784, %v2266
  %v2394 = vmax.f32 %v1785, %v2269
  %v2395 = vmax.f32 %v1786, %v2274
  %v2396 = vmax.f32 %v1787, %v2277
  %v2397 = vmax.f32 %v1788, %v2282
  %v2398 = vmax.f32 %v1789, %v2285
  %v2399 = vmax.f32 %v1790, %v2290
  %v2400 = vmax.f32 %v1791, %v2293
  %v2401 = vmax.f32 %v1792, %v2298
  %v2402 = vmax.f32 %v1793, %v2301
  %v2403 = vmax.f32 %v1794, %v2306
  %v2404 = vmax.f32 %v1795, %v2309
  %v2405 = vmax.f32 %v1796, %v2314
  %v2406 = vmax.f32 %v1797, %v2317
  %v2407 = vmax.f32 %v1798, %v2322
  %v2408 = vmax.f32 %v1799, %v2325
  %v2409 = vmax.f32 %v1800, %v2330
  %v2410 = vmax.f32 %v1801, %v2333
  %v2411 = vmax.f32 %v1802, %v2338
  %v2412 = vmax.f32 %v1803, %v2341
  %v2413 = vmax.f32 %v1804, %v2346
  %v2414 = vmax.f32 %v1805, %v2349
  %v2415 = vmax.f32 %v1806, %v2354
  %v2416 = vld [vmem:[%s2] sm:$0x1]
  %v2418 = vlaneseq
  %v2419 = vshrl.u32 %v2418, 7
  %v2420 = vsub.s32 0, %v2419
  %v2421 = vrot.slane %v2416, %v2420
  %v2423 = vadd.f32 %v2359, %v2421
  %v2424 = vadd.f32 %v2360, %v2421
  %v2425 = vadd.f32 %v2361, %v2421
  %v2426 = vadd.f32 %v2362, %v2421
  %v2427 = vadd.f32 %v2363, %v2421
  %v2428 = vadd.f32 %v2364, %v2421
  %v2429 = vadd.f32 %v2365, %v2421
  %v2430 = vadd.f32 %v2366, %v2421
  %v2431 = vadd.f32 %v2367, %v2421
  %v2432 = vadd.f32 %v2368, %v2421
  %v2433 = vadd.f32 %v2369, %v2421
  %v2434 = vadd.f32 %v2370, %v2421
  %v2435 = vadd.f32 %v2371, %v2421
  %v2436 = vadd.f32 %v2372, %v2421
  %v2437 = vadd.f32 %v2373, %v2421
  %v2438 = vadd.f32 %v2374, %v2421
  %v2439 = vadd.f32 %v2375, %v2421
  %v2440 = vadd.f32 %v2376, %v2421
  %v2441 = vadd.f32 %v2377, %v2421
  %v2442 = vadd.f32 %v2378, %v2421
  %v2443 = vadd.f32 %v2379, %v2421
  %v2444 = vadd.f32 %v2380, %v2421
  %v2445 = vadd.f32 %v2381, %v2421
  %v2446 = vadd.f32 %v2382, %v2421
  %v2447 = vadd.f32 %v2383, %v2421
  %v2448 = vadd.f32 %v2384, %v2421
  %v2449 = vadd.f32 %v2385, %v2421
  %v2450 = vadd.f32 %v2386, %v2421
  %v2451 = vadd.f32 %v2387, %v2421
  %v2452 = vadd.f32 %v2388, %v2421
  %v2453 = vadd.f32 %v2389, %v2421
  %v2454 = vadd.f32 %v2390, %v2421
  %v2455 = vadd.f32 %v2391, %v2421
  %v2456 = vadd.f32 %v2392, %v2421
  %v2457 = vadd.f32 %v2393, %v2421
  %v2458 = vadd.f32 %v2394, %v2421
  %v2459 = vadd.f32 %v2395, %v2421
  %v2460 = vadd.f32 %v2396, %v2421
  %v2461 = vadd.f32 %v2397, %v2421
  %v2462 = vadd.f32 %v2398, %v2421
  %v2463 = vadd.f32 %v2399, %v2421
  %v2464 = vadd.f32 %v2400, %v2421
  %v2465 = vadd.f32 %v2401, %v2421
  %v2466 = vadd.f32 %v2402, %v2421
  %v2467 = vadd.f32 %v2403, %v2421
  %v2468 = vadd.f32 %v2404, %v2421
  %v2469 = vadd.f32 %v2405, %v2421
  %v2470 = vadd.f32 %v2406, %v2421
  %v2471 = vadd.f32 %v2407, %v2421
  %v2472 = vadd.f32 %v2408, %v2421
  %v2473 = vadd.f32 %v2409, %v2421
  %v2474 = vadd.f32 %v2410, %v2421
  %v2475 = vadd.f32 %v2411, %v2421
  %v2476 = vadd.f32 %v2412, %v2421
  %v2477 = vadd.f32 %v2413, %v2421
  %v2478 = vadd.f32 %v2414, %v2421
  %v2479 = vadd.f32 %v2415, %v2421
  %v2480 = vmax.f32 %v2423, 0.0
  %v2481 = vmax.f32 %v2424, 0.0
  %v2482 = vmax.f32 %v2425, 0.0
  %v2483 = vmax.f32 %v2426, 0.0
  %v2484 = vmax.f32 %v2427, 0.0
  %v2485 = vmax.f32 %v2428, 0.0
  %v2486 = vmax.f32 %v2429, 0.0
  %v2487 = vmax.f32 %v2430, 0.0
  %v2488 = vmax.f32 %v2431, 0.0
  %v2489 = vmax.f32 %v2432, 0.0
  %v2490 = vmax.f32 %v2433, 0.0
  %v2491 = vmax.f32 %v2434, 0.0
  %v2492 = vmax.f32 %v2435, 0.0
  %v2493 = vmax.f32 %v2436, 0.0
  %v2494 = vmax.f32 %v2437, 0.0
  %v2495 = vmax.f32 %v2438, 0.0
  %v2496 = vmax.f32 %v2439, 0.0
  %v2497 = vmax.f32 %v2440, 0.0
  %v2498 = vmax.f32 %v2441, 0.0
  %v2499 = vmax.f32 %v2442, 0.0
  %v2500 = vmax.f32 %v2443, 0.0
  %v2501 = vmax.f32 %v2444, 0.0
  %v2502 = vmax.f32 %v2445, 0.0
  %v2503 = vmax.f32 %v2446, 0.0
  %v2504 = vmax.f32 %v2447, 0.0
  %v2505 = vmax.f32 %v2448, 0.0
  %v2506 = vmax.f32 %v2449, 0.0
  %v2507 = vmax.f32 %v2450, 0.0
  %v2508 = vmax.f32 %v2451, 0.0
  %v2509 = vmax.f32 %v2452, 0.0
  %v2510 = vmax.f32 %v2453, 0.0
  %v2511 = vmax.f32 %v2454, 0.0
  %v2512 = vmax.f32 %v2455, 0.0
  %v2513 = vmax.f32 %v2456, 0.0
  %v2514 = vmax.f32 %v2457, 0.0
  %v2515 = vmax.f32 %v2458, 0.0
  %v2516 = vmax.f32 %v2459, 0.0
  %v2517 = vmax.f32 %v2460, 0.0
  %v2518 = vmax.f32 %v2461, 0.0
  %v2519 = vmax.f32 %v2462, 0.0
  %v2520 = vmax.f32 %v2463, 0.0
  %v2521 = vmax.f32 %v2464, 0.0
  %v2522 = vmax.f32 %v2465, 0.0
  %v2523 = vmax.f32 %v2466, 0.0
  %v2524 = vmax.f32 %v2467, 0.0
  %v2525 = vmax.f32 %v2468, 0.0
  %v2526 = vmax.f32 %v2469, 0.0
  %v2527 = vmax.f32 %v2470, 0.0
  %v2528 = vmax.f32 %v2471, 0.0
  %v2529 = vmax.f32 %v2472, 0.0
  %v2530 = vmax.f32 %v2473, 0.0
  %v2531 = vmax.f32 %v2474, 0.0
  %v2532 = vmax.f32 %v2475, 0.0
  %v2533 = vmax.f32 %v2476, 0.0
  %v2534 = vmax.f32 %v2477, 0.0
  %v2535 = vmax.f32 %v2478, 0.0
  %v2536 = vmax.f32 %v2479, 0.0
  %vm2537 = vcmask 64512
  %2538 = vst.msk [vmem:[%s3] sm:$0xff] %vm2537, %v2480
  %2539 = vst.msk [vmem:[%s3 + $0x8] sm:$0xff] %vm2537, %v2481
  %2540 = vst.msk [vmem:[%s3 + $0x10] sm:$0xff] %vm2537, %v2482
  %2541 = vst.msk [vmem:[%s3 + $0x18] sm:$0xff] %vm2537, %v2483
  %2542 = vst.msk [vmem:[%s3 + $0x20] sm:$0xff] %vm2537, %v2484
  %2543 = vst.msk [vmem:[%s3 + $0x28] sm:$0xff] %vm2537, %v2485
  %2544 = vst.msk [vmem:[%s3 + $0x30] sm:$0xff] %vm2537, %v2486
  %2545 = vst.msk [vmem:[%s3 + $0x38] sm:$0xff] %vm2537, %v2487
  %2546 = vst.msk [vmem:[%s3 + $0x40] sm:$0xff] %vm2537, %v2488
  %2547 = vst.msk [vmem:[%s3 + $0x48] sm:$0xff] %vm2537, %v2489
  %2548 = vst.msk [vmem:[%s3 + $0x50] sm:$0xff] %vm2537, %v2490
  %2549 = vst.msk [vmem:[%s3 + $0x58] sm:$0xff] %vm2537, %v2491
  %2550 = vst.msk [vmem:[%s3 + $0x60] sm:$0xff] %vm2537, %v2492
  %2551 = vst.msk [vmem:[%s3 + $0x68] sm:$0xff] %vm2537, %v2493
  %2552 = vst.msk [vmem:[%s3 + $0x70] sm:$0xff] %vm2537, %v2494
  %2553 = vst.msk [vmem:[%s3 + $0x78] sm:$0xff] %vm2537, %v2495
  %2554 = vst.msk [vmem:[%s3 + $0x80] sm:$0xff] %vm2537, %v2496
  %2555 = vst.msk [vmem:[%s3 + $0x88] sm:$0xff] %vm2537, %v2497
  %2556 = vst.msk [vmem:[%s3 + $0x90] sm:$0xff] %vm2537, %v2498
  %2557 = vst.msk [vmem:[%s3 + $0x98] sm:$0xff] %vm2537, %v2499
  %2558 = vst.msk [vmem:[%s3 + $0xa0] sm:$0xff] %vm2537, %v2500
  %2559 = vst.msk [vmem:[%s3 + $0xa8] sm:$0xff] %vm2537, %v2501
  %2560 = vst.msk [vmem:[%s3 + $0xb0] sm:$0xff] %vm2537, %v2502
  %2561 = vst.msk [vmem:[%s3 + $0xb8] sm:$0xff] %vm2537, %v2503
  %2562 = vst.msk [vmem:[%s3 + $0xc0] sm:$0xff] %vm2537, %v2504
  %2563 = vst.msk [vmem:[%s3 + $0xc8] sm:$0xff] %vm2537, %v2505
  %2564 = vst.msk [vmem:[%s3 + $0xd0] sm:$0xff] %vm2537, %v2506
  %2565 = vst.msk [vmem:[%s3 + $0xd8] sm:$0xff] %vm2537, %v2507
  %2566 = vst.msk [vmem:[%s3 + $0xe0] sm:$0xff] %vm2537, %v2508
  %2567 = vst.msk [vmem:[%s3 + $0xe8] sm:$0xff] %vm2537, %v2509
  %2568 = vst.msk [vmem:[%s3 + $0xf0] sm:$0xff] %vm2537, %v2510
  %2569 = vst.msk [vmem:[%s3 + $0xf8] sm:$0xff] %vm2537, %v2511
  %2570 = vst.msk [vmem:[%s3 + $0x100] sm:$0xff] %vm2537, %v2512
  %2571 = vst.msk [vmem:[%s3 + $0x108] sm:$0xff] %vm2537, %v2513
  %2572 = vst.msk [vmem:[%s3 + $0x110] sm:$0xff] %vm2537, %v2514
  %2573 = vst.msk [vmem:[%s3 + $0x118] sm:$0xff] %vm2537, %v2515
  %2574 = vst.msk [vmem:[%s3 + $0x120] sm:$0xff] %vm2537, %v2516
  %2575 = vst.msk [vmem:[%s3 + $0x128] sm:$0xff] %vm2537, %v2517
  %2576 = vst.msk [vmem:[%s3 + $0x130] sm:$0xff] %vm2537, %v2518
  %2577 = vst.msk [vmem:[%s3 + $0x138] sm:$0xff] %vm2537, %v2519
  %2578 = vst.msk [vmem:[%s3 + $0x140] sm:$0xff] %vm2537, %v2520
  %2579 = vst.msk [vmem:[%s3 + $0x148] sm:$0xff] %vm2537, %v2521
  %2580 = vst.msk [vmem:[%s3 + $0x150] sm:$0xff] %vm2537, %v2522
  %2581 = vst.msk [vmem:[%s3 + $0x158] sm:$0xff] %vm2537, %v2523
  %2582 = vst.msk [vmem:[%s3 + $0x160] sm:$0xff] %vm2537, %v2524
  %2583 = vst.msk [vmem:[%s3 + $0x168] sm:$0xff] %vm2537, %v2525
  %2584 = vst.msk [vmem:[%s3 + $0x170] sm:$0xff] %vm2537, %v2526
  %2585 = vst.msk [vmem:[%s3 + $0x178] sm:$0xff] %vm2537, %v2527
  %2586 = vst.msk [vmem:[%s3 + $0x180] sm:$0xff] %vm2537, %v2528
  %2587 = vst.msk [vmem:[%s3 + $0x188] sm:$0xff] %vm2537, %v2529
  %2588 = vst.msk [vmem:[%s3 + $0x190] sm:$0xff] %vm2537, %v2530
  %2589 = vst.msk [vmem:[%s3 + $0x198] sm:$0xff] %vm2537, %v2531
  %2590 = vst.msk [vmem:[%s3 + $0x1a0] sm:$0xff] %vm2537, %v2532
  %2591 = vst.msk [vmem:[%s3 + $0x1a8] sm:$0xff] %vm2537, %v2533
  %2592 = vst.msk [vmem:[%s3 + $0x1b0] sm:$0xff] %vm2537, %v2534
  %2593 = vst.msk [vmem:[%s3 + $0x1b8] sm:$0xff] %vm2537, %v2535
  %vm2594 = vcmask 58368
  %2595 = vst.msk [vmem:[%s3 + $0x1c0] sm:$0x3] %vm2594, %v2536
  // Predicated region
  $region14: #{cnn_forward.3} parent=0 // pred_check
    _
  $region15: #{cnn_forward.3} parent=0 // pred_check_branch
    %2597 = sbr.rel (0) target = $region17
  $region16: #{cnn_forward.3} parent=0 // pred_region
    _
  $region17: #{cnn_forward.3} parent=0 // pred_fallthru
    _
  // Predicated region
  $region18: #{cnn_forward.3} parent=0 // pred_check
    _
  $region19: #{cnn_forward.3} parent=0 // pred_check_branch
    %2599 = sbr.rel (0) target = $region21
  $region20: #{cnn_forward.3} parent=0 // pred_region
    _
  $region21: #{cnn_forward.3} parent=0 // pred_fallthru
    _

// kernel: cnn_forward.4
$region0: #{cnn_forward.4}
  #allocation0 [shape = 'u32[]', space=smem, size = 0x4, offset = 0x4, fixed_abs, tag = 'smem constant byte address 0x4 - core index']
  #allocation1 [shape = 'u32[144,128]{1,0:T(1,128)}', space=vmem, size = 0x12000, scoped, tag = 'internal scratch']
  %s0 = inlined_call_operand.vmem [shape: bf16[4,72,72], index: 0, kind: input, shape index: {}]
  %s1 = inlined_call_operand.vmem [shape: bf16[72,16], index: 1, kind: input, shape index: {}]
  %s2 = inlined_call_operand.vmem [shape: f32[1,16], index: 2, kind: input, shape index: {}]
  %s3 = inlined_call_operand.vmem [shape: f32[72,16], index: 3, kind: output, shape index: {}]
  %s4 = sld [smem:[#allocation0]]
  $region22: #{cnn_forward.4} parent=0
    _
  %s6 = ssub.s32 1, %s4
  %s7 = scalar_select 0, %s6, %s4
  // Predicated region
  $region2: #{cnn_forward.4} parent=0 // pred_check
    _
  $region3: #{cnn_forward.4} parent=0 // pred_check_branch
    %9 = sbr.rel (0) target = $region5
  $region4: #{cnn_forward.4} parent=0 // pred_region
    _
  $region5: #{cnn_forward.4} parent=0 // pred_fallthru
    _
  // Predicated region
  $region6: #{cnn_forward.4} parent=0 // pred_check
    _
  $region7: #{cnn_forward.4} parent=0 // pred_check_branch
    %11 = sbr.rel (0) target = $region9
  $region8: #{cnn_forward.4} parent=0 // pred_region
    _
  $region9: #{cnn_forward.4} parent=0 // pred_fallthru
    _
  // Predicated region
  $region10: #{cnn_forward.4} parent=0 // pred_check
    _
  $region11: #{cnn_forward.4} parent=0 // pred_check_branch
    %13 = sbr.rel (0) target = $region13
  $region12: #{cnn_forward.4} parent=0 // pred_region
    _
  $region13: #{cnn_forward.4} parent=0 // pred_fallthru
    _
  %v15 = vld [vmem:[%s1] sm:$0xf]
  %v16 = vld [vmem:[%s1 + $0x4] sm:$0xf]
  %v17 = vld [vmem:[%s1 + $0x8] sm:$0xf]
  %v18 = vld [vmem:[%s1 + $0xc] sm:$0xf]
  %v19 = vld [vmem:[%s1 + $0x10] sm:$0xf]
  %v20 = vld [vmem:[%s1 + $0x14] sm:$0xf]
  %v21 = vld [vmem:[%s1 + $0x18] sm:$0xf]
  %v22 = vld [vmem:[%s1 + $0x1c] sm:$0xf]
  %v23 = vld [vmem:[%s1 + $0x20] sm:$0xf]
  %v24 = vld [vmem:[%s0] sm:$0xf]
  %v25 = vld [vmem:[%s0 + $0x4] sm:$0xf]
  %v26 = vld [vmem:[%s0 + $0x8] sm:$0xf]
  %v27 = vld [vmem:[%s0 + $0xc] sm:$0xf]
  %v28 = vld [vmem:[%s0 + $0x10] sm:$0xf]
  %v29 = vld [vmem:[%s0 + $0x14] sm:$0xf]
  %v30 = vld [vmem:[%s0 + $0x18] sm:$0xf]
  %v31 = vld [vmem:[%s0 + $0x1c] sm:$0xf]
  %v32 = vld [vmem:[%s0 + $0x20] sm:$0xf]
  %v42 = vunpack.c.l.b16 %v24
  %v43 = vunpack.c.l.b16 %v25
  %v44 = vunpack.c.l.b16 %v26
  %v45 = vunpack.c.l.b16 %v27
  %v46 = vunpack.c.l.b16 %v28
  %v47 = vunpack.c.l.b16 %v29
  %v48 = vunpack.c.l.b16 %v30
  %v49 = vunpack.c.l.b16 %v31
  %v50 = vunpack.c.l.b16 %v32
  %v51 = vpack.c.b16 %v43, %v42
  %v52 = vpack.c.b16 %v45, %v44
  %v53 = vpack.c.b16 %v47, %v46
  %v54 = vpack.c.b16 %v49, %v48
  %v55 = vpack.c.b16 %v50, %v50
  %v65 = vunpack.c.l.b16 %v15
  %v66 = vunpack.c.l.b16 %v16
  %v67 = vunpack.c.l.b16 %v17
  %v68 = vunpack.c.l.b16 %v18
  %v69 = vunpack.c.l.b16 %v19
  %v70 = vunpack.c.l.b16 %v20
  %v71 = vunpack.c.l.b16 %v21
  %v72 = vunpack.c.l.b16 %v22
  %v73 = vunpack.c.l.b16 %v23
  %v74 = vpack.c.b16 %v66, %v65
  %v75 = vpack.c.b16 %v68, %v67
  %v76 = vpack.c.b16 %v70, %v69
  %v77 = vpack.c.b16 %v72, %v71
  %v78 = vpack.c.b16 %v73, %v73
  %vm83 = vcmask 588800
  %v85 = vsel %vm83, %v51, 0
  %v88 = vsel %vm83, %v52, 0
  %v91 = vsel %vm83, %v53, 0
  %v94 = vsel %vm83, %v54, 0
  %v97 = vsel %vm83, %v55, 0
  %vm99 = vcmask 1043456
  %v101 = vsel %vm99, %v78, 0
  %103 = vmatprep.subr.bf16.mxu0 0
  %104 = vmatpush1.bf16.msra.mxu0 %v74
  %105 = vmatprep.subr.bf16.mxu0 0
  %106 = vmatpush1.bf16.msra.mxu0 %v75
  %107 = vmatprep.subr.bf16.mxu0 0
  %108 = vmatpush1.bf16.msra.mxu0 %v76
  %109 = vmatprep.subr.bf16.mxu0 0
  %110 = vmatpush1.bf16.msra.mxu0 %v77
  %111 = vmatprep.subr.bf16.mxu0 0
  %112 = vmatpush1.bf16.msra.mxu0 %v101
  %113 = vmatprep.subr.bf16.mxu0 0
  %114 = vmatpush1.bf16.msra.mxu0 0
  %115 = vmatprep.subr.bf16.mxu0 0
  %116 = vmatpush1.bf16.msra.mxu0 0
  %117 = vmatprep.subr.bf16.mxu0 0
  %118 = vmatpush1.bf16.msra.mxu0 0
  %119 = vmatprep.subr.bf16.mxu0 0
  %120 = vmatpush1.bf16.msra.mxu0 0
  %121 = vmatprep.subr.bf16.mxu0 0
  %122 = vmatpush1.bf16.msra.mxu0 0
  %123 = vmatprep.subr.bf16.mxu0 0
  %124 = vmatpush1.bf16.msra.mxu0 0
  %125 = vmatprep.subr.bf16.mxu0 0
  %126 = vmatpush1.bf16.msra.mxu0 0
  %127 = vmatprep.subr.bf16.mxu0 0
  %128 = vmatpush1.bf16.msra.mxu0 0
  %129 = vmatprep.subr.bf16.mxu0 0
  %130 = vmatpush1.bf16.msra.mxu0 0
  %131 = vmatprep.subr.bf16.mxu0 0
  %132 = vmatpush1.bf16.msra.mxu0 0
  %133 = vmatprep.subr.bf16.mxu0 0
  %134 = vmatpush1.bf16.msra.mxu0 0
  %135 = vmatprep.mubr.bf16.mxu0 0
  %136 = vmatmul.mubr.bf16.gmra.mrb[0].mxu0 %v85
  %v137 = vpop.f32.mrb[0].mxu0
  %v138 = vadd.f32 0.0, %v137
  %v139 = vpop.f32.mrb[0].mxu0
  %v140 = vpop.f32.mrb[0].mxu0
  %v141 = vadd.f32 0.0, %v140
  %v142 = vpop.f32.mrb[0].mxu0
  %143 = vmatprep.mubr.bf16.mxu0 0
  %144 = vmatmul.mubr.bf16.gmra.mrb[0].mxu0 %v88
  %v145 = vpop.f32.mrb[0].mxu0
  %v146 = vadd.f32 0.0, %v145
  %v147 = vpop.f32.mrb[0].mxu0
  %v148 = vpop.f32.mrb[0].mxu0
  %v149 = vadd.f32 0.0, %v148
  %v150 = vpop.f32.mrb[0].mxu0
  %151 = vmatprep.mubr.bf16.mxu0 0
  %152 = vmatmul.mubr.bf16.gmra.mrb[0].mxu0 %v91
  %v153 = vpop.f32.mrb[0].mxu0
  %v154 = vadd.f32 0.0, %v153
  %v155 = vpop.f32.mrb[0].mxu0
  %v156 = vpop.f32.mrb[0].mxu0
  %v157 = vadd.f32 0.0, %v156
  %v158 = vpop.f32.mrb[0].mxu0
  %159 = vmatprep.mubr.bf16.mxu0 0
  %160 = vmatmul.mubr.bf16.gmra.mrb[0].mxu0 %v94
  %v161 = vpop.f32.mrb[0].mxu0
  %v162 = vadd.f32 0.0, %v161
  %v163 = vpop.f32.mrb[0].mxu0
  %v164 = vpop.f32.mrb[0].mxu0
  %v165 = vadd.f32 0.0, %v164
  %v166 = vpop.f32.mrb[0].mxu0
  %167 = vmatprep.mubr.bf16.mxu0 0
  %168 = vmatmul.mubr.bf16.gmra.mrb[0].mxu0 %v97
  %v169 = vpop.f32.mrb[0].mxu0
  %v170 = vadd.f32 0.0, %v169
  %v171 = vpop.f32.mrb[0].mxu0
  %v172 = vpop.f32.mrb[0].mxu0
  %v173 = vpop.f32.mrb[0].mxu0
  %174 = vdwg.mxu0
  %s175 = scalar_lea.vmem %s0, 36
  %v176 = vld [vmem:[%s175] sm:$0xf]
  %v177 = vld [vmem:[%s175 + $0x4] sm:$0xf]
  %v178 = vld [vmem:[%s175 + $0x8] sm:$0xf]
  %v179 = vld [vmem:[%s175 + $0xc] sm:$0xf]
  %v180 = vld [vmem:[%s175 + $0x10] sm:$0xf]
  %v181 = vld [vmem:[%s175 + $0x14] sm:$0xf]
  %v182 = vld [vmem:[%s175 + $0x18] sm:$0xf]
  %v183 = vld [vmem:[%s175 + $0x1c] sm:$0xf]
  %v184 = vld [vmem:[%s175 + $0x20] sm:$0xf]
  %v194 = vunpack.c.l.b16 %v176
  %v195 = vunpack.c.l.b16 %v177
  %v196 = vunpack.c.l.b16 %v178
  %v197 = vunpack.c.l.b16 %v179
  %v198 = vunpack.c.l.b16 %v180
  %v199 = vunpack.c.l.b16 %v181
  %v200 = vunpack.c.l.b16 %v182
  %v201 = vunpack.c.l.b16 %v183
  %v202 = vunpack.c.l.b16 %v184
  %v203 = vpack.c.b16 %v195, %v194
  %v204 = vpack.c.b16 %v197, %v196
  %v205 = vpack.c.b16 %v199, %v198
  %v206 = vpack.c.b16 %v201, %v200
  %v207 = vpack.c.b16 %v202, %v202
  %v209 = vsel %vm83, %v203, 0
  %v212 = vsel %vm83, %v204, 0
  %v215 = vsel %vm83, %v205, 0
  %v218 = vsel %vm83, %v206, 0
  %v221 = vsel %vm83, %v207, 0
  %223 = vmatprep.subr.bf16.mxu0 0
  %224 = vmatpush1.bf16.msra.mxu0 %v74
  %225 = vmatprep.subr.bf16.mxu0 0
  %226 = vmatpush1.bf16.msra.mxu0 %v75
  %227 = vmatprep.subr.bf16.mxu0 0
  %228 = vmatpush1.bf16.msra.mxu0 %v76
  %229 = vmatprep.subr.bf16.mxu0 0
  %230 = vmatpush1.bf16.msra.mxu0 %v77
  %231 = vmatprep.subr.bf16.mxu0 0
  %232 = vmatpush1.bf16.msra.mxu0 %v101
  %233 = vmatprep.subr.bf16.mxu0 0
  %234 = vmatpush1.bf16.msra.mxu0 0
  %235 = vmatprep.subr.bf16.mxu0 0
  %236 = vmatpush1.bf16.msra.mxu0 0
  %237 = vmatprep.subr.bf16.mxu0 0
  %238 = vmatpush1.bf16.msra.mxu0 0
  %239 = vmatprep.subr.bf16.mxu0 0
  %240 = vmatpush1.bf16.msra.mxu0 0
  %241 = vmatprep.subr.bf16.mxu0 0
  %242 = vmatpush1.bf16.msra.mxu0 0
  %243 = vmatprep.subr.bf16.mxu0 0
  %244 = vmatpush1.bf16.msra.mxu0 0
  %245 = vmatprep.subr.bf16.mxu0 0
  %246 = vmatpush1.bf16.msra.mxu0 0
  %247 = vmatprep.subr.bf16.mxu0 0
  %248 = vmatpush1.bf16.msra.mxu0 0
  %249 = vmatprep.subr.bf16.mxu0 0
  %250 = vmatpush1.bf16.msra.mxu0 0
  %251 = vmatprep.subr.bf16.mxu0 0
  %252 = vmatpush1.bf16.msra.mxu0 0
  %253 = vmatprep.subr.bf16.mxu0 0
  %254 = vmatpush1.bf16.msra.mxu0 0
  %255 = vmatprep.mubr.bf16.mxu0 0
  %256 = vmatmul.mubr.bf16.gmra.mrb[0].mxu0 %v209
  %v257 = vpop.f32.mrb[0].mxu0
  %v258 = vadd.f32 0.0, %v257
  %v259 = vpop.f32.mrb[0].mxu0
  %v260 = vpop.f32.mrb[0].mxu0
  %v261 = vadd.f32 0.0, %v260
  %v262 = vpop.f32.mrb[0].mxu0
  %263 = vmatprep.mubr.bf16.mxu0 0
  %264 = vmatmul.mubr.bf16.gmra.mrb[0].mxu0 %v212
  %v265 = vpop.f32.mrb[0].mxu0
  %v266 = vadd.f32 0.0, %v265
  %v267 = vpop.f32.mrb[0].mxu0
  %v268 = vpop.f32.mrb[0].mxu0
  %v269 = vadd.f32 0.0, %v268
  %v270 = vpop.f32.mrb[0].mxu0
  %271 = vmatprep.mubr.bf16.mxu0 0
  %272 = vmatmul.mubr.bf16.gmra.mrb[0].mxu0 %v215
  %v273 = vpop.f32.mrb[0].mxu0
  %v274 = vadd.f32 0.0, %v273
  %v275 = vpop.f32.mrb[0].mxu0
  %v276 = vpop.f32.mrb[0].mxu0
  %v277 = vadd.f32 0.0, %v276
  %v278 = vpop.f32.mrb[0].mxu0
  %279 = vmatprep.mubr.bf16.mxu0 0
  %280 = vmatmul.mubr.bf16.gmra.mrb[0].mxu0 %v218
  %v281 = vpop.f32.mrb[0].mxu0
  %v282 = vadd.f32 0.0, %v281
  %v283 = vpop.f32.mrb[0].mxu0
  %v284 = vpop.f32.mrb[0].mxu0
  %v285 = vadd.f32 0.0, %v284
  %v286 = vpop.f32.mrb[0].mxu0
  %287 = vmatprep.mubr.bf16.mxu0 0
  %288 = vmatmul.mubr.bf16.gmra.mrb[0].mxu0 %v221
  %v289 = vpop.f32.mrb[0].mxu0
  %v290 = vadd.f32 0.0, %v289
  %v291 = vpop.f32.mrb[0].mxu0
  %v292 = vpop.f32.mrb[0].mxu0
  %v293 = vpop.f32.mrb[0].mxu0
  %294 = vdwg.mxu0
  %v295 = vmax.f32 %v138, %v258
  %v296 = vmax.f32 %v141, %v261
  %v297 = vmax.f32 %v146, %v266
  %v298 = vmax.f32 %v149, %v269
  %v299 = vmax.f32 %v154, %v274
  %v300 = vmax.f32 %v157, %v277
  %v301 = vmax.f32 %v162, %v282
  %v302 = vmax.f32 %v165, %v285
  %v303 = vmax.f32 %v170, %v290
  %s304 = scalar_lea.vmem %s0, 72
  %v305 = vld [vmem:[%s304] sm:$0xf]
  %v306 = vld [vmem:[%s304 + $0x4] sm:$0xf]
  %v307 = vld [vmem:[%s304 + $0x8] sm:$0xf]
  %v308 = vld [vmem:[%s304 + $0xc] sm:$0xf]
  %v309 = vld [vmem:[%s304 + $0x10] sm:$0xf]
  %v310 = vld [vmem:[%s304 + $0x14] sm:$0xf]
  %v311 = vld [vmem:[%s304 + $0x18] sm:$0xf]
  %v312 = vld [vmem:[%s304 + $0x1c] sm:$0xf]
  %v313 = vld [vmem:[%s304 + $0x20] sm:$0xf]
  %v323 = vunpack.c.l.b16 %v305
  %v324 = vunpack.c.l.b16 %v306
  %v325 = vunpack.c.l.b16 %v307
  %v326 = vunpack.c.l.b16 %v308
  %v327 = vunpack.c.l.b16 %v309
  %v328 = vunpack.c.l.b16 %v310
  %v329 = vunpack.c.l.b16 %v311
  %v330 = vunpack.c.l.b16 %v312
  %v331 = vunpack.c.l.b16 %v313
  %v332 = vpack.c.b16 %v324, %v323
  %v333 = vpack.c.b16 %v326, %v325
  %v334 = vpack.c.b16 %v328, %v327
  %v335 = vpack.c.b16 %v330, %v329
  %v336 = vpack.c.b16 %v331, %v331
  %v338 = vsel %vm83, %v332, 0
  %v341 = vsel %vm83, %v333, 0
  %v344 = vsel %vm83, %v334, 0
  %v347 = vsel %vm83, %v335, 0
  %v350 = vsel %vm83, %v336, 0
  %352 = vmatprep.subr.bf16.mxu0 0
  %353 = vmatpush1.bf16.msra.mxu0 %v74
  %354 = vmatprep.subr.bf16.mxu0 0
  %355 = vmatpush1.bf16.msra.mxu0 %v75
  %356 = vmatprep.subr.bf16.mxu0 0
  %357 = vmatpush1.bf16.msra.mxu0 %v76
  %358 = vmatprep.subr.bf16.mxu0 0
  %359 = vmatpush1.bf16.msra.mxu0 %v77
  %360 = vmatprep.subr.bf16.mxu0 0
  %361 = vmatpush1.bf16.msra.mxu0 %v101
  %362 = vmatprep.subr.bf16.mxu0 0
  %363 = vmatpush1.bf16.msra.mxu0 0
  %364 = vmatprep.subr.bf16.mxu0 0
  %365 = vmatpush1.bf16.msra.mxu0 0
  %366 = vmatprep.subr.bf16.mxu0 0
  %367 = vmatpush1.bf16.msra.mxu0 0
  %368 = vmatprep.subr.bf16.mxu0 0
  %369 = vmatpush1.bf16.msra.mxu0 0
  %370 = vmatprep.subr.bf16.mxu0 0
  %371 = vmatpush1.bf16.msra.mxu0 0
  %372 = vmatprep.subr.bf16.mxu0 0
  %373 = vmatpush1.bf16.msra.mxu0 0
  %374 = vmatprep.subr.bf16.mxu0 0
  %375 = vmatpush1.bf16.msra.mxu0 0
  %376 = vmatprep.subr.bf16.mxu0 0
  %377 = vmatpush1.bf16.msra.mxu0 0
  %378 = vmatprep.subr.bf16.mxu0 0
  %379 = vmatpush1.bf16.msra.mxu0 0
  %380 = vmatprep.subr.bf16.mxu0 0
  %381 = vmatpush1.bf16.msra.mxu0 0
  %382 = vmatprep.subr.bf16.mxu0 0
  %383 = vmatpush1.bf16.msra.mxu0 0
  %384 = vmatprep.mubr.bf16.mxu0 0
  %385 = vmatmul.mubr.bf16.gmra.mrb[0].mxu0 %v338
  %v386 = vpop.f32.mrb[0].mxu0
  %v387 = vadd.f32 0.0, %v386
  %v388 = vpop.f32.mrb[0].mxu0
  %v389 = vpop.f32.mrb[0].mxu0
  %v390 = vadd.f32 0.0, %v389
  %v391 = vpop.f32.mrb[0].mxu0
  %392 = vmatprep.mubr.bf16.mxu0 0
  %393 = vmatmul.mubr.bf16.gmra.mrb[0].mxu0 %v341
  %v394 = vpop.f32.mrb[0].mxu0
  %v395 = vadd.f32 0.0, %v394
  %v396 = vpop.f32.mrb[0].mxu0
  %v397 = vpop.f32.mrb[0].mxu0
  %v398 = vadd.f32 0.0, %v397
  %v399 = vpop.f32.mrb[0].mxu0
  %400 = vmatprep.mubr.bf16.mxu0 0
  %401 = vmatmul.mubr.bf16.gmra.mrb[0].mxu0 %v344
  %v402 = vpop.f32.mrb[0].mxu0
  %v403 = vadd.f32 0.0, %v402
  %v404 = vpop.f32.mrb[0].mxu0
  %v405 = vpop.f32.mrb[0].mxu0
  %v406 = vadd.f32 0.0, %v405
  %v407 = vpop.f32.mrb[0].mxu0
  %408 = vmatprep.mubr.bf16.mxu0 0
  %409 = vmatmul.mubr.bf16.gmra.mrb[0].mxu0 %v347
  %v410 = vpop.f32.mrb[0].mxu0
  %v411 = vadd.f32 0.0, %v410
  %v412 = vpop.f32.mrb[0].mxu0
  %v413 = vpop.f32.mrb[0].mxu0
  %v414 = vadd.f32 0.0, %v413
  %v415 = vpop.f32.mrb[0].mxu0
  %416 = vmatprep.mubr.bf16.mxu0 0
  %417 = vmatmul.mubr.bf16.gmra.mrb[0].mxu0 %v350
  %v418 = vpop.f32.mrb[0].mxu0
  %v419 = vadd.f32 0.0, %v418
  %v420 = vpop.f32.mrb[0].mxu0
  %v421 = vpop.f32.mrb[0].mxu0
  %v422 = vpop.f32.mrb[0].mxu0
  %423 = vdwg.mxu0
  %v424 = vmax.f32 %v295, %v387
  %v425 = vmax.f32 %v296, %v390
  %v426 = vmax.f32 %v297, %v395
  %v427 = vmax.f32 %v298, %v398
  %v428 = vmax.f32 %v299, %v403
  %v429 = vmax.f32 %v300, %v406
  %v430 = vmax.f32 %v301, %v411
  %v431 = vmax.f32 %v302, %v414
  %v432 = vmax.f32 %v303, %v419
  %s433 = scalar_lea.vmem %s0, 108
  %v434 = vld [vmem:[%s433] sm:$0xf]
  %v435 = vld [vmem:[%s433 + $0x4] sm:$0xf]
  %v436 = vld [vmem:[%s433 + $0x8] sm:$0xf]
  %v437 = vld [vmem:[%s433 + $0xc] sm:$0xf]
  %v438 = vld [vmem:[%s433 + $0x10] sm:$0xf]
  %v439 = vld [vmem:[%s433 + $0x14] sm:$0xf]
  %v440 = vld [vmem:[%s433 + $0x18] sm:$0xf]
  %v441 = vld [vmem:[%s433 + $0x1c] sm:$0xf]
  %v442 = vld [vmem:[%s433 + $0x20] sm:$0xf]
  %v452 = vunpack.c.l.b16 %v434
  %v453 = vunpack.c.l.b16 %v435
  %v454 = vunpack.c.l.b16 %v436
  %v455 = vunpack.c.l.b16 %v437
  %v456 = vunpack.c.l.b16 %v438
  %v457 = vunpack.c.l.b16 %v439
  %v458 = vunpack.c.l.b16 %v440
  %v459 = vunpack.c.l.b16 %v441
  %v460 = vunpack.c.l.b16 %v442
  %v461 = vpack.c.b16 %v453, %v452
  %v462 = vpack.c.b16 %v455, %v454
  %v463 = vpack.c.b16 %v457, %v456
  %v464 = vpack.c.b16 %v459, %v458
  %v465 = vpack.c.b16 %v460, %v460
  %v467 = vsel %vm83, %v461, 0
  %v470 = vsel %vm83, %v462, 0
  %v473 = vsel %vm83, %v463, 0
  %v476 = vsel %vm83, %v464, 0
  %v479 = vsel %vm83, %v465, 0
  %481 = vmatprep.subr.bf16.mxu0 0
  %482 = vmatpush1.bf16.msra.mxu0 %v74
  %483 = vmatprep.subr.bf16.mxu0 0
  %484 = vmatpush1.bf16.msra.mxu0 %v75
  %485 = vmatprep.subr.bf16.mxu0 0
  %486 = vmatpush1.bf16.msra.mxu0 %v76
  %487 = vmatprep.subr.bf16.mxu0 0
  %488 = vmatpush1.bf16.msra.mxu0 %v77
  %489 = vmatprep.subr.bf16.mxu0 0
  %490 = vmatpush1.bf16.msra.mxu0 %v101
  %491 = vmatprep.subr.bf16.mxu0 0
  %492 = vmatpush1.bf16.msra.mxu0 0
  %493 = vmatprep.subr.bf16.mxu0 0
  %494 = vmatpush1.bf16.msra.mxu0 0
  %495 = vmatprep.subr.bf16.mxu0 0
  %496 = vmatpush1.bf16.msra.mxu0 0
  %497 = vmatprep.subr.bf16.mxu0 0
  %498 = vmatpush1.bf16.msra.mxu0 0
  %499 = vmatprep.subr.bf16.mxu0 0
  %500 = vmatpush1.bf16.msra.mxu0 0
  %501 = vmatprep.subr.bf16.mxu0 0
  %502 = vmatpush1.bf16.msra.mxu0 0
  %503 = vmatprep.subr.bf16.mxu0 0
  %504 = vmatpush1.bf16.msra.mxu0 0
  %505 = vmatprep.subr.bf16.mxu0 0
  %506 = vmatpush1.bf16.msra.mxu0 0
  %507 = vmatprep.subr.bf16.mxu0 0
  %508 = vmatpush1.bf16.msra.mxu0 0
  %509 = vmatprep.subr.bf16.mxu0 0
  %510 = vmatpush1.bf16.msra.mxu0 0
  %511 = vmatprep.subr.bf16.mxu0 0
  %512 = vmatpush1.bf16.msra.mxu0 0
  %513 = vmatprep.mubr.bf16.mxu0 0
  %514 = vmatmul.mubr.bf16.gmra.mrb[0].mxu0 %v467
  %v515 = vpop.f32.mrb[0].mxu0
  %v516 = vadd.f32 0.0, %v515
  %v517 = vpop.f32.mrb[0].mxu0
  %v518 = vpop.f32.mrb[0].mxu0
  %v519 = vadd.f32 0.0, %v518
  %v520 = vpop.f32.mrb[0].mxu0
  %521 = vmatprep.mubr.bf16.mxu0 0
  %522 = vmatmul.mubr.bf16.gmra.mrb[0].mxu0 %v470
  %v523 = vpop.f32.mrb[0].mxu0
  %v524 = vadd.f32 0.0, %v523
  %v525 = vpop.f32.mrb[0].mxu0
  %v526 = vpop.f32.mrb[0].mxu0
  %v527 = vadd.f32 0.0, %v526
  %v528 = vpop.f32.mrb[0].mxu0
  %529 = vmatprep.mubr.bf16.mxu0 0
  %530 = vmatmul.mubr.bf16.gmra.mrb[0].mxu0 %v473
  %v531 = vpop.f32.mrb[0].mxu0
  %v532 = vadd.f32 0.0, %v531
  %v533 = vpop.f32.mrb[0].mxu0
  %v534 = vpop.f32.mrb[0].mxu0
  %v535 = vadd.f32 0.0, %v534
  %v536 = vpop.f32.mrb[0].mxu0
  %537 = vmatprep.mubr.bf16.mxu0 0
  %538 = vmatmul.mubr.bf16.gmra.mrb[0].mxu0 %v476
  %v539 = vpop.f32.mrb[0].mxu0
  %v540 = vadd.f32 0.0, %v539
  %v541 = vpop.f32.mrb[0].mxu0
  %v542 = vpop.f32.mrb[0].mxu0
  %v543 = vadd.f32 0.0, %v542
  %v544 = vpop.f32.mrb[0].mxu0
  %545 = vmatprep.mubr.bf16.mxu0 0
  %546 = vmatmul.mubr.bf16.gmra.mrb[0].mxu0 %v479
  %v547 = vpop.f32.mrb[0].mxu0
  %v548 = vadd.f32 0.0, %v547
  %v549 = vpop.f32.mrb[0].mxu0
  %v550 = vpop.f32.mrb[0].mxu0
  %v551 = vpop.f32.mrb[0].mxu0
  %552 = vdwg.mxu0
  %v553 = vmax.f32 %v424, %v516
  %v554 = vmax.f32 %v425, %v519
  %v555 = vmax.f32 %v426, %v524
  %v556 = vmax.f32 %v427, %v527
  %v557 = vmax.f32 %v428, %v532
  %v558 = vmax.f32 %v429, %v535
  %v559 = vmax.f32 %v430, %v540
  %v560 = vmax.f32 %v431, %v543
  %v561 = vmax.f32 %v432, %v548
  %v562 = vld [vmem:[%s2] sm:$0x1]
  %v564 = vlaneseq
  %v565 = vshrl.u32 %v564, 7
  %v566 = vsub.s32 0, %v565
  %v567 = vrot.slane %v562, %v566
  %v569 = vadd.f32 %v553, %v567
  %v570 = vadd.f32 %v554, %v567
  %v571 = vadd.f32 %v555, %v567
  %v572 = vadd.f32 %v556, %v567
  %v573 = vadd.f32 %v557, %v567
  %v574 = vadd.f32 %v558, %v567
  %v575 = vadd.f32 %v559, %v567
  %v576 = vadd.f32 %v560, %v567
  %v577 = vadd.f32 %v561, %v567
  %v578 = vmax.f32 %v569, 0.0
  %v579 = vmax.f32 %v570, 0.0
  %v580 = vmax.f32 %v571, 0.0
  %v581 = vmax.f32 %v572, 0.0
  %v582 = vmax.f32 %v573, 0.0
  %v583 = vmax.f32 %v574, 0.0
  %v584 = vmax.f32 %v575, 0.0
  %v585 = vmax.f32 %v576, 0.0
  %v586 = vmax.f32 %v577, 0.0
  %vm587 = vcmask 130048
  %588 = vst.msk [vmem:[%s3] sm:$0xff] %vm587, %v578
  %589 = vst.msk [vmem:[%s3 + $0x8] sm:$0xff] %vm587, %v579
  %590 = vst.msk [vmem:[%s3 + $0x10] sm:$0xff] %vm587, %v580
  %591 = vst.msk [vmem:[%s3 + $0x18] sm:$0xff] %vm587, %v581
  %592 = vst.msk [vmem:[%s3 + $0x20] sm:$0xff] %vm587, %v582
  %593 = vst.msk [vmem:[%s3 + $0x28] sm:$0xff] %vm587, %v583
  %594 = vst.msk [vmem:[%s3 + $0x30] sm:$0xff] %vm587, %v584
  %595 = vst.msk [vmem:[%s3 + $0x38] sm:$0xff] %vm587, %v585
  %596 = vst.msk [vmem:[%s3 + $0x40] sm:$0xff] %vm587, %v586
  // Predicated region
  $region14: #{cnn_forward.4} parent=0 // pred_check
    _
  $region15: #{cnn_forward.4} parent=0 // pred_check_branch
    %598 = sbr.rel (0) target = $region17
  $region16: #{cnn_forward.4} parent=0 // pred_region
    _
  $region17: #{cnn_forward.4} parent=0 // pred_fallthru
    _
  // Predicated region
  $region18: #{cnn_forward.4} parent=0 // pred_check
    _
  $region19: #{cnn_forward.4} parent=0 // pred_check_branch
    %600 = sbr.rel (0) target = $region21
  $region20: #{cnn_forward.4} parent=0 // pred_region
    _
  $region21: #{cnn_forward.4} parent=0 // pred_fallthru
    _

// kernel: cnn_forward.5
$region0: #{cnn_forward.5}
  #allocation0 [shape = 'u32[]', space=smem, size = 0x4, offset = 0x4, fixed_abs, tag = 'smem constant byte address 0x4 - core index']
  #allocation1 [shape = 'u32[144,128]{1,0:T(1,128)}', space=vmem, size = 0x12000, scoped, tag = 'internal scratch']
  %s0 = inlined_call_operand.vmem [shape: bf16[4,8,144], index: 0, kind: input, shape index: {}]
  %s1 = inlined_call_operand.vmem [shape: bf16[144,32], index: 1, kind: input, shape index: {}]
  %s2 = inlined_call_operand.vmem [shape: f32[1,32], index: 2, kind: input, shape index: {}]
  %s3 = inlined_call_operand.vmem [shape: f32[4,128,8], index: 3, kind: input, shape index: {}]
  %s4 = inlined_call_operand.vmem [shape: f32[4,32,128], index: 4, kind: input, shape index: {}]
  %s5 = inlined_call_operand.vmem [shape: f32[8,128], index: 5, kind: output, shape index: {}]
  %s6 = sld [smem:[#allocation0]]
  $region30: #{cnn_forward.5} parent=0
    _
  %s8 = ssub.s32 1, %s6
  %s9 = scalar_select 0, %s8, %s6
  // Predicated region
  $region2: #{cnn_forward.5} parent=0 // pred_check
    _
  $region3: #{cnn_forward.5} parent=0 // pred_check_branch
    %11 = sbr.rel (0) target = $region5
  $region4: #{cnn_forward.5} parent=0 // pred_region
    _
  $region5: #{cnn_forward.5} parent=0 // pred_fallthru
    _
  // Predicated region
  $region6: #{cnn_forward.5} parent=0 // pred_check
    _
  $region7: #{cnn_forward.5} parent=0 // pred_check_branch
    %13 = sbr.rel (0) target = $region9
  $region8: #{cnn_forward.5} parent=0 // pred_region
    _
  $region9: #{cnn_forward.5} parent=0 // pred_fallthru
    _
  // Predicated region
  $region10: #{cnn_forward.5} parent=0 // pred_check
    _
  $region11: #{cnn_forward.5} parent=0 // pred_check_branch
    %15 = sbr.rel (0) target = $region13
  $region12: #{cnn_forward.5} parent=0 // pred_region
    _
  $region13: #{cnn_forward.5} parent=0 // pred_fallthru
    _
  // Predicated region
  $region14: #{cnn_forward.5} parent=0 // pred_check
    _
  $region15: #{cnn_forward.5} parent=0 // pred_check_branch
    %17 = sbr.rel (0) target = $region17
  $region16: #{cnn_forward.5} parent=0 // pred_region
    _
  $region17: #{cnn_forward.5} parent=0 // pred_fallthru
    _
  // Predicated region
  $region18: #{cnn_forward.5} parent=0 // pred_check
    _
  $region19: #{cnn_forward.5} parent=0 // pred_check_branch
    %19 = sbr.rel (0) target = $region21
  $region20: #{cnn_forward.5} parent=0 // pred_region
    _
  $region21: #{cnn_forward.5} parent=0 // pred_fallthru
    _
  %v21 = vld [vmem:[%s1] sm:$0xf]
  %v22 = vld [vmem:[%s1 + $0x4] sm:$0xf]
  %v23 = vld [vmem:[%s1 + $0x8] sm:$0xf]
  %v24 = vld [vmem:[%s1 + $0xc] sm:$0xf]
  %v25 = vld [vmem:[%s1 + $0x10] sm:$0xf]
  %v26 = vld [vmem:[%s1 + $0x14] sm:$0xf]
  %v27 = vld [vmem:[%s1 + $0x18] sm:$0xf]
  %v28 = vld [vmem:[%s1 + $0x1c] sm:$0xf]
  %v29 = vld [vmem:[%s1 + $0x20] sm:$0xf]
  %v30 = vld [vmem:[%s1 + $0x24] sm:$0xf]
  %v31 = vld [vmem:[%s1 + $0x28] sm:$0xf]
  %v32 = vld [vmem:[%s1 + $0x2c] sm:$0xf]
  %v33 = vld [vmem:[%s1 + $0x30] sm:$0xf]
  %v34 = vld [vmem:[%s1 + $0x34] sm:$0xf]
  %v35 = vld [vmem:[%s1 + $0x38] sm:$0xf]
  %v36 = vld [vmem:[%s1 + $0x3c] sm:$0xf]
  %v37 = vld [vmem:[%s1 + $0x40] sm:$0xf]
  %v38 = vld [vmem:[%s1 + $0x44] sm:$0xf]
  %v39 = vld [vmem:[%s0] sm:$0xff]
  %v41 = vunpack.c.l.b16 %v39
  %v42 = vunpack.c.h.b16 %v39
  %v43 = vpack.c.b16 %v41, %v41
  %v44 = vpack.c.b16 %v42, %v42
  %v64 = vunpack.c.l.b16 %v21
  %v65 = vunpack.c.l.b16 %v22
  %v66 = vunpack.c.l.b16 %v23
  %v67 = vunpack.c.l.b16 %v24
  %v68 = vunpack.c.l.b16 %v25
  %v69 = vunpack.c.l.b16 %v26
  %v70 = vunpack.c.l.b16 %v27
  %v71 = vunpack.c.l.b16 %v28
  %v72 = vunpack.c.l.b16 %v29
  %v73 = vunpack.c.l.b16 %v30
  %v74 = vunpack.c.l.b16 %v31
  %v75 = vunpack.c.l.b16 %v32
  %v76 = vunpack.c.l.b16 %v33
  %v77 = vunpack.c.l.b16 %v34
  %v78 = vunpack.c.l.b16 %v35
  %v79 = vunpack.c.l.b16 %v36
  %v80 = vunpack.c.l.b16 %v37
  %v81 = vunpack.c.l.b16 %v38
  %v82 = vpack.c.b16 %v65, %v64
  %v83 = vpack.c.b16 %v67, %v66
  %v84 = vpack.c.b16 %v69, %v68
  %v85 = vpack.c.b16 %v71, %v70
  %v86 = vpack.c.b16 %v73, %v72
  %v87 = vpack.c.b16 %v75, %v74
  %v88 = vpack.c.b16 %v77, %v76
  %v89 = vpack.c.b16 %v79, %v78
  %v90 = vpack.c.b16 %v81, %v80
  %vm100 = vcmask 130048
  %v102 = vsel %vm100, %v44, 0
  %104 = vmatprep.subr.bf16.mxu0 0
  %105 = vmatpush1.bf16.msra.mxu0 %v82
  %106 = vmatprep.subr.bf16.mxu0 0
  %107 = vmatpush1.bf16.msra.mxu0 %v83
  %108 = vmatprep.subr.bf16.mxu0 0
  %109 = vmatpush1.bf16.msra.mxu0 %v84
  %110 = vmatprep.subr.bf16.mxu0 0
  %111 = vmatpush1.bf16.msra.mxu0 %v85
  %112 = vmatprep.subr.bf16.mxu0 0
  %113 = vmatpush1.bf16.msra.mxu0 %v86
  %114 = vmatprep.subr.bf16.mxu0 0
  %115 = vmatpush1.bf16.msra.mxu0 %v87
  %116 = vmatprep.subr.bf16.mxu0 0
  %117 = vmatpush1.bf16.msra.mxu0 %v88
  %118 = vmatprep.subr.bf16.mxu0 0
  %119 = vmatpush1.bf16.msra.mxu0 %v89
  %120 = vmatprep.subr.bf16.mxu0 0
  %121 = vmatpush1.bf16.msra.mxu0 %v90
  %122 = vmatprep.subr.bf16.mxu0 0
  %123 = vmatpush1.bf16.msra.mxu0 0
  %124 = vmatprep.subr.bf16.mxu0 0
  %125 = vmatpush1.bf16.msra.mxu0 0
  %126 = vmatprep.subr.bf16.mxu0 0
  %127 = vmatpush1.bf16.msra.mxu0 0
  %128 = vmatprep.subr.bf16.mxu0 0
  %129 = vmatpush1.bf16.msra.mxu0 0
  %130 = vmatprep.subr.bf16.mxu0 0
  %131 = vmatpush1.bf16.msra.mxu0 0
  %132 = vmatprep.subr.bf16.mxu0 0
  %133 = vmatpush1.bf16.msra.mxu0 0
  %134 = vmatprep.subr.bf16.mxu0 0
  %135 = vmatpush1.bf16.msra.mxu0 0
  %136 = vmatprep.mubr.bf16.mxu0 %v102
  %137 = vmatmul.mubr.bf16.gmra.mrb[0].mxu0 %v43
  %v138 = vpop.f32.mrb[0].mxu0
  %v139 = vadd.f32 0.0, %v138
  %v140 = vpop.f32.mrb[0].mxu0
  %v141 = vpop.f32.mrb[0].mxu0
  %v142 = vpop.f32.mrb[0].mxu0
  %143 = vdwg.mxu0
  %s144 = scalar_lea.vmem %s0, 8
  %v145 = vld [vmem:[%s144] sm:$0xff]
  %v147 = vunpack.c.l.b16 %v145
  %v148 = vunpack.c.h.b16 %v145
  %v149 = vpack.c.b16 %v147, %v147
  %v150 = vpack.c.b16 %v148, %v148
  %v153 = vsel %vm100, %v150, 0
  %155 = vmatprep.subr.bf16.mxu0 0
  %156 = vmatpush1.bf16.msra.mxu0 %v82
  %157 = vmatprep.subr.bf16.mxu0 0
  %158 = vmatpush1.bf16.msra.mxu0 %v83
  %159 = vmatprep.subr.bf16.mxu0 0
  %160 = vmatpush1.bf16.msra.mxu0 %v84
  %161 = vmatprep.subr.bf16.mxu0 0
  %162 = vmatpush1.bf16.msra.mxu0 %v85
  %163 = vmatprep.subr.bf16.mxu0 0
  %164 = vmatpush1.bf16.msra.mxu0 %v86
  %165 = vmatprep.subr.bf16.mxu0 0
  %166 = vmatpush1.bf16.msra.mxu0 %v87
  %167 = vmatprep.subr.bf16.mxu0 0
  %168 = vmatpush1.bf16.msra.mxu0 %v88
  %169 = vmatprep.subr.bf16.mxu0 0
  %170 = vmatpush1.bf16.msra.mxu0 %v89
  %171 = vmatprep.subr.bf16.mxu0 0
  %172 = vmatpush1.bf16.msra.mxu0 %v90
  %173 = vmatprep.subr.bf16.mxu0 0
  %174 = vmatpush1.bf16.msra.mxu0 0
  %175 = vmatprep.subr.bf16.mxu0 0
  %176 = vmatpush1.bf16.msra.mxu0 0
  %177 = vmatprep.subr.bf16.mxu0 0
  %178 = vmatpush1.bf16.msra.mxu0 0
  %179 = vmatprep.subr.bf16.mxu0 0
  %180 = vmatpush1.bf16.msra.mxu0 0
  %181 = vmatprep.subr.bf16.mxu0 0
  %182 = vmatpush1.bf16.msra.mxu0 0
  %183 = vmatprep.subr.bf16.mxu0 0
  %184 = vmatpush1.bf16.msra.mxu0 0
  %185 = vmatprep.subr.bf16.mxu0 0
  %186 = vmatpush1.bf16.msra.mxu0 0
  %187 = vmatprep.mubr.bf16.mxu0 %v153
  %188 = vmatmul.mubr.bf16.gmra.mrb[0].mxu0 %v149
  %v189 = vpop.f32.mrb[0].mxu0
  %v190 = vadd.f32 0.0, %v189
  %v191 = vpop.f32.mrb[0].mxu0
  %v192 = vpop.f32.mrb[0].mxu0
  %v193 = vpop.f32.mrb[0].mxu0
  %194 = vdwg.mxu0
  %v195 = vmax.f32 %v139, %v190
  %s196 = scalar_lea.vmem %s0, 16
  %v197 = vld [vmem:[%s196] sm:$0xff]
  %v199 = vunpack.c.l.b16 %v197
  %v200 = vunpack.c.h.b16 %v197
  %v201 = vpack.c.b16 %v199, %v199
  %v202 = vpack.c.b16 %v200, %v200
  %v205 = vsel %vm100, %v202, 0
  %207 = vmatprep.subr.bf16.mxu0 0
  %208 = vmatpush1.bf16.msra.mxu0 %v82
  %209 = vmatprep.subr.bf16.mxu0 0
  %210 = vmatpush1.bf16.msra.mxu0 %v83
  %211 = vmatprep.subr.bf16.mxu0 0
  %212 = vmatpush1.bf16.msra.mxu0 %v84
  %213 = vmatprep.subr.bf16.mxu0 0
  %214 = vmatpush1.bf16.msra.mxu0 %v85
  %215 = vmatprep.subr.bf16.mxu0 0
  %216 = vmatpush1.bf16.msra.mxu0 %v86
  %217 = vmatprep.subr.bf16.mxu0 0
  %218 = vmatpush1.bf16.msra.mxu0 %v87
  %219 = vmatprep.subr.bf16.mxu0 0
  %220 = vmatpush1.bf16.msra.mxu0 %v88
  %221 = vmatprep.subr.bf16.mxu0 0
  %222 = vmatpush1.bf16.msra.mxu0 %v89
  %223 = vmatprep.subr.bf16.mxu0 0
  %224 = vmatpush1.bf16.msra.mxu0 %v90
  %225 = vmatprep.subr.bf16.mxu0 0
  %226 = vmatpush1.bf16.msra.mxu0 0
  %227 = vmatprep.subr.bf16.mxu0 0
  %228 = vmatpush1.bf16.msra.mxu0 0
  %229 = vmatprep.subr.bf16.mxu0 0
  %230 = vmatpush1.bf16.msra.mxu0 0
  %231 = vmatprep.subr.bf16.mxu0 0
  %232 = vmatpush1.bf16.msra.mxu0 0
  %233 = vmatprep.subr.bf16.mxu0 0
  %234 = vmatpush1.bf16.msra.mxu0 0
  %235 = vmatprep.subr.bf16.mxu0 0
  %236 = vmatpush1.bf16.msra.mxu0 0
  %237 = vmatprep.subr.bf16.mxu0 0
  %238 = vmatpush1.bf16.msra.mxu0 0
  %239 = vmatprep.mubr.bf16.mxu0 %v205
  %240 = vmatmul.mubr.bf16.gmra.mrb[0].mxu0 %v201
  %v241 = vpop.f32.mrb[0].mxu0
  %v242 = vadd.f32 0.0, %v241
  %v243 = vpop.f32.mrb[0].mxu0
  %v244 = vpop.f32.mrb[0].mxu0
  %v245 = vpop.f32.mrb[0].mxu0
  %246 = vdwg.mxu0
  %v247 = vmax.f32 %v195, %v242
  %s248 = scalar_lea.vmem %s0, 24
  %v249 = vld [vmem:[%s248] sm:$0xff]
  %v251 = vunpack.c.l.b16 %v249
  %v252 = vunpack.c.h.b16 %v249
  %v253 = vpack.c.b16 %v251, %v251
  %v254 = vpack.c.b16 %v252, %v252
  %v257 = vsel %vm100, %v254, 0
  %259 = vmatprep.subr.bf16.mxu0 0
  %260 = vmatpush1.bf16.msra.mxu0 %v82
  %261 = vmatprep.subr.bf16.mxu0 0
  %262 = vmatpush1.bf16.msra.mxu0 %v83
  %263 = vmatprep.subr.bf16.mxu0 0
  %264 = vmatpush1.bf16.msra.mxu0 %v84
  %265 = vmatprep.subr.bf16.mxu0 0
  %266 = vmatpush1.bf16.msra.mxu0 %v85
  %267 = vmatprep.subr.bf16.mxu0 0
  %268 = vmatpush1.bf16.msra.mxu0 %v86
  %269 = vmatprep.subr.bf16.mxu0 0
  %270 = vmatpush1.bf16.msra.mxu0 %v87
  %271 = vmatprep.subr.bf16.mxu0 0
  %272 = vmatpush1.bf16.msra.mxu0 %v88
  %273 = vmatprep.subr.bf16.mxu0 0
  %274 = vmatpush1.bf16.msra.mxu0 %v89
  %275 = vmatprep.subr.bf16.mxu0 0
  %276 = vmatpush1.bf16.msra.mxu0 %v90
  %277 = vmatprep.subr.bf16.mxu0 0
  %278 = vmatpush1.bf16.msra.mxu0 0
  %279 = vmatprep.subr.bf16.mxu0 0
  %280 = vmatpush1.bf16.msra.mxu0 0
  %281 = vmatprep.subr.bf16.mxu0 0
  %282 = vmatpush1.bf16.msra.mxu0 0
  %283 = vmatprep.subr.bf16.mxu0 0
  %284 = vmatpush1.bf16.msra.mxu0 0
  %285 = vmatprep.subr.bf16.mxu0 0
  %286 = vmatpush1.bf16.msra.mxu0 0
  %287 = vmatprep.subr.bf16.mxu0 0
  %288 = vmatpush1.bf16.msra.mxu0 0
  %289 = vmatprep.subr.bf16.mxu0 0
  %290 = vmatpush1.bf16.msra.mxu0 0
  %291 = vmatprep.mubr.bf16.mxu0 %v257
  %292 = vmatmul.mubr.bf16.gmra.mrb[0].mxu0 %v253
  %v293 = vpop.f32.mrb[0].mxu0
  %v294 = vadd.f32 0.0, %v293
  %v295 = vpop.f32.mrb[0].mxu0
  %v296 = vpop.f32.mrb[0].mxu0
  %v297 = vpop.f32.mrb[0].mxu0
  %298 = vdwg.mxu0
  %v299 = vmax.f32 %v247, %v294
  %v300 = vld [vmem:[%s2] sm:$0x1]
  %v302 = vlaneseq
  %v303 = vshrl.u32 %v302, 7
  %v304 = vsub.s32 0, %v303
  %v305 = vrot.slane %v300, %v304
  %v307 = vadd.f32 %v299, %v305
  %v308 = vmax.f32 %v307, 0.0
  %v309 = vld [vmem:[%s3] sm:$0xff]
  %v310 = vld [vmem:[%s3 + $0x8] sm:$0xff]
  %v311 = vld [vmem:[%s3 + $0x10] sm:$0xff]
  %v312 = vld [vmem:[%s3 + $0x18] sm:$0xff]
  %v313 = vld [vmem:[%s3 + $0x20] sm:$0xff]
  %v314 = vld [vmem:[%s3 + $0x28] sm:$0xff]
  %v315 = vld [vmem:[%s3 + $0x30] sm:$0xff]
  %v316 = vld [vmem:[%s3 + $0x38] sm:$0xff]
  %v317 = vld [vmem:[%s3 + $0x40] sm:$0xff]
  %v318 = vld [vmem:[%s3 + $0x48] sm:$0xff]
  %v319 = vld [vmem:[%s3 + $0x50] sm:$0xff]
  %v320 = vld [vmem:[%s3 + $0x58] sm:$0xff]
  %v321 = vld [vmem:[%s3 + $0x60] sm:$0xff]
  %v322 = vld [vmem:[%s3 + $0x68] sm:$0xff]
  %v323 = vld [vmem:[%s3 + $0x70] sm:$0xff]
  %v324 = vld [vmem:[%s3 + $0x78] sm:$0xff]
  %vm325 = vcmask 64512
  %v327 = vsel %vm325, %v309, 0
  %v330 = vsel %vm325, %v310, 0
  %v333 = vsel %vm325, %v311, 0
  %v336 = vsel %vm325, %v312, 0
  %v339 = vsel %vm325, %v313, 0
  %v342 = vsel %vm325, %v314, 0
  %v345 = vsel %vm325, %v315, 0
  %v348 = vsel %vm325, %v316, 0
  %v351 = vsel %vm325, %v317, 0
  %v354 = vsel %vm325, %v318, 0
  %v357 = vsel %vm325, %v319, 0
  %v360 = vsel %vm325, %v320, 0
  %v363 = vsel %vm325, %v321, 0
  %v366 = vsel %vm325, %v322, 0
  %v369 = vsel %vm325, %v323, 0
  %v372 = vsel %vm325, %v324, 0
  %374 = vmatprep.subr.mxu0 0.0
  %375 = vmatpush1.msra.mxu0 %v308
  %376 = vmatprep.subr.mxu0 0.0
  %377 = vmatpush1.msra.mxu0 0.0
  %378 = vmatprep.subr.mxu0 0.0
  %379 = vmatpush1.msra.mxu0 0.0
  %380 = vmatprep.subr.mxu0 0.0
  %381 = vmatpush1.msra.mxu0 0.0
  %382 = vmatprep.subr.mxu0 0.0
  %383 = vmatpush1.msra.mxu0 0.0
  %384 = vmatprep.subr.mxu0 0.0
  %385 = vmatpush1.msra.mxu0 0.0
  %386 = vmatprep.subr.mxu0 0.0
  %387 = vmatpush1.msra.mxu0 0.0
  %388 = vmatprep.subr.mxu0 0.0
  %389 = vmatpush1.msra.mxu0 0.0
  %390 = vmatprep.subr.mxu0 0.0
  %391 = vmatpush1.msra.mxu0 0.0
  %392 = vmatprep.subr.mxu0 0.0
  %393 = vmatpush1.msra.mxu0 0.0
  %394 = vmatprep.subr.mxu0 0.0
  %395 = vmatpush1.msra.mxu0 0.0
  %396 = vmatprep.subr.mxu0 0.0
  %397 = vmatpush1.msra.mxu0 0.0
  %398 = vmatprep.subr.mxu0 0.0
  %399 = vmatpush1.msra.mxu0 0.0
  %400 = vmatprep.subr.mxu0 0.0
  %401 = vmatpush1.msra.mxu0 0.0
  %402 = vmatprep.subr.mxu0 0.0
  %403 = vmatpush1.msra.mxu0 0.0
  %404 = vmatprep.subr.mxu0 0.0
  %405 = vmatpush1.msra.mxu0 0.0
  %406 = vmatprep.subr.mxu0 0.0
  %407 = vmatpush1.msra.mxu0 0.0
  %408 = vmatprep.subr.mxu0 0.0
  %409 = vmatpush1.msra.mxu0 0.0
  %410 = vmatprep.subr.mxu0 0.0
  %411 = vmatpush1.msra.mxu0 0.0
  %412 = vmatprep.subr.mxu0 0.0
  %413 = vmatpush1.msra.mxu0 0.0
  %414 = vmatprep.subr.mxu0 0.0
  %415 = vmatpush1.msra.mxu0 0.0
  %416 = vmatprep.subr.mxu0 0.0
  %417 = vmatpush1.msra.mxu0 0.0
  %418 = vmatprep.subr.mxu0 0.0
  %419 = vmatpush1.msra.mxu0 0.0
  %420 = vmatprep.subr.mxu0 0.0
  %421 = vmatpush1.msra.mxu0 0.0
  %422 = vmatprep.subr.mxu0 0.0
  %423 = vmatpush1.msra.mxu0 0.0
  %424 = vmatprep.subr.mxu0 0.0
  %425 = vmatpush1.msra.mxu0 0.0
  %426 = vmatprep.subr.mxu0 0.0
  %427 = vmatpush1.msra.mxu0 0.0
  %428 = vmatprep.subr.mxu0 0.0
  %429 = vmatpush1.msra.mxu0 0.0
  %430 = vmatprep.subr.mxu0 0.0
  %431 = vmatpush1.msra.mxu0 0.0
  %432 = vmatprep.subr.mxu0 0.0
  %433 = vmatpush1.msra.mxu0 0.0
  %434 = vmatprep.subr.mxu0 0.0
  %435 = vmatpush1.msra.mxu0 0.0
  %436 = vmatprep.subr.mxu0 0.0
  %437 = vmatpush1.msra.mxu0 0.0
  %438 = vmatprep.mubr.f32.mxu0 0.0
  %439 = vmatmul.mubr.f32.gmra.mrb[0].mxu0 %v327
  %v440 = vpop.f32.mrb[0].mxu0
  %v441 = vadd.f32 0.0, %v440
  %v442 = vpop.f32.mrb[0].mxu0
  %443 = vmatprep.mubr.f32.mxu0 0.0
  %444 = vmatmul.mubr.f32.gmra.mrb[0].mxu0 %v330
  %v445 = vpop.f32.mrb[0].mxu0
  %v446 = vadd.f32 0.0, %v445
  %v447 = vpop.f32.mrb[0].mxu0
  %448 = vmatprep.mubr.f32.mxu0 0.0
  %449 = vmatmul.mubr.f32.gmra.mrb[0].mxu0 %v333
  %v450 = vpop.f32.mrb[0].mxu0
  %v451 = vadd.f32 0.0, %v450
  %v452 = vpop.f32.mrb[0].mxu0
  %453 = vmatprep.mubr.f32.mxu0 0.0
  %454 = vmatmul.mubr.f32.gmra.mrb[0].mxu0 %v336
  %v455 = vpop.f32.mrb[0].mxu0
  %v456 = vadd.f32 0.0, %v455
  %v457 = vpop.f32.mrb[0].mxu0
  %458 = vmatprep.mubr.f32.mxu0 0.0
  %459 = vmatmul.mubr.f32.gmra.mrb[0].mxu0 %v339
  %v460 = vpop.f32.mrb[0].mxu0
  %v461 = vadd.f32 0.0, %v460
  %v462 = vpop.f32.mrb[0].mxu0
  %463 = vmatprep.mubr.f32.mxu0 0.0
  %464 = vmatmul.mubr.f32.gmra.mrb[0].mxu0 %v342
  %v465 = vpop.f32.mrb[0].mxu0
  %v466 = vadd.f32 0.0, %v465
  %v467 = vpop.f32.mrb[0].mxu0
  %468 = vmatprep.mubr.f32.mxu0 0.0
  %469 = vmatmul.mubr.f32.gmra.mrb[0].mxu0 %v345
  %v470 = vpop.f32.mrb[0].mxu0
  %v471 = vadd.f32 0.0, %v470
  %v472 = vpop.f32.mrb[0].mxu0
  %473 = vmatprep.mubr.f32.mxu0 0.0
  %474 = vmatmul.mubr.f32.gmra.mrb[0].mxu0 %v348
  %v475 = vpop.f32.mrb[0].mxu0
  %v476 = vadd.f32 0.0, %v475
  %v477 = vpop.f32.mrb[0].mxu0
  %478 = vmatprep.mubr.f32.mxu0 0.0
  %479 = vmatmul.mubr.f32.gmra.mrb[0].mxu0 %v351
  %v480 = vpop.f32.mrb[0].mxu0
  %v481 = vadd.f32 0.0, %v480
  %v482 = vpop.f32.mrb[0].mxu0
  %483 = vmatprep.mubr.f32.mxu0 0.0
  %484 = vmatmul.mubr.f32.gmra.mrb[0].mxu0 %v354
  %v485 = vpop.f32.mrb[0].mxu0
  %v486 = vadd.f32 0.0, %v485
  %v487 = vpop.f32.mrb[0].mxu0
  %488 = vmatprep.mubr.f32.mxu0 0.0
  %489 = vmatmul.mubr.f32.gmra.mrb[0].mxu0 %v357
  %v490 = vpop.f32.mrb[0].mxu0
  %v491 = vadd.f32 0.0, %v490
  %v492 = vpop.f32.mrb[0].mxu0
  %493 = vmatprep.mubr.f32.mxu0 0.0
  %494 = vmatmul.mubr.f32.gmra.mrb[0].mxu0 %v360
  %v495 = vpop.f32.mrb[0].mxu0
  %v496 = vadd.f32 0.0, %v495
  %v497 = vpop.f32.mrb[0].mxu0
  %498 = vmatprep.mubr.f32.mxu0 0.0
  %499 = vmatmul.mubr.f32.gmra.mrb[0].mxu0 %v363
  %v500 = vpop.f32.mrb[0].mxu0
  %v501 = vadd.f32 0.0, %v500
  %v502 = vpop.f32.mrb[0].mxu0
  %503 = vmatprep.mubr.f32.mxu0 0.0
  %504 = vmatmul.mubr.f32.gmra.mrb[0].mxu0 %v366
  %v505 = vpop.f32.mrb[0].mxu0
  %v506 = vadd.f32 0.0, %v505
  %v507 = vpop.f32.mrb[0].mxu0
  %508 = vmatprep.mubr.f32.mxu0 0.0
  %509 = vmatmul.mubr.f32.gmra.mrb[0].mxu0 %v369
  %v510 = vpop.f32.mrb[0].mxu0
  %v511 = vadd.f32 0.0, %v510
  %v512 = vpop.f32.mrb[0].mxu0
  %513 = vmatprep.mubr.f32.mxu0 0.0
  %514 = vmatmul.mubr.f32.gmra.mrb[0].mxu0 %v372
  %v515 = vpop.f32.mrb[0].mxu0
  %v516 = vadd.f32 0.0, %v515
  %v517 = vpop.f32.mrb[0].mxu0
  %518 = vdwg.mxu0
  %v519 = vld [vmem:[%s4] sm:$0xff]
  %v520 = vld [vmem:[%s4 + $0x8] sm:$0xff]
  %v521 = vld [vmem:[%s4 + $0x10] sm:$0xff]
  %v522 = vld [vmem:[%s4 + $0x18] sm:$0xff]
  %s523 = scalar_lea.vmem %s3, 128
  %v524 = vld [vmem:[%s523] sm:$0xff]
  %v525 = vld [vmem:[%s523 + $0x8] sm:$0xff]
  %v526 = vld [vmem:[%s523 + $0x10] sm:$0xff]
  %v527 = vld [vmem:[%s523 + $0x18] sm:$0xff]
  %v528 = vld [vmem:[%s523 + $0x20] sm:$0xff]
  %v529 = vld [vmem:[%s523 + $0x28] sm:$0xff]
  %v530 = vld [vmem:[%s523 + $0x30] sm:$0xff]
  %v531 = vld [vmem:[%s523 + $0x38] sm:$0xff]
  %v532 = vld [vmem:[%s523 + $0x40] sm:$0xff]
  %v533 = vld [vmem:[%s523 + $0x48] sm:$0xff]
  %v534 = vld [vmem:[%s523 + $0x50] sm:$0xff]
  %v535 = vld [vmem:[%s523 + $0x58] sm:$0xff]
  %v536 = vld [vmem:[%s523 + $0x60] sm:$0xff]
  %v537 = vld [vmem:[%s523 + $0x68] sm:$0xff]
  %v538 = vld [vmem:[%s523 + $0x70] sm:$0xff]
  %v539 = vld [vmem:[%s523 + $0x78] sm:$0xff]
  %v541 = vsel %vm325, %v524, 0
  %v544 = vsel %vm325, %v525, 0
  %v547 = vsel %vm325, %v526, 0
  %v550 = vsel %vm325, %v527, 0
  %v553 = vsel %vm325, %v528, 0
  %v556 = vsel %vm325, %v529, 0
  %v559 = vsel %vm325, %v530, 0
  %v562 = vsel %vm325, %v531, 0
  %v565 = vsel %vm325, %v532, 0
  %v568 = vsel %vm325, %v533, 0
  %v571 = vsel %vm325, %v534, 0
  %v574 = vsel %vm325, %v535, 0
  %v577 = vsel %vm325, %v536, 0
  %v580 = vsel %vm325, %v537, 0
  %v583 = vsel %vm325, %v538, 0
  %v586 = vsel %vm325, %v539, 0
  %588 = vmatprep.subr.mxu0 0.0
  %589 = vmatpush1.msra.mxu0 %v308
  %590 = vmatprep.subr.mxu0 0.0
  %591 = vmatpush1.msra.mxu0 0.0
  %592 = vmatprep.subr.mxu0 0.0
  %593 = vmatpush1.msra.mxu0 0.0
  %594 = vmatprep.subr.mxu0 0.0
  %595 = vmatpush1.msra.mxu0 0.0
  %596 = vmatprep.subr.mxu0 0.0
  %597 = vmatpush1.msra.mxu0 0.0
  %598 = vmatprep.subr.mxu0 0.0
  %599 = vmatpush1.msra.mxu0 0.0
  %600 = vmatprep.subr.mxu0 0.0
  %601 = vmatpush1.msra.mxu0 0.0
  %602 = vmatprep.subr.mxu0 0.0
  %603 = vmatpush1.msra.mxu0 0.0
  %604 = vmatprep.subr.mxu0 0.0
  %605 = vmatpush1.msra.mxu0 0.0
  %606 = vmatprep.subr.mxu0 0.0
  %607 = vmatpush1.msra.mxu0 0.0
  %608 = vmatprep.subr.mxu0 0.0
  %609 = vmatpush1.msra.mxu0 0.0
  %610 = vmatprep.subr.mxu0 0.0
  %611 = vmatpush1.msra.mxu0 0.0
  %612 = vmatprep.subr.mxu0 0.0
  %613 = vmatpush1.msra.mxu0 0.0
  %614 = vmatprep.subr.mxu0 0.0
  %615 = vmatpush1.msra.mxu0 0.0
  %616 = vmatprep.subr.mxu0 0.0
  %617 = vmatpush1.msra.mxu0 0.0
  %618 = vmatprep.subr.mxu0 0.0
  %619 = vmatpush1.msra.mxu0 0.0
  %620 = vmatprep.subr.mxu0 0.0
  %621 = vmatpush1.msra.mxu0 0.0
  %622 = vmatprep.subr.mxu0 0.0
  %623 = vmatpush1.msra.mxu0 0.0
  %624 = vmatprep.subr.mxu0 0.0
  %625 = vmatpush1.msra.mxu0 0.0
  %626 = vmatprep.subr.mxu0 0.0
  %627 = vmatpush1.msra.mxu0 0.0
  %628 = vmatprep.subr.mxu0 0.0
  %629 = vmatpush1.msra.mxu0 0.0
  %630 = vmatprep.subr.mxu0 0.0
  %631 = vmatpush1.msra.mxu0 0.0
  %632 = vmatprep.subr.mxu0 0.0
  %633 = vmatpush1.msra.mxu0 0.0
  %634 = vmatprep.subr.mxu0 0.0
  %635 = vmatpush1.msra.mxu0 0.0
  %636 = vmatprep.subr.mxu0 0.0
  %637 = vmatpush1.msra.mxu0 0.0
  %638 = vmatprep.subr.mxu0 0.0
  %639 = vmatpush1.msra.mxu0 0.0
  %640 = vmatprep.subr.mxu0 0.0
  %641 = vmatpush1.msra.mxu0 0.0
  %642 = vmatprep.subr.mxu0 0.0
  %643 = vmatpush1.msra.mxu0 0.0
  %644 = vmatprep.subr.mxu0 0.0
  %645 = vmatpush1.msra.mxu0 0.0
  %646 = vmatprep.subr.mxu0 0.0
  %647 = vmatpush1.msra.mxu0 0.0
  %648 = vmatprep.subr.mxu0 0.0
  %649 = vmatpush1.msra.mxu0 0.0
  %650 = vmatprep.subr.mxu0 0.0
  %651 = vmatpush1.msra.mxu0 0.0
  %652 = vmatprep.mubr.f32.mxu0 0.0
  %653 = vmatmul.mubr.f32.gmra.mrb[0].mxu0 %v541
  %v654 = vpop.f32.mrb[0].mxu0
  %v655 = vadd.f32 0.0, %v654
  %v656 = vpop.f32.mrb[0].mxu0
  %657 = vmatprep.mubr.f32.mxu0 0.0
  %658 = vmatmul.mubr.f32.gmra.mrb[0].mxu0 %v544
  %v659 = vpop.f32.mrb[0].mxu0
  %v660 = vadd.f32 0.0, %v659
  %v661 = vpop.f32.mrb[0].mxu0
  %662 = vmatprep.mubr.f32.mxu0 0.0
  %663 = vmatmul.mubr.f32.gmra.mrb[0].mxu0 %v547
  %v664 = vpop.f32.mrb[0].mxu0
  %v665 = vadd.f32 0.0, %v664
  %v666 = vpop.f32.mrb[0].mxu0
  %667 = vmatprep.mubr.f32.mxu0 0.0
  %668 = vmatmul.mubr.f32.gmra.mrb[0].mxu0 %v550
  %v669 = vpop.f32.mrb[0].mxu0
  %v670 = vadd.f32 0.0, %v669
  %v671 = vpop.f32.mrb[0].mxu0
  %672 = vmatprep.mubr.f32.mxu0 0.0
  %673 = vmatmul.mubr.f32.gmra.mrb[0].mxu0 %v553
  %v674 = vpop.f32.mrb[0].mxu0
  %v675 = vadd.f32 0.0, %v674
  %v676 = vpop.f32.mrb[0].mxu0
  %677 = vmatprep.mubr.f32.mxu0 0.0
  %678 = vmatmul.mubr.f32.gmra.mrb[0].mxu0 %v556
  %v679 = vpop.f32.mrb[0].mxu0
  %v680 = vadd.f32 0.0, %v679
  %v681 = vpop.f32.mrb[0].mxu0
  %682 = vmatprep.mubr.f32.mxu0 0.0
  %683 = vmatmul.mubr.f32.gmra.mrb[0].mxu0 %v559
  %v684 = vpop.f32.mrb[0].mxu0
  %v685 = vadd.f32 0.0, %v684
  %v686 = vpop.f32.mrb[0].mxu0
  %687 = vmatprep.mubr.f32.mxu0 0.0
  %688 = vmatmul.mubr.f32.gmra.mrb[0].mxu0 %v562
  %v689 = vpop.f32.mrb[0].mxu0
  %v690 = vadd.f32 0.0, %v689
  %v691 = vpop.f32.mrb[0].mxu0
  %692 = vmatprep.mubr.f32.mxu0 0.0
  %693 = vmatmul.mubr.f32.gmra.mrb[0].mxu0 %v565
  %v694 = vpop.f32.mrb[0].mxu0
  %v695 = vadd.f32 0.0, %v694
  %v696 = vpop.f32.mrb[0].mxu0
  %697 = vmatprep.mubr.f32.mxu0 0.0
  %698 = vmatmul.mubr.f32.gmra.mrb[0].mxu0 %v568
  %v699 = vpop.f32.mrb[0].mxu0
  %v700 = vadd.f32 0.0, %v699
  %v701 = vpop.f32.mrb[0].mxu0
  %702 = vmatprep.mubr.f32.mxu0 0.0
  %703 = vmatmul.mubr.f32.gmra.mrb[0].mxu0 %v571
  %v704 = vpop.f32.mrb[0].mxu0
  %v705 = vadd.f32 0.0, %v704
  %v706 = vpop.f32.mrb[0].mxu0
  %707 = vmatprep.mubr.f32.mxu0 0.0
  %708 = vmatmul.mubr.f32.gmra.mrb[0].mxu0 %v574
  %v709 = vpop.f32.mrb[0].mxu0
  %v710 = vadd.f32 0.0, %v709
  %v711 = vpop.f32.mrb[0].mxu0
  %712 = vmatprep.mubr.f32.mxu0 0.0
  %713 = vmatmul.mubr.f32.gmra.mrb[0].mxu0 %v577
  %v714 = vpop.f32.mrb[0].mxu0
  %v715 = vadd.f32 0.0, %v714
  %v716 = vpop.f32.mrb[0].mxu0
  %717 = vmatprep.mubr.f32.mxu0 0.0
  %718 = vmatmul.mubr.f32.gmra.mrb[0].mxu0 %v580
  %v719 = vpop.f32.mrb[0].mxu0
  %v720 = vadd.f32 0.0, %v719
  %v721 = vpop.f32.mrb[0].mxu0
  %722 = vmatprep.mubr.f32.mxu0 0.0
  %723 = vmatmul.mubr.f32.gmra.mrb[0].mxu0 %v583
  %v724 = vpop.f32.mrb[0].mxu0
  %v725 = vadd.f32 0.0, %v724
  %v726 = vpop.f32.mrb[0].mxu0
  %727 = vmatprep.mubr.f32.mxu0 0.0
  %728 = vmatmul.mubr.f32.gmra.mrb[0].mxu0 %v586
  %v729 = vpop.f32.mrb[0].mxu0
  %v730 = vadd.f32 0.0, %v729
  %v731 = vpop.f32.mrb[0].mxu0
  %732 = vdwg.mxu0
  %s733 = scalar_lea.vmem %s4, 32
  %v734 = vld [vmem:[%s733] sm:$0xff]
  %v735 = vld [vmem:[%s733 + $0x8] sm:$0xff]
  %v736 = vld [vmem:[%s733 + $0x10] sm:$0xff]
  %v737 = vld [vmem:[%s733 + $0x18] sm:$0xff]
  %vm738 = vcmask 261120
  %v740 = vsel %vm738, %v655, 0
  %v743 = vsel %vm738, %v660, 0
  %v746 = vsel %vm738, %v665, 0
  %v749 = vsel %vm738, %v670, 0
  %v752 = vsel %vm738, %v675, 0
  %v755 = vsel %vm738, %v680, 0
  %v758 = vsel %vm738, %v685, 0
  %v761 = vsel %vm738, %v690, 0
  %v764 = vsel %vm738, %v695, 0
  %v767 = vsel %vm738, %v700, 0
  %v770 = vsel %vm738, %v705, 0
  %v773 = vsel %vm738, %v710, 0
  %v776 = vsel %vm738, %v715, 0
  %v779 = vsel %vm738, %v720, 0
  %v782 = vsel %vm738, %v725, 0
  %v785 = vsel %vm738, %v730, 0
  %787 = vmatprep.subr.mxu0 0.0
  %788 = vmatpush1.msra.mxu0 %v734
  %789 = vmatprep.subr.mxu0 0.0
  %790 = vmatpush1.msra.mxu0 %v735
  %791 = vmatprep.subr.mxu0 0.0
  %792 = vmatpush1.msra.mxu0 %v736
  %793 = vmatprep.subr.mxu0 0.0
  %794 = vmatpush1.msra.mxu0 %v737
  %795 = vmatprep.subr.mxu0 0.0
  %796 = vmatpush1.msra.mxu0 0.0
  %797 = vmatprep.subr.mxu0 0.0
  %798 = vmatpush1.msra.mxu0 0.0
  %799 = vmatprep.subr.mxu0 0.0
  %800 = vmatpush1.msra.mxu0 0.0
  %801 = vmatprep.subr.mxu0 0.0
  %802 = vmatpush1.msra.mxu0 0.0
  %803 = vmatprep.subr.mxu0 0.0
  %804 = vmatpush1.msra.mxu0 0.0
  %805 = vmatprep.subr.mxu0 0.0
  %806 = vmatpush1.msra.mxu0 0.0
  %807 = vmatprep.subr.mxu0 0.0
  %808 = vmatpush1.msra.mxu0 0.0
  %809 = vmatprep.subr.mxu0 0.0
  %810 = vmatpush1.msra.mxu0 0.0
  %811 = vmatprep.subr.mxu0 0.0
  %812 = vmatpush1.msra.mxu0 0.0
  %813 = vmatprep.subr.mxu0 0.0
  %814 = vmatpush1.msra.mxu0 0.0
  %815 = vmatprep.subr.mxu0 0.0
  %816 = vmatpush1.msra.mxu0 0.0
  %817 = vmatprep.subr.mxu0 0.0
  %818 = vmatpush1.msra.mxu0 0.0
  %819 = vmatprep.subr.mxu0 0.0
  %820 = vmatpush1.msra.mxu0 0.0
  %821 = vmatprep.subr.mxu0 0.0
  %822 = vmatpush1.msra.mxu0 0.0
  %823 = vmatprep.subr.mxu0 0.0
  %824 = vmatpush1.msra.mxu0 0.0
  %825 = vmatprep.subr.mxu0 0.0
  %826 = vmatpush1.msra.mxu0 0.0
  %827 = vmatprep.subr.mxu0 0.0
  %828 = vmatpush1.msra.mxu0 0.0
  %829 = vmatprep.subr.mxu0 0.0
  %830 = vmatpush1.msra.mxu0 0.0
  %831 = vmatprep.subr.mxu0 0.0
  %832 = vmatpush1.msra.mxu0 0.0
  %833 = vmatprep.subr.mxu0 0.0
  %834 = vmatpush1.msra.mxu0 0.0
  %835 = vmatprep.subr.mxu0 0.0
  %836 = vmatpush1.msra.mxu0 0.0
  %837 = vmatprep.subr.mxu0 0.0
  %838 = vmatpush1.msra.mxu0 0.0
  %839 = vmatprep.subr.mxu0 0.0
  %840 = vmatpush1.msra.mxu0 0.0
  %841 = vmatprep.subr.mxu0 0.0
  %842 = vmatpush1.msra.mxu0 0.0
  %843 = vmatprep.subr.mxu0 0.0
  %844 = vmatpush1.msra.mxu0 0.0
  %845 = vmatprep.subr.mxu0 0.0
  %846 = vmatpush1.msra.mxu0 0.0
  %847 = vmatprep.subr.mxu0 0.0
  %848 = vmatpush1.msra.mxu0 0.0
  %849 = vmatprep.subr.mxu0 0.0
  %850 = vmatpush1.msra.mxu0 0.0
  %851 = vmatprep.mubr.f32.mxu0 0.0
  %852 = vmatmul.mubr.f32.gmra.mrb[0].mxu0 %v740
  %v853 = vpop.f32.mrb[0].mxu0
  %v854 = vadd.f32 0.0, %v853
  %v855 = vpop.f32.mrb[0].mxu0
  %856 = vmatprep.mubr.f32.mxu0 0.0
  %857 = vmatmul.mubr.f32.gmra.mrb[0].mxu0 %v743
  %v858 = vpop.f32.mrb[0].mxu0
  %v859 = vadd.f32 0.0, %v858
  %v860 = vpop.f32.mrb[0].mxu0
  %861 = vmatprep.mubr.f32.mxu0 0.0
  %862 = vmatmul.mubr.f32.gmra.mrb[0].mxu0 %v746
  %v863 = vpop.f32.mrb[0].mxu0
  %v864 = vadd.f32 0.0, %v863
  %v865 = vpop.f32.mrb[0].mxu0
  %866 = vmatprep.mubr.f32.mxu0 0.0
  %867 = vmatmul.mubr.f32.gmra.mrb[0].mxu0 %v749
  %v868 = vpop.f32.mrb[0].mxu0
  %v869 = vadd.f32 0.0, %v868
  %v870 = vpop.f32.mrb[0].mxu0
  %871 = vmatprep.mubr.f32.mxu0 0.0
  %872 = vmatmul.mubr.f32.gmra.mrb[0].mxu0 %v752
  %v873 = vpop.f32.mrb[0].mxu0
  %v874 = vadd.f32 0.0, %v873
  %v875 = vpop.f32.mrb[0].mxu0
  %876 = vmatprep.mubr.f32.mxu0 0.0
  %877 = vmatmul.mubr.f32.gmra.mrb[0].mxu0 %v755
  %v878 = vpop.f32.mrb[0].mxu0
  %v879 = vadd.f32 0.0, %v878
  %v880 = vpop.f32.mrb[0].mxu0
  %881 = vmatprep.mubr.f32.mxu0 0.0
  %882 = vmatmul.mubr.f32.gmra.mrb[0].mxu0 %v758
  %v883 = vpop.f32.mrb[0].mxu0
  %v884 = vadd.f32 0.0, %v883
  %v885 = vpop.f32.mrb[0].mxu0
  %886 = vmatprep.mubr.f32.mxu0 0.0
  %887 = vmatmul.mubr.f32.gmra.mrb[0].mxu0 %v761
  %v888 = vpop.f32.mrb[0].mxu0
  %v889 = vadd.f32 0.0, %v888
  %v890 = vpop.f32.mrb[0].mxu0
  %891 = vmatprep.mubr.f32.mxu0 0.0
  %892 = vmatmul.mubr.f32.gmra.mrb[0].mxu0 %v764
  %v893 = vpop.f32.mrb[0].mxu0
  %v894 = vadd.f32 0.0, %v893
  %v895 = vpop.f32.mrb[0].mxu0
  %896 = vmatprep.mubr.f32.mxu0 0.0
  %897 = vmatmul.mubr.f32.gmra.mrb[0].mxu0 %v767
  %v898 = vpop.f32.mrb[0].mxu0
  %v899 = vadd.f32 0.0, %v898
  %v900 = vpop.f32.mrb[0].mxu0
  %901 = vmatprep.mubr.f32.mxu0 0.0
  %902 = vmatmul.mubr.f32.gmra.mrb[0].mxu0 %v770
  %v903 = vpop.f32.mrb[0].mxu0
  %v904 = vadd.f32 0.0, %v903
  %v905 = vpop.f32.mrb[0].mxu0
  %906 = vmatprep.mubr.f32.mxu0 0.0
  %907 = vmatmul.mubr.f32.gmra.mrb[0].mxu0 %v773
  %v908 = vpop.f32.mrb[0].mxu0
  %v909 = vadd.f32 0.0, %v908
  %v910 = vpop.f32.mrb[0].mxu0
  %911 = vmatprep.mubr.f32.mxu0 0.0
  %912 = vmatmul.mubr.f32.gmra.mrb[0].mxu0 %v776
  %v913 = vpop.f32.mrb[0].mxu0
  %v914 = vadd.f32 0.0, %v913
  %v915 = vpop.f32.mrb[0].mxu0
  %916 = vmatprep.mubr.f32.mxu0 0.0
  %917 = vmatmul.mubr.f32.gmra.mrb[0].mxu0 %v779
  %v918 = vpop.f32.mrb[0].mxu0
  %v919 = vadd.f32 0.0, %v918
  %v920 = vpop.f32.mrb[0].mxu0
  %921 = vmatprep.mubr.f32.mxu0 0.0
  %922 = vmatmul.mubr.f32.gmra.mrb[0].mxu0 %v782
  %v923 = vpop.f32.mrb[0].mxu0
  %v924 = vadd.f32 0.0, %v923
  %v925 = vpop.f32.mrb[0].mxu0
  %926 = vmatprep.mubr.f32.mxu0 0.0
  %927 = vmatmul.mubr.f32.gmra.mrb[0].mxu0 %v785
  %v928 = vpop.f32.mrb[0].mxu0
  %v929 = vadd.f32 0.0, %v928
  %v930 = vpop.f32.mrb[0].mxu0
  %931 = vdwg.mxu0
  %v933 = vsel %vm738, %v441, 0
  %v936 = vsel %vm738, %v446, 0
  %v939 = vsel %vm738, %v451, 0
  %v942 = vsel %vm738, %v456, 0
  %v945 = vsel %vm738, %v461, 0
  %v948 = vsel %vm738, %v466, 0
  %v951 = vsel %vm738, %v471, 0
  %v954 = vsel %vm738, %v476, 0
  %v957 = vsel %vm738, %v481, 0
  %v960 = vsel %vm738, %v486, 0
  %v963 = vsel %vm738, %v491, 0
  %v966 = vsel %vm738, %v496, 0
  %v969 = vsel %vm738, %v501, 0
  %v972 = vsel %vm738, %v506, 0
  %v975 = vsel %vm738, %v511, 0
  %v978 = vsel %vm738, %v516, 0
  %980 = vmatprep.subr.mxu0 0.0
  %981 = vmatpush1.msra.mxu0 %v519
  %982 = vmatprep.subr.mxu0 0.0
  %983 = vmatpush1.msra.mxu0 %v520
  %984 = vmatprep.subr.mxu0 0.0
  %985 = vmatpush1.msra.mxu0 %v521
  %986 = vmatprep.subr.mxu0 0.0
  %987 = vmatpush1.msra.mxu0 %v522
  %988 = vmatprep.subr.mxu0 0.0
  %989 = vmatpush1.msra.mxu0 0.0
  %990 = vmatprep.subr.mxu0 0.0
  %991 = vmatpush1.msra.mxu0 0.0
  %992 = vmatprep.subr.mxu0 0.0
  %993 = vmatpush1.msra.mxu0 0.0
  %994 = vmatprep.subr.mxu0 0.0
  %995 = vmatpush1.msra.mxu0 0.0
  %996 = vmatprep.subr.mxu0 0.0
  %997 = vmatpush1.msra.mxu0 0.0
  %998 = vmatprep.subr.mxu0 0.0
  %999 = vmatpush1.msra.mxu0 0.0
  %1000 = vmatprep.subr.mxu0 0.0
  %1001 = vmatpush1.msra.mxu0 0.0
  %1002 = vmatprep.subr.mxu0 0.0
  %1003 = vmatpush1.msra.mxu0 0.0
  %1004 = vmatprep.subr.mxu0 0.0
  %1005 = vmatpush1.msra.mxu0 0.0
  %1006 = vmatprep.subr.mxu0 0.0
  %1007 = vmatpush1.msra.mxu0 0.0
  %1008 = vmatprep.subr.mxu0 0.0
  %1009 = vmatpush1.msra.mxu0 0.0
  %1010 = vmatprep.subr.mxu0 0.0
  %1011 = vmatpush1.msra.mxu0 0.0
  %1012 = vmatprep.subr.mxu0 0.0
  %1013 = vmatpush1.msra.mxu0 0.0
  %1014 = vmatprep.subr.mxu0 0.0
  %1015 = vmatpush1.msra.mxu0 0.0
  %1016 = vmatprep.subr.mxu0 0.0
  %1017 = vmatpush1.msra.mxu0 0.0
  %1018 = vmatprep.subr.mxu0 0.0
  %1019 = vmatpush1.msra.mxu0 0.0
  %1020 = vmatprep.subr.mxu0 0.0
  %1021 = vmatpush1.msra.mxu0 0.0
  %1022 = vmatprep.subr.mxu0 0.0
  %1023 = vmatpush1.msra.mxu0 0.0
  %1024 = vmatprep.subr.mxu0 0.0
  %1025 = vmatpush1.msra.mxu0 0.0
  %1026 = vmatprep.subr.mxu0 0.0
  %1027 = vmatpush1.msra.mxu0 0.0
  %1028 = vmatprep.subr.mxu0 0.0
  %1029 = vmatpush1.msra.mxu0 0.0
  %1030 = vmatprep.subr.mxu0 0.0
  %1031 = vmatpush1.msra.mxu0 0.0
  %1032 = vmatprep.subr.mxu0 0.0
  %1033 = vmatpush1.msra.mxu0 0.0
  %1034 = vmatprep.subr.mxu0 0.0
  %1035 = vmatpush1.msra.mxu0 0.0
  %1036 = vmatprep.subr.mxu0 0.0
  %1037 = vmatpush1.msra.mxu0 0.0
  %1038 = vmatprep.subr.mxu0 0.0
  %1039 = vmatpush1.msra.mxu0 0.0
  %1040 = vmatprep.subr.mxu0 0.0
  %1041 = vmatpush1.msra.mxu0 0.0
  %1042 = vmatprep.subr.mxu0 0.0
  %1043 = vmatpush1.msra.mxu0 0.0
  %1044 = vmatprep.mubr.f32.mxu0 0.0
  %1045 = vmatmul.mubr.f32.gmra.mrb[0].mxu0 %v933
  %v1046 = vpop.f32.mrb[0].mxu0
  %v1047 = vadd.f32 %v854, %v1046
  %v1048 = vpop.f32.mrb[0].mxu0
  %1049 = vmatprep.mubr.f32.mxu0 0.0
  %1050 = vmatmul.mubr.f32.gmra.mrb[0].mxu0 %v936
  %v1051 = vpop.f32.mrb[0].mxu0
  %v1052 = vadd.f32 %v859, %v1051
  %v1053 = vpop.f32.mrb[0].mxu0
  %1054 = vmatprep.mubr.f32.mxu0 0.0
  %1055 = vmatmul.mubr.f32.gmra.mrb[0].mxu0 %v939
  %v1056 = vpop.f32.mrb[0].mxu0
  %v1057 = vadd.f32 %v864, %v1056
  %v1058 = vpop.f32.mrb[0].mxu0
  %1059 = vmatprep.mubr.f32.mxu0 0.0
  %1060 = vmatmul.mubr.f32.gmra.mrb[0].mxu0 %v942
  %v1061 = vpop.f32.mrb[0].mxu0
  %v1062 = vadd.f32 %v869, %v1061
  %v1063 = vpop.f32.mrb[0].mxu0
  %1064 = vmatprep.mubr.f32.mxu0 0.0
  %1065 = vmatmul.mubr.f32.gmra.mrb[0].mxu0 %v945
  %v1066 = vpop.f32.mrb[0].mxu0
  %v1067 = vadd.f32 %v874, %v1066
  %v1068 = vpop.f32.mrb[0].mxu0
  %1069 = vmatprep.mubr.f32.mxu0 0.0
  %1070 = vmatmul.mubr.f32.gmra.mrb[0].mxu0 %v948
  %v1071 = vpop.f32.mrb[0].mxu0
  %v1072 = vadd.f32 %v879, %v1071
  %v1073 = vpop.f32.mrb[0].mxu0
  %1074 = vmatprep.mubr.f32.mxu0 0.0
  %1075 = vmatmul.mubr.f32.gmra.mrb[0].mxu0 %v951
  %v1076 = vpop.f32.mrb[0].mxu0
  %v1077 = vadd.f32 %v884, %v1076
  %v1078 = vpop.f32.mrb[0].mxu0
  %1079 = vmatprep.mubr.f32.mxu0 0.0
  %1080 = vmatmul.mubr.f32.gmra.mrb[0].mxu0 %v954
  %v1081 = vpop.f32.mrb[0].mxu0
  %v1082 = vadd.f32 %v889, %v1081
  %v1083 = vpop.f32.mrb[0].mxu0
  %1084 = vmatprep.mubr.f32.mxu0 0.0
  %1085 = vmatmul.mubr.f32.gmra.mrb[0].mxu0 %v957
  %v1086 = vpop.f32.mrb[0].mxu0
  %v1087 = vadd.f32 %v894, %v1086
  %v1088 = vpop.f32.mrb[0].mxu0
  %1089 = vmatprep.mubr.f32.mxu0 0.0
  %1090 = vmatmul.mubr.f32.gmra.mrb[0].mxu0 %v960
  %v1091 = vpop.f32.mrb[0].mxu0
  %v1092 = vadd.f32 %v899, %v1091
  %v1093 = vpop.f32.mrb[0].mxu0
  %1094 = vmatprep.mubr.f32.mxu0 0.0
  %1095 = vmatmul.mubr.f32.gmra.mrb[0].mxu0 %v963
  %v1096 = vpop.f32.mrb[0].mxu0
  %v1097 = vadd.f32 %v904, %v1096
  %v1098 = vpop.f32.mrb[0].mxu0
  %1099 = vmatprep.mubr.f32.mxu0 0.0
  %1100 = vmatmul.mubr.f32.gmra.mrb[0].mxu0 %v966
  %v1101 = vpop.f32.mrb[0].mxu0
  %v1102 = vadd.f32 %v909, %v1101
  %v1103 = vpop.f32.mrb[0].mxu0
  %1104 = vmatprep.mubr.f32.mxu0 0.0
  %1105 = vmatmul.mubr.f32.gmra.mrb[0].mxu0 %v969
  %v1106 = vpop.f32.mrb[0].mxu0
  %v1107 = vadd.f32 %v914, %v1106
  %v1108 = vpop.f32.mrb[0].mxu0
  %1109 = vmatprep.mubr.f32.mxu0 0.0
  %1110 = vmatmul.mubr.f32.gmra.mrb[0].mxu0 %v972
  %v1111 = vpop.f32.mrb[0].mxu0
  %v1112 = vadd.f32 %v919, %v1111
  %v1113 = vpop.f32.mrb[0].mxu0
  %1114 = vmatprep.mubr.f32.mxu0 0.0
  %1115 = vmatmul.mubr.f32.gmra.mrb[0].mxu0 %v975
  %v1116 = vpop.f32.mrb[0].mxu0
  %v1117 = vadd.f32 %v924, %v1116
  %v1118 = vpop.f32.mrb[0].mxu0
  %1119 = vmatprep.mubr.f32.mxu0 0.0
  %1120 = vmatmul.mubr.f32.gmra.mrb[0].mxu0 %v978
  %v1121 = vpop.f32.mrb[0].mxu0
  %v1122 = vadd.f32 %v929, %v1121
  %v1123 = vpop.f32.mrb[0].mxu0
  %1124 = vdwg.mxu0
  %s1125 = scalar_lea.vmem %s3, 256
  %v1126 = vld [vmem:[%s1125] sm:$0xff]
  %v1127 = vld [vmem:[%s1125 + $0x8] sm:$0xff]
  %v1128 = vld [vmem:[%s1125 + $0x10] sm:$0xff]
  %v1129 = vld [vmem:[%s1125 + $0x18] sm:$0xff]
  %v1130 = vld [vmem:[%s1125 + $0x20] sm:$0xff]
  %v1131 = vld [vmem:[%s1125 + $0x28] sm:$0xff]
  %v1132 = vld [vmem:[%s1125 + $0x30] sm:$0xff]
  %v1133 = vld [vmem:[%s1125 + $0x38] sm:$0xff]
  %v1134 = vld [vmem:[%s1125 + $0x40] sm:$0xff]
  %v1135 = vld [vmem:[%s1125 + $0x48] sm:$0xff]
  %v1136 = vld [vmem:[%s1125 + $0x50] sm:$0xff]
  %v1137 = vld [vmem:[%s1125 + $0x58] sm:$0xff]
  %v1138 = vld [vmem:[%s1125 + $0x60] sm:$0xff]
  %v1139 = vld [vmem:[%s1125 + $0x68] sm:$0xff]
  %v1140 = vld [vmem:[%s1125 + $0x70] sm:$0xff]
  %v1141 = vld [vmem:[%s1125 + $0x78] sm:$0xff]
  %v1143 = vsel %vm325, %v1126, 0
  %v1146 = vsel %vm325, %v1127, 0
  %v1149 = vsel %vm325, %v1128, 0
  %v1152 = vsel %vm325, %v1129, 0
  %v1155 = vsel %vm325, %v1130, 0
  %v1158 = vsel %vm325, %v1131, 0
  %v1161 = vsel %vm325, %v1132, 0
  %v1164 = vsel %vm325, %v1133, 0
  %v1167 = vsel %vm325, %v1134, 0
  %v1170 = vsel %vm325, %v1135, 0
  %v1173 = vsel %vm325, %v1136, 0
  %v1176 = vsel %vm325, %v1137, 0
  %v1179 = vsel %vm325, %v1138, 0
  %v1182 = vsel %vm325, %v1139, 0
  %v1185 = vsel %vm325, %v1140, 0
  %v1188 = vsel %vm325, %v1141, 0
  %1190 = vmatprep.subr.mxu0 0.0
  %1191 = vmatpush1.msra.mxu0 %v308
  %1192 = vmatprep.subr.mxu0 0.0
  %1193 = vmatpush1.msra.mxu0 0.0
  %1194 = vmatprep.subr.mxu0 0.0
  %1195 = vmatpush1.msra.mxu0 0.0
  %1196 = vmatprep.subr.mxu0 0.0
  %1197 = vmatpush1.msra.mxu0 0.0
  %1198 = vmatprep.subr.mxu0 0.0
  %1199 = vmatpush1.msra.mxu0 0.0
  %1200 = vmatprep.subr.mxu0 0.0
  %1201 = vmatpush1.msra.mxu0 0.0
  %1202 = vmatprep.subr.mxu0 0.0
  %1203 = vmatpush1.msra.mxu0 0.0
  %1204 = vmatprep.subr.mxu0 0.0
  %1205 = vmatpush1.msra.mxu0 0.0
  %1206 = vmatprep.subr.mxu0 0.0
  %1207 = vmatpush1.msra.mxu0 0.0
  %1208 = vmatprep.subr.mxu0 0.0
  %1209 = vmatpush1.msra.mxu0 0.0
  %1210 = vmatprep.subr.mxu0 0.0
  %1211 = vmatpush1.msra.mxu0 0.0
  %1212 = vmatprep.subr.mxu0 0.0
  %1213 = vmatpush1.msra.mxu0 0.0
  %1214 = vmatprep.subr.mxu0 0.0
  %1215 = vmatpush1.msra.mxu0 0.0
  %1216 = vmatprep.subr.mxu0 0.0
  %1217 = vmatpush1.msra.mxu0 0.0
  %1218 = vmatprep.subr.mxu0 0.0
  %1219 = vmatpush1.msra.mxu0 0.0
  %1220 = vmatprep.subr.mxu0 0.0
  %1221 = vmatpush1.msra.mxu0 0.0
  %1222 = vmatprep.subr.mxu0 0.0
  %1223 = vmatpush1.msra.mxu0 0.0
  %1224 = vmatprep.subr.mxu0 0.0
  %1225 = vmatpush1.msra.mxu0 0.0
  %1226 = vmatprep.subr.mxu0 0.0
  %1227 = vmatpush1.msra.mxu0 0.0
  %1228 = vmatprep.subr.mxu0 0.0
  %1229 = vmatpush1.msra.mxu0 0.0
  %1230 = vmatprep.subr.mxu0 0.0
  %1231 = vmatpush1.msra.mxu0 0.0
  %1232 = vmatprep.subr.mxu0 0.0
  %1233 = vmatpush1.msra.mxu0 0.0
  %1234 = vmatprep.subr.mxu0 0.0
  %1235 = vmatpush1.msra.mxu0 0.0
  %1236 = vmatprep.subr.mxu0 0.0
  %1237 = vmatpush1.msra.mxu0 0.0
  %1238 = vmatprep.subr.mxu0 0.0
  %1239 = vmatpush1.msra.mxu0 0.0
  %1240 = vmatprep.subr.mxu0 0.0
  %1241 = vmatpush1.msra.mxu0 0.0
  %1242 = vmatprep.subr.mxu0 0.0
  %1243 = vmatpush1.msra.mxu0 0.0
  %1244 = vmatprep.subr.mxu0 0.0
  %1245 = vmatpush1.msra.mxu0 0.0
  %1246 = vmatprep.subr.mxu0 0.0
  %1247 = vmatpush1.msra.mxu0 0.0
  %1248 = vmatprep.subr.mxu0 0.0
  %1249 = vmatpush1.msra.mxu0 0.0
  %1250 = vmatprep.subr.mxu0 0.0
  %1251 = vmatpush1.msra.mxu0 0.0
  %1252 = vmatprep.subr.mxu0 0.0
  %1253 = vmatpush1.msra.mxu0 0.0
  %1254 = vmatprep.mubr.f32.mxu0 0.0
  %1255 = vmatmul.mubr.f32.gmra.mrb[0].mxu0 %v1143
  %v1256 = vpop.f32.mrb[0].mxu0
  %v1257 = vadd.f32 0.0, %v1256
  %v1258 = vpop.f32.mrb[0].mxu0
  %1259 = vmatprep.mubr.f32.mxu0 0.0
  %1260 = vmatmul.mubr.f32.gmra.mrb[0].mxu0 %v1146
  %v1261 = vpop.f32.mrb[0].mxu0
  %v1262 = vadd.f32 0.0, %v1261
  %v1263 = vpop.f32.mrb[0].mxu0
  %1264 = vmatprep.mubr.f32.mxu0 0.0
  %1265 = vmatmul.mubr.f32.gmra.mrb[0].mxu0 %v1149
  %v1266 = vpop.f32.mrb[0].mxu0
  %v1267 = vadd.f32 0.0, %v1266
  %v1268 = vpop.f32.mrb[0].mxu0
  %1269 = vmatprep.mubr.f32.mxu0 0.0
  %1270 = vmatmul.mubr.f32.gmra.mrb[0].mxu0 %v1152
  %v1271 = vpop.f32.mrb[0].mxu0
  %v1272 = vadd.f32 0.0, %v1271
  %v1273 = vpop.f32.mrb[0].mxu0
  %1274 = vmatprep.mubr.f32.mxu0 0.0
  %1275 = vmatmul.mubr.f32.gmra.mrb[0].mxu0 %v1155
  %v1276 = vpop.f32.mrb[0].mxu0
  %v1277 = vadd.f32 0.0, %v1276
  %v1278 = vpop.f32.mrb[0].mxu0
  %1279 = vmatprep.mubr.f32.mxu0 0.0
  %1280 = vmatmul.mubr.f32.gmra.mrb[0].mxu0 %v1158
  %v1281 = vpop.f32.mrb[0].mxu0
  %v1282 = vadd.f32 0.0, %v1281
  %v1283 = vpop.f32.mrb[0].mxu0
  %1284 = vmatprep.mubr.f32.mxu0 0.0
  %1285 = vmatmul.mubr.f32.gmra.mrb[0].mxu0 %v1161
  %v1286 = vpop.f32.mrb[0].mxu0
  %v1287 = vadd.f32 0.0, %v1286
  %v1288 = vpop.f32.mrb[0].mxu0
  %1289 = vmatprep.mubr.f32.mxu0 0.0
  %1290 = vmatmul.mubr.f32.gmra.mrb[0].mxu0 %v1164
  %v1291 = vpop.f32.mrb[0].mxu0
  %v1292 = vadd.f32 0.0, %v1291
  %v1293 = vpop.f32.mrb[0].mxu0
  %1294 = vmatprep.mubr.f32.mxu0 0.0
  %1295 = vmatmul.mubr.f32.gmra.mrb[0].mxu0 %v1167
  %v1296 = vpop.f32.mrb[0].mxu0
  %v1297 = vadd.f32 0.0, %v1296
  %v1298 = vpop.f32.mrb[0].mxu0
  %1299 = vmatprep.mubr.f32.mxu0 0.0
  %1300 = vmatmul.mubr.f32.gmra.mrb[0].mxu0 %v1170
  %v1301 = vpop.f32.mrb[0].mxu0
  %v1302 = vadd.f32 0.0, %v1301
  %v1303 = vpop.f32.mrb[0].mxu0
  %1304 = vmatprep.mubr.f32.mxu0 0.0
  %1305 = vmatmul.mubr.f32.gmra.mrb[0].mxu0 %v1173
  %v1306 = vpop.f32.mrb[0].mxu0
  %v1307 = vadd.f32 0.0, %v1306
  %v1308 = vpop.f32.mrb[0].mxu0
  %1309 = vmatprep.mubr.f32.mxu0 0.0
  %1310 = vmatmul.mubr.f32.gmra.mrb[0].mxu0 %v1176
  %v1311 = vpop.f32.mrb[0].mxu0
  %v1312 = vadd.f32 0.0, %v1311
  %v1313 = vpop.f32.mrb[0].mxu0
  %1314 = vmatprep.mubr.f32.mxu0 0.0
  %1315 = vmatmul.mubr.f32.gmra.mrb[0].mxu0 %v1179
  %v1316 = vpop.f32.mrb[0].mxu0
  %v1317 = vadd.f32 0.0, %v1316
  %v1318 = vpop.f32.mrb[0].mxu0
  %1319 = vmatprep.mubr.f32.mxu0 0.0
  %1320 = vmatmul.mubr.f32.gmra.mrb[0].mxu0 %v1182
  %v1321 = vpop.f32.mrb[0].mxu0
  %v1322 = vadd.f32 0.0, %v1321
  %v1323 = vpop.f32.mrb[0].mxu0
  %1324 = vmatprep.mubr.f32.mxu0 0.0
  %1325 = vmatmul.mubr.f32.gmra.mrb[0].mxu0 %v1185
  %v1326 = vpop.f32.mrb[0].mxu0
  %v1327 = vadd.f32 0.0, %v1326
  %v1328 = vpop.f32.mrb[0].mxu0
  %1329 = vmatprep.mubr.f32.mxu0 0.0
  %1330 = vmatmul.mubr.f32.gmra.mrb[0].mxu0 %v1188
  %v1331 = vpop.f32.mrb[0].mxu0
  %v1332 = vadd.f32 0.0, %v1331
  %v1333 = vpop.f32.mrb[0].mxu0
  %1334 = vdwg.mxu0
  %s1335 = scalar_lea.vmem %s4, 64
  %v1336 = vld [vmem:[%s1335] sm:$0xff]
  %v1337 = vld [vmem:[%s1335 + $0x8] sm:$0xff]
  %v1338 = vld [vmem:[%s1335 + $0x10] sm:$0xff]
  %v1339 = vld [vmem:[%s1335 + $0x18] sm:$0xff]
  %v1341 = vsel %vm738, %v1257, 0
  %v1344 = vsel %vm738, %v1262, 0
  %v1347 = vsel %vm738, %v1267, 0
  %v1350 = vsel %vm738, %v1272, 0
  %v1353 = vsel %vm738, %v1277, 0
  %v1356 = vsel %vm738, %v1282, 0
  %v1359 = vsel %vm738, %v1287, 0
  %v1362 = vsel %vm738, %v1292, 0
  %v1365 = vsel %vm738, %v1297, 0
  %v1368 = vsel %vm738, %v1302, 0
  %v1371 = vsel %vm738, %v1307, 0
  %v1374 = vsel %vm738, %v1312, 0
  %v1377 = vsel %vm738, %v1317, 0
  %v1380 = vsel %vm738, %v1322, 0
  %v1383 = vsel %vm738, %v1327, 0
  %v1386 = vsel %vm738, %v1332, 0
  %1388 = vmatprep.subr.mxu0 0.0
  %1389 = vmatpush1.msra.mxu0 %v1336
  %1390 = vmatprep.subr.mxu0 0.0
  %1391 = vmatpush1.msra.mxu0 %v1337
  %1392 = vmatprep.subr.mxu0 0.0
  %1393 = vmatpush1.msra.mxu0 %v1338
  %1394 = vmatprep.subr.mxu0 0.0
  %1395 = vmatpush1.msra.mxu0 %v1339
  %1396 = vmatprep.subr.mxu0 0.0
  %1397 = vmatpush1.msra.mxu0 0.0
  %1398 = vmatprep.subr.mxu0 0.0
  %1399 = vmatpush1.msra.mxu0 0.0
  %1400 = vmatprep.subr.mxu0 0.0
  %1401 = vmatpush1.msra.mxu0 0.0
  %1402 = vmatprep.subr.mxu0 0.0
  %1403 = vmatpush1.msra.mxu0 0.0
  %1404 = vmatprep.subr.mxu0 0.0
  %1405 = vmatpush1.msra.mxu0 0.0
  %1406 = vmatprep.subr.mxu0 0.0
  %1407 = vmatpush1.msra.mxu0 0.0
  %1408 = vmatprep.subr.mxu0 0.0
  %1409 = vmatpush1.msra.mxu0 0.0
  %1410 = vmatprep.subr.mxu0 0.0
  %1411 = vmatpush1.msra.mxu0 0.0
  %1412 = vmatprep.subr.mxu0 0.0
  %1413 = vmatpush1.msra.mxu0 0.0
  %1414 = vmatprep.subr.mxu0 0.0
  %1415 = vmatpush1.msra.mxu0 0.0
  %1416 = vmatprep.subr.mxu0 0.0
  %1417 = vmatpush1.msra.mxu0 0.0
  %1418 = vmatprep.subr.mxu0 0.0
  %1419 = vmatpush1.msra.mxu0 0.0
  %1420 = vmatprep.subr.mxu0 0.0
  %1421 = vmatpush1.msra.mxu0 0.0
  %1422 = vmatprep.subr.mxu0 0.0
  %1423 = vmatpush1.msra.mxu0 0.0
  %1424 = vmatprep.subr.mxu0 0.0
  %1425 = vmatpush1.msra.mxu0 0.0
  %1426 = vmatprep.subr.mxu0 0.0
  %1427 = vmatpush1.msra.mxu0 0.0
  %1428 = vmatprep.subr.mxu0 0.0
  %1429 = vmatpush1.msra.mxu0 0.0
  %1430 = vmatprep.subr.mxu0 0.0
  %1431 = vmatpush1.msra.mxu0 0.0
  %1432 = vmatprep.subr.mxu0 0.0
  %1433 = vmatpush1.msra.mxu0 0.0
  %1434 = vmatprep.subr.mxu0 0.0
  %1435 = vmatpush1.msra.mxu0 0.0
  %1436 = vmatprep.subr.mxu0 0.0
  %1437 = vmatpush1.msra.mxu0 0.0
  %1438 = vmatprep.subr.mxu0 0.0
  %1439 = vmatpush1.msra.mxu0 0.0
  %1440 = vmatprep.subr.mxu0 0.0
  %1441 = vmatpush1.msra.mxu0 0.0
  %1442 = vmatprep.subr.mxu0 0.0
  %1443 = vmatpush1.msra.mxu0 0.0
  %1444 = vmatprep.subr.mxu0 0.0
  %1445 = vmatpush1.msra.mxu0 0.0
  %1446 = vmatprep.subr.mxu0 0.0
  %1447 = vmatpush1.msra.mxu0 0.0
  %1448 = vmatprep.subr.mxu0 0.0
  %1449 = vmatpush1.msra.mxu0 0.0
  %1450 = vmatprep.subr.mxu0 0.0
  %1451 = vmatpush1.msra.mxu0 0.0
  %1452 = vmatprep.mubr.f32.mxu0 0.0
  %1453 = vmatmul.mubr.f32.gmra.mrb[0].mxu0 %v1341
  %v1454 = vpop.f32.mrb[0].mxu0
  %v1455 = vadd.f32 0.0, %v1454
  %v1456 = vpop.f32.mrb[0].mxu0
  %1457 = vmatprep.mubr.f32.mxu0 0.0
  %1458 = vmatmul.mubr.f32.gmra.mrb[0].mxu0 %v1344
  %v1459 = vpop.f32.mrb[0].mxu0
  %v1460 = vadd.f32 0.0, %v1459
  %v1461 = vpop.f32.mrb[0].mxu0
  %1462 = vmatprep.mubr.f32.mxu0 0.0
  %1463 = vmatmul.mubr.f32.gmra.mrb[0].mxu0 %v1347
  %v1464 = vpop.f32.mrb[0].mxu0
  %v1465 = vadd.f32 0.0, %v1464
  %v1466 = vpop.f32.mrb[0].mxu0
  %1467 = vmatprep.mubr.f32.mxu0 0.0
  %1468 = vmatmul.mubr.f32.gmra.mrb[0].mxu0 %v1350
  %v1469 = vpop.f32.mrb[0].mxu0
  %v1470 = vadd.f32 0.0, %v1469
  %v1471 = vpop.f32.mrb[0].mxu0
  %1472 = vmatprep.mubr.f32.mxu0 0.0
  %1473 = vmatmul.mubr.f32.gmra.mrb[0].mxu0 %v1353
  %v1474 = vpop.f32.mrb[0].mxu0
  %v1475 = vadd.f32 0.0, %v1474
  %v1476 = vpop.f32.mrb[0].mxu0
  %1477 = vmatprep.mubr.f32.mxu0 0.0
  %1478 = vmatmul.mubr.f32.gmra.mrb[0].mxu0 %v1356
  %v1479 = vpop.f32.mrb[0].mxu0
  %v1480 = vadd.f32 0.0, %v1479
  %v1481 = vpop.f32.mrb[0].mxu0
  %1482 = vmatprep.mubr.f32.mxu0 0.0
  %1483 = vmatmul.mubr.f32.gmra.mrb[0].mxu0 %v1359
  %v1484 = vpop.f32.mrb[0].mxu0
  %v1485 = vadd.f32 0.0, %v1484
  %v1486 = vpop.f32.mrb[0].mxu0
  %1487 = vmatprep.mubr.f32.mxu0 0.0
  %1488 = vmatmul.mubr.f32.gmra.mrb[0].mxu0 %v1362
  %v1489 = vpop.f32.mrb[0].mxu0
  %v1490 = vadd.f32 0.0, %v1489
  %v1491 = vpop.f32.mrb[0].mxu0
  %1492 = vmatprep.mubr.f32.mxu0 0.0
  %1493 = vmatmul.mubr.f32.gmra.mrb[0].mxu0 %v1365
  %v1494 = vpop.f32.mrb[0].mxu0
  %v1495 = vadd.f32 0.0, %v1494
  %v1496 = vpop.f32.mrb[0].mxu0
  %1497 = vmatprep.mubr.f32.mxu0 0.0
  %1498 = vmatmul.mubr.f32.gmra.mrb[0].mxu0 %v1368
  %v1499 = vpop.f32.mrb[0].mxu0
  %v1500 = vadd.f32 0.0, %v1499
  %v1501 = vpop.f32.mrb[0].mxu0
  %1502 = vmatprep.mubr.f32.mxu0 0.0
  %1503 = vmatmul.mubr.f32.gmra.mrb[0].mxu0 %v1371
  %v1504 = vpop.f32.mrb[0].mxu0
  %v1505 = vadd.f32 0.0, %v1504
  %v1506 = vpop.f32.mrb[0].mxu0
  %1507 = vmatprep.mubr.f32.mxu0 0.0
  %1508 = vmatmul.mubr.f32.gmra.mrb[0].mxu0 %v1374
  %v1509 = vpop.f32.mrb[0].mxu0
  %v1510 = vadd.f32 0.0, %v1509
  %v1511 = vpop.f32.mrb[0].mxu0
  %1512 = vmatprep.mubr.f32.mxu0 0.0
  %1513 = vmatmul.mubr.f32.gmra.mrb[0].mxu0 %v1377
  %v1514 = vpop.f32.mrb[0].mxu0
  %v1515 = vadd.f32 0.0, %v1514
  %v1516 = vpop.f32.mrb[0].mxu0
  %1517 = vmatprep.mubr.f32.mxu0 0.0
  %1518 = vmatmul.mubr.f32.gmra.mrb[0].mxu0 %v1380
  %v1519 = vpop.f32.mrb[0].mxu0
  %v1520 = vadd.f32 0.0, %v1519
  %v1521 = vpop.f32.mrb[0].mxu0
  %1522 = vmatprep.mubr.f32.mxu0 0.0
  %1523 = vmatmul.mubr.f32.gmra.mrb[0].mxu0 %v1383
  %v1524 = vpop.f32.mrb[0].mxu0
  %v1525 = vadd.f32 0.0, %v1524
  %v1526 = vpop.f32.mrb[0].mxu0
  %1527 = vmatprep.mubr.f32.mxu0 0.0
  %1528 = vmatmul.mubr.f32.gmra.mrb[0].mxu0 %v1386
  %v1529 = vpop.f32.mrb[0].mxu0
  %v1530 = vadd.f32 0.0, %v1529
  %v1531 = vpop.f32.mrb[0].mxu0
  %1532 = vdwg.mxu0
  %v1533 = vadd.f32 %v1047, %v1455
  %v1534 = vadd.f32 %v1052, %v1460
  %v1535 = vadd.f32 %v1057, %v1465
  %v1536 = vadd.f32 %v1062, %v1470
  %v1537 = vadd.f32 %v1067, %v1475
  %v1538 = vadd.f32 %v1072, %v1480
  %v1539 = vadd.f32 %v1077, %v1485
  %v1540 = vadd.f32 %v1082, %v1490
  %v1541 = vadd.f32 %v1087, %v1495
  %v1542 = vadd.f32 %v1092, %v1500
  %v1543 = vadd.f32 %v1097, %v1505
  %v1544 = vadd.f32 %v1102, %v1510
  %v1545 = vadd.f32 %v1107, %v1515
  %v1546 = vadd.f32 %v1112, %v1520
  %v1547 = vadd.f32 %v1117, %v1525
  %v1548 = vadd.f32 %v1122, %v1530
  %s1549 = scalar_lea.vmem %s3, 384
  %v1550 = vld [vmem:[%s1549] sm:$0xff]
  %v1551 = vld [vmem:[%s1549 + $0x8] sm:$0xff]
  %v1552 = vld [vmem:[%s1549 + $0x10] sm:$0xff]
  %v1553 = vld [vmem:[%s1549 + $0x18] sm:$0xff]
  %v1554 = vld [vmem:[%s1549 + $0x20] sm:$0xff]
  %v1555 = vld [vmem:[%s1549 + $0x28] sm:$0xff]
  %v1556 = vld [vmem:[%s1549 + $0x30] sm:$0xff]
  %v1557 = vld [vmem:[%s1549 + $0x38] sm:$0xff]
  %v1558 = vld [vmem:[%s1549 + $0x40] sm:$0xff]
  %v1559 = vld [vmem:[%s1549 + $0x48] sm:$0xff]
  %v1560 = vld [vmem:[%s1549 + $0x50] sm:$0xff]
  %v1561 = vld [vmem:[%s1549 + $0x58] sm:$0xff]
  %v1562 = vld [vmem:[%s1549 + $0x60] sm:$0xff]
  %v1563 = vld [vmem:[%s1549 + $0x68] sm:$0xff]
  %v1564 = vld [vmem:[%s1549 + $0x70] sm:$0xff]
  %v1565 = vld [vmem:[%s1549 + $0x78] sm:$0xff]
  %v1567 = vsel %vm325, %v1550, 0
  %v1570 = vsel %vm325, %v1551, 0
  %v1573 = vsel %vm325, %v1552, 0
  %v1576 = vsel %vm325, %v1553, 0
  %v1579 = vsel %vm325, %v1554, 0
  %v1582 = vsel %vm325, %v1555, 0
  %v1585 = vsel %vm325, %v1556, 0
  %v1588 = vsel %vm325, %v1557, 0
  %v1591 = vsel %vm325, %v1558, 0
  %v1594 = vsel %vm325, %v1559, 0
  %v1597 = vsel %vm325, %v1560, 0
  %v1600 = vsel %vm325, %v1561, 0
  %v1603 = vsel %vm325, %v1562, 0
  %v1606 = vsel %vm325, %v1563, 0
  %v1609 = vsel %vm325, %v1564, 0
  %v1612 = vsel %vm325, %v1565, 0
  %1614 = vmatprep.subr.mxu0 0.0
  %1615 = vmatpush1.msra.mxu0 %v308
  %1616 = vmatprep.subr.mxu0 0.0
  %1617 = vmatpush1.msra.mxu0 0.0
  %1618 = vmatprep.subr.mxu0 0.0
  %1619 = vmatpush1.msra.mxu0 0.0
  %1620 = vmatprep.subr.mxu0 0.0
  %1621 = vmatpush1.msra.mxu0 0.0
  %1622 = vmatprep.subr.mxu0 0.0
  %1623 = vmatpush1.msra.mxu0 0.0
  %1624 = vmatprep.subr.mxu0 0.0
  %1625 = vmatpush1.msra.mxu0 0.0
  %1626 = vmatprep.subr.mxu0 0.0
  %1627 = vmatpush1.msra.mxu0 0.0
  %1628 = vmatprep.subr.mxu0 0.0
  %1629 = vmatpush1.msra.mxu0 0.0
  %1630 = vmatprep.subr.mxu0 0.0
  %1631 = vmatpush1.msra.mxu0 0.0
  %1632 = vmatprep.subr.mxu0 0.0
  %1633 = vmatpush1.msra.mxu0 0.0
  %1634 = vmatprep.subr.mxu0 0.0
  %1635 = vmatpush1.msra.mxu0 0.0
  %1636 = vmatprep.subr.mxu0 0.0
  %1637 = vmatpush1.msra.mxu0 0.0
  %1638 = vmatprep.subr.mxu0 0.0
  %1639 = vmatpush1.msra.mxu0 0.0
  %1640 = vmatprep.subr.mxu0 0.0
  %1641 = vmatpush1.msra.mxu0 0.0
  %1642 = vmatprep.subr.mxu0 0.0
  %1643 = vmatpush1.msra.mxu0 0.0
  %1644 = vmatprep.subr.mxu0 0.0
  %1645 = vmatpush1.msra.mxu0 0.0
  %1646 = vmatprep.subr.mxu0 0.0
  %1647 = vmatpush1.msra.mxu0 0.0
  %1648 = vmatprep.subr.mxu0 0.0
  %1649 = vmatpush1.msra.mxu0 0.0
  %1650 = vmatprep.subr.mxu0 0.0
  %1651 = vmatpush1.msra.mxu0 0.0
  %1652 = vmatprep.subr.mxu0 0.0
  %1653 = vmatpush1.msra.mxu0 0.0
  %1654 = vmatprep.subr.mxu0 0.0
  %1655 = vmatpush1.msra.mxu0 0.0
  %1656 = vmatprep.subr.mxu0 0.0
  %1657 = vmatpush1.msra.mxu0 0.0
  %1658 = vmatprep.subr.mxu0 0.0
  %1659 = vmatpush1.msra.mxu0 0.0
  %1660 = vmatprep.subr.mxu0 0.0
  %1661 = vmatpush1.msra.mxu0 0.0
  %1662 = vmatprep.subr.mxu0 0.0
  %1663 = vmatpush1.msra.mxu0 0.0
  %1664 = vmatprep.subr.mxu0 0.0
  %1665 = vmatpush1.msra.mxu0 0.0
  %1666 = vmatprep.subr.mxu0 0.0
  %1667 = vmatpush1.msra.mxu0 0.0
  %1668 = vmatprep.subr.mxu0 0.0
  %1669 = vmatpush1.msra.mxu0 0.0
  %1670 = vmatprep.subr.mxu0 0.0
  %1671 = vmatpush1.msra.mxu0 0.0
  %1672 = vmatprep.subr.mxu0 0.0
  %1673 = vmatpush1.msra.mxu0 0.0
  %1674 = vmatprep.subr.mxu0 0.0
  %1675 = vmatpush1.msra.mxu0 0.0
  %1676 = vmatprep.subr.mxu0 0.0
  %1677 = vmatpush1.msra.mxu0 0.0
  %1678 = vmatprep.mubr.f32.mxu0 0.0
  %1679 = vmatmul.mubr.f32.gmra.mrb[0].mxu0 %v1567
  %v1680 = vpop.f32.mrb[0].mxu0
  %v1681 = vadd.f32 0.0, %v1680
  %v1682 = vpop.f32.mrb[0].mxu0
  %1683 = vmatprep.mubr.f32.mxu0 0.0
  %1684 = vmatmul.mubr.f32.gmra.mrb[0].mxu0 %v1570
  %v1685 = vpop.f32.mrb[0].mxu0
  %v1686 = vadd.f32 0.0, %v1685
  %v1687 = vpop.f32.mrb[0].mxu0
  %1688 = vmatprep.mubr.f32.mxu0 0.0
  %1689 = vmatmul.mubr.f32.gmra.mrb[0].mxu0 %v1573
  %v1690 = vpop.f32.mrb[0].mxu0
  %v1691 = vadd.f32 0.0, %v1690
  %v1692 = vpop.f32.mrb[0].mxu0
  %1693 = vmatprep.mubr.f32.mxu0 0.0
  %1694 = vmatmul.mubr.f32.gmra.mrb[0].mxu0 %v1576
  %v1695 = vpop.f32.mrb[0].mxu0
  %v1696 = vadd.f32 0.0, %v1695
  %v1697 = vpop.f32.mrb[0].mxu0
  %1698 = vmatprep.mubr.f32.mxu0 0.0
  %1699 = vmatmul.mubr.f32.gmra.mrb[0].mxu0 %v1579
  %v1700 = vpop.f32.mrb[0].mxu0
  %v1701 = vadd.f32 0.0, %v1700
  %v1702 = vpop.f32.mrb[0].mxu0
  %1703 = vmatprep.mubr.f32.mxu0 0.0
  %1704 = vmatmul.mubr.f32.gmra.mrb[0].mxu0 %v1582
  %v1705 = vpop.f32.mrb[0].mxu0
  %v1706 = vadd.f32 0.0, %v1705
  %v1707 = vpop.f32.mrb[0].mxu0
  %1708 = vmatprep.mubr.f32.mxu0 0.0
  %1709 = vmatmul.mubr.f32.gmra.mrb[0].mxu0 %v1585
  %v1710 = vpop.f32.mrb[0].mxu0
  %v1711 = vadd.f32 0.0, %v1710
  %v1712 = vpop.f32.mrb[0].mxu0
  %1713 = vmatprep.mubr.f32.mxu0 0.0
  %1714 = vmatmul.mubr.f32.gmra.mrb[0].mxu0 %v1588
  %v1715 = vpop.f32.mrb[0].mxu0
  %v1716 = vadd.f32 0.0, %v1715
  %v1717 = vpop.f32.mrb[0].mxu0
  %1718 = vmatprep.mubr.f32.mxu0 0.0
  %1719 = vmatmul.mubr.f32.gmra.mrb[0].mxu0 %v1591
  %v1720 = vpop.f32.mrb[0].mxu0
  %v1721 = vadd.f32 0.0, %v1720
  %v1722 = vpop.f32.mrb[0].mxu0
  %1723 = vmatprep.mubr.f32.mxu0 0.0
  %1724 = vmatmul.mubr.f32.gmra.mrb[0].mxu0 %v1594
  %v1725 = vpop.f32.mrb[0].mxu0
  %v1726 = vadd.f32 0.0, %v1725
  %v1727 = vpop.f32.mrb[0].mxu0
  %1728 = vmatprep.mubr.f32.mxu0 0.0
  %1729 = vmatmul.mubr.f32.gmra.mrb[0].mxu0 %v1597
  %v1730 = vpop.f32.mrb[0].mxu0
  %v1731 = vadd.f32 0.0, %v1730
  %v1732 = vpop.f32.mrb[0].mxu0
  %1733 = vmatprep.mubr.f32.mxu0 0.0
  %1734 = vmatmul.mubr.f32.gmra.mrb[0].mxu0 %v1600
  %v1735 = vpop.f32.mrb[0].mxu0
  %v1736 = vadd.f32 0.0, %v1735
  %v1737 = vpop.f32.mrb[0].mxu0
  %1738 = vmatprep.mubr.f32.mxu0 0.0
  %1739 = vmatmul.mubr.f32.gmra.mrb[0].mxu0 %v1603
  %v1740 = vpop.f32.mrb[0].mxu0
  %v1741 = vadd.f32 0.0, %v1740
  %v1742 = vpop.f32.mrb[0].mxu0
  %1743 = vmatprep.mubr.f32.mxu0 0.0
  %1744 = vmatmul.mubr.f32.gmra.mrb[0].mxu0 %v1606
  %v1745 = vpop.f32.mrb[0].mxu0
  %v1746 = vadd.f32 0.0, %v1745
  %v1747 = vpop.f32.mrb[0].mxu0
  %1748 = vmatprep.mubr.f32.mxu0 0.0
  %1749 = vmatmul.mubr.f32.gmra.mrb[0].mxu0 %v1609
  %v1750 = vpop.f32.mrb[0].mxu0
  %v1751 = vadd.f32 0.0, %v1750
  %v1752 = vpop.f32.mrb[0].mxu0
  %1753 = vmatprep.mubr.f32.mxu0 0.0
  %1754 = vmatmul.mubr.f32.gmra.mrb[0].mxu0 %v1612
  %v1755 = vpop.f32.mrb[0].mxu0
  %v1756 = vadd.f32 0.0, %v1755
  %v1757 = vpop.f32.mrb[0].mxu0
  %1758 = vdwg.mxu0
  %s1759 = scalar_lea.vmem %s4, 96
  %v1760 = vld [vmem:[%s1759] sm:$0xff]
  %v1761 = vld [vmem:[%s1759 + $0x8] sm:$0xff]
  %v1762 = vld [vmem:[%s1759 + $0x10] sm:$0xff]
  %v1763 = vld [vmem:[%s1759 + $0x18] sm:$0xff]
  %v1765 = vsel %vm738, %v1681, 0
  %v1768 = vsel %vm738, %v1686, 0
  %v1771 = vsel %vm738, %v1691, 0
  %v1774 = vsel %vm738, %v1696, 0
  %v1777 = vsel %vm738, %v1701, 0
  %v1780 = vsel %vm738, %v1706, 0
  %v1783 = vsel %vm738, %v1711, 0
  %v1786 = vsel %vm738, %v1716, 0
  %v1789 = vsel %vm738, %v1721, 0
  %v1792 = vsel %vm738, %v1726, 0
  %v1795 = vsel %vm738, %v1731, 0
  %v1798 = vsel %vm738, %v1736, 0
  %v1801 = vsel %vm738, %v1741, 0
  %v1804 = vsel %vm738, %v1746, 0
  %v1807 = vsel %vm738, %v1751, 0
  %v1810 = vsel %vm738, %v1756, 0
  %1812 = vmatprep.subr.mxu0 0.0
  %1813 = vmatpush1.msra.mxu0 %v1760
  %1814 = vmatprep.subr.mxu0 0.0
  %1815 = vmatpush1.msra.mxu0 %v1761
  %1816 = vmatprep.subr.mxu0 0.0
  %1817 = vmatpush1.msra.mxu0 %v1762
  %1818 = vmatprep.subr.mxu0 0.0
  %1819 = vmatpush1.msra.mxu0 %v1763
  %1820 = vmatprep.subr.mxu0 0.0
  %1821 = vmatpush1.msra.mxu0 0.0
  %1822 = vmatprep.subr.mxu0 0.0
  %1823 = vmatpush1.msra.mxu0 0.0
  %1824 = vmatprep.subr.mxu0 0.0
  %1825 = vmatpush1.msra.mxu0 0.0
  %1826 = vmatprep.subr.mxu0 0.0
  %1827 = vmatpush1.msra.mxu0 0.0
  %1828 = vmatprep.subr.mxu0 0.0
  %1829 = vmatpush1.msra.mxu0 0.0
  %1830 = vmatprep.subr.mxu0 0.0
  %1831 = vmatpush1.msra.mxu0 0.0
  %1832 = vmatprep.subr.mxu0 0.0
  %1833 = vmatpush1.msra.mxu0 0.0
  %1834 = vmatprep.subr.mxu0 0.0
  %1835 = vmatpush1.msra.mxu0 0.0
  %1836 = vmatprep.subr.mxu0 0.0
  %1837 = vmatpush1.msra.mxu0 0.0
  %1838 = vmatprep.subr.mxu0 0.0
  %1839 = vmatpush1.msra.mxu0 0.0
  %1840 = vmatprep.subr.mxu0 0.0
  %1841 = vmatpush1.msra.mxu0 0.0
  %1842 = vmatprep.subr.mxu0 0.0
  %1843 = vmatpush1.msra.mxu0 0.0
  %1844 = vmatprep.subr.mxu0 0.0
  %1845 = vmatpush1.msra.mxu0 0.0
  %1846 = vmatprep.subr.mxu0 0.0
  %1847 = vmatpush1.msra.mxu0 0.0
  %1848 = vmatprep.subr.mxu0 0.0
  %1849 = vmatpush1.msra.mxu0 0.0
  %1850 = vmatprep.subr.mxu0 0.0
  %1851 = vmatpush1.msra.mxu0 0.0
  %1852 = vmatprep.subr.mxu0 0.0
  %1853 = vmatpush1.msra.mxu0 0.0
  %1854 = vmatprep.subr.mxu0 0.0
  %1855 = vmatpush1.msra.mxu0 0.0
  %1856 = vmatprep.subr.mxu0 0.0
  %1857 = vmatpush1.msra.mxu0 0.0
  %1858 = vmatprep.subr.mxu0 0.0
  %1859 = vmatpush1.msra.mxu0 0.0
  %1860 = vmatprep.subr.mxu0 0.0
  %1861 = vmatpush1.msra.mxu0 0.0
  %1862 = vmatprep.subr.mxu0 0.0
  %1863 = vmatpush1.msra.mxu0 0.0
  %1864 = vmatprep.subr.mxu0 0.0
  %1865 = vmatpush1.msra.mxu0 0.0
  %1866 = vmatprep.subr.mxu0 0.0
  %1867 = vmatpush1.msra.mxu0 0.0
  %1868 = vmatprep.subr.mxu0 0.0
  %1869 = vmatpush1.msra.mxu0 0.0
  %1870 = vmatprep.subr.mxu0 0.0
  %1871 = vmatpush1.msra.mxu0 0.0
  %1872 = vmatprep.subr.mxu0 0.0
  %1873 = vmatpush1.msra.mxu0 0.0
  %1874 = vmatprep.subr.mxu0 0.0
  %1875 = vmatpush1.msra.mxu0 0.0
  %1876 = vmatprep.mubr.f32.mxu0 0.0
  %1877 = vmatmul.mubr.f32.gmra.mrb[0].mxu0 %v1765
  %v1878 = vpop.f32.mrb[0].mxu0
  %v1879 = vadd.f32 0.0, %v1878
  %v1880 = vpop.f32.mrb[0].mxu0
  %1881 = vmatprep.mubr.f32.mxu0 0.0
  %1882 = vmatmul.mubr.f32.gmra.mrb[0].mxu0 %v1768
  %v1883 = vpop.f32.mrb[0].mxu0
  %v1884 = vadd.f32 0.0, %v1883
  %v1885 = vpop.f32.mrb[0].mxu0
  %1886 = vmatprep.mubr.f32.mxu0 0.0
  %1887 = vmatmul.mubr.f32.gmra.mrb[0].mxu0 %v1771
  %v1888 = vpop.f32.mrb[0].mxu0
  %v1889 = vadd.f32 0.0, %v1888
  %v1890 = vpop.f32.mrb[0].mxu0
  %1891 = vmatprep.mubr.f32.mxu0 0.0
  %1892 = vmatmul.mubr.f32.gmra.mrb[0].mxu0 %v1774
  %v1893 = vpop.f32.mrb[0].mxu0
  %v1894 = vadd.f32 0.0, %v1893
  %v1895 = vpop.f32.mrb[0].mxu0
  %1896 = vmatprep.mubr.f32.mxu0 0.0
  %1897 = vmatmul.mubr.f32.gmra.mrb[0].mxu0 %v1777
  %v1898 = vpop.f32.mrb[0].mxu0
  %v1899 = vadd.f32 0.0, %v1898
  %v1900 = vpop.f32.mrb[0].mxu0
  %1901 = vmatprep.mubr.f32.mxu0 0.0
  %1902 = vmatmul.mubr.f32.gmra.mrb[0].mxu0 %v1780
  %v1903 = vpop.f32.mrb[0].mxu0
  %v1904 = vadd.f32 0.0, %v1903
  %v1905 = vpop.f32.mrb[0].mxu0
  %1906 = vmatprep.mubr.f32.mxu0 0.0
  %1907 = vmatmul.mubr.f32.gmra.mrb[0].mxu0 %v1783
  %v1908 = vpop.f32.mrb[0].mxu0
  %v1909 = vadd.f32 0.0, %v1908
  %v1910 = vpop.f32.mrb[0].mxu0
  %1911 = vmatprep.mubr.f32.mxu0 0.0
  %1912 = vmatmul.mubr.f32.gmra.mrb[0].mxu0 %v1786
  %v1913 = vpop.f32.mrb[0].mxu0
  %v1914 = vadd.f32 0.0, %v1913
  %v1915 = vpop.f32.mrb[0].mxu0
  %1916 = vmatprep.mubr.f32.mxu0 0.0
  %1917 = vmatmul.mubr.f32.gmra.mrb[0].mxu0 %v1789
  %v1918 = vpop.f32.mrb[0].mxu0
  %v1919 = vadd.f32 0.0, %v1918
  %v1920 = vpop.f32.mrb[0].mxu0
  %1921 = vmatprep.mubr.f32.mxu0 0.0
  %1922 = vmatmul.mubr.f32.gmra.mrb[0].mxu0 %v1792
  %v1923 = vpop.f32.mrb[0].mxu0
  %v1924 = vadd.f32 0.0, %v1923
  %v1925 = vpop.f32.mrb[0].mxu0
  %1926 = vmatprep.mubr.f32.mxu0 0.0
  %1927 = vmatmul.mubr.f32.gmra.mrb[0].mxu0 %v1795
  %v1928 = vpop.f32.mrb[0].mxu0
  %v1929 = vadd.f32 0.0, %v1928
  %v1930 = vpop.f32.mrb[0].mxu0
  %1931 = vmatprep.mubr.f32.mxu0 0.0
  %1932 = vmatmul.mubr.f32.gmra.mrb[0].mxu0 %v1798
  %v1933 = vpop.f32.mrb[0].mxu0
  %v1934 = vadd.f32 0.0, %v1933
  %v1935 = vpop.f32.mrb[0].mxu0
  %1936 = vmatprep.mubr.f32.mxu0 0.0
  %1937 = vmatmul.mubr.f32.gmra.mrb[0].mxu0 %v1801
  %v1938 = vpop.f32.mrb[0].mxu0
  %v1939 = vadd.f32 0.0, %v1938
  %v1940 = vpop.f32.mrb[0].mxu0
  %1941 = vmatprep.mubr.f32.mxu0 0.0
  %1942 = vmatmul.mubr.f32.gmra.mrb[0].mxu0 %v1804
  %v1943 = vpop.f32.mrb[0].mxu0
  %v1944 = vadd.f32 0.0, %v1943
  %v1945 = vpop.f32.mrb[0].mxu0
  %1946 = vmatprep.mubr.f32.mxu0 0.0
  %1947 = vmatmul.mubr.f32.gmra.mrb[0].mxu0 %v1807
  %v1948 = vpop.f32.mrb[0].mxu0
  %v1949 = vadd.f32 0.0, %v1948
  %v1950 = vpop.f32.mrb[0].mxu0
  %1951 = vmatprep.mubr.f32.mxu0 0.0
  %1952 = vmatmul.mubr.f32.gmra.mrb[0].mxu0 %v1810
  %v1953 = vpop.f32.mrb[0].mxu0
  %v1954 = vadd.f32 0.0, %v1953
  %v1955 = vpop.f32.mrb[0].mxu0
  %1956 = vdwg.mxu0
  %v1957 = vadd.f32 %v1533, %v1879
  %v1958 = vadd.f32 %v1534, %v1884
  %v1959 = vadd.f32 %v1535, %v1889
  %v1960 = vadd.f32 %v1536, %v1894
  %v1961 = vadd.f32 %v1537, %v1899
  %v1962 = vadd.f32 %v1538, %v1904
  %v1963 = vadd.f32 %v1539, %v1909
  %v1964 = vadd.f32 %v1540, %v1914
  %v1965 = vadd.f32 %v1541, %v1919
  %v1966 = vadd.f32 %v1542, %v1924
  %v1967 = vadd.f32 %v1543, %v1929
  %v1968 = vadd.f32 %v1544, %v1934
  %v1969 = vadd.f32 %v1545, %v1939
  %v1970 = vadd.f32 %v1546, %v1944
  %v1971 = vadd.f32 %v1547, %v1949
  %v1972 = vadd.f32 %v1548, %v1954
  %1973 = vmatprep.subr.mxu0 0.0
  %1974 = vmatpush1.xpose.msra.mxu0 %v1957
  %1975 = vmatprep.subr.mxu0 0.0
  %1976 = vmatpush1.xpose.msra.mxu0 %v1958
  %1977 = vmatprep.subr.mxu0 0.0
  %1978 = vmatpush1.xpose.msra.mxu0 %v1959
  %1979 = vmatprep.subr.mxu0 0.0
  %1980 = vmatpush1.xpose.msra.mxu0 %v1960
  %1981 = vmatprep.subr.mxu0 0.0
  %1982 = vmatpush1.xpose.msra.mxu0 %v1961
  %1983 = vmatprep.subr.mxu0 0.0
  %1984 = vmatpush1.xpose.msra.mxu0 %v1962
  %1985 = vmatprep.subr.mxu0 0.0
  %1986 = vmatpush1.xpose.msra.mxu0 %v1963
  %1987 = vmatprep.subr.mxu0 0.0
  %1988 = vmatpush1.xpose.msra.mxu0 %v1964
  %1989 = vmatprep.subr.mxu0 0.0
  %1990 = vmatpush1.xpose.msra.mxu0 %v1965
  %1991 = vmatprep.subr.mxu0 0.0
  %1992 = vmatpush1.xpose.msra.mxu0 %v1966
  %1993 = vmatprep.subr.mxu0 0.0
  %1994 = vmatpush1.xpose.msra.mxu0 %v1967
  %1995 = vmatprep.subr.mxu0 0.0
  %1996 = vmatpush1.xpose.msra.mxu0 %v1968
  %1997 = vmatprep.subr.mxu0 0.0
  %1998 = vmatpush1.xpose.msra.mxu0 %v1969
  %1999 = vmatprep.subr.mxu0 0.0
  %2000 = vmatpush1.xpose.msra.mxu0 %v1970
  %2001 = vmatprep.subr.mxu0 0.0
  %2002 = vmatpush1.xpose.msra.mxu0 %v1971
  %2003 = vmatprep.subr.mxu0 0.0
  %2004 = vmatpush1.xpose.msra.mxu0 %v1972
  %2005 = vmatprep.subr.mxu0 0.0
  %2006 = vmatpush1.xpose.msra.mxu0 0.0
  %2007 = vmatprep.subr.mxu0 0.0
  %2008 = vmatpush1.xpose.msra.mxu0 0.0
  %2009 = vmatprep.subr.mxu0 0.0
  %2010 = vmatpush1.xpose.msra.mxu0 0.0
  %2011 = vmatprep.subr.mxu0 0.0
  %2012 = vmatpush1.xpose.msra.mxu0 0.0
  %2013 = vmatprep.subr.mxu0 0.0
  %2014 = vmatpush1.xpose.msra.mxu0 0.0
  %2015 = vmatprep.subr.mxu0 0.0
  %2016 = vmatpush1.xpose.msra.mxu0 0.0
  %2017 = vmatprep.subr.mxu0 0.0
  %2018 = vmatpush1.xpose.msra.mxu0 0.0
  %2019 = vmatprep.subr.mxu0 0.0
  %2020 = vmatpush1.xpose.msra.mxu0 0.0
  %2021 = vmatprep.subr.mxu0 0.0
  %2022 = vmatpush1.xpose.msra.mxu0 0.0
  %2023 = vmatprep.subr.mxu0 0.0
  %2024 = vmatpush1.xpose.msra.mxu0 0.0
  %2025 = vmatprep.subr.mxu0 0.0
  %2026 = vmatpush1.xpose.msra.mxu0 0.0
  %2027 = vmatprep.subr.mxu0 0.0
  %2028 = vmatpush1.xpose.msra.mxu0 0.0
  %2029 = vmatprep.subr.mxu0 0.0
  %2030 = vmatpush1.xpose.msra.mxu0 0.0
  %2031 = vmatprep.subr.mxu0 0.0
  %2032 = vmatpush1.xpose.msra.mxu0 0.0
  %2033 = vmatprep.subr.mxu0 0.0
  %2034 = vmatpush1.xpose.msra.mxu0 0.0
  %2035 = vmatprep.subr.mxu0 0.0
  %2036 = vmatpush1.xpose.msra.mxu0 0.0
  %2037 = vmatprep.mubr.f32.mxu0 0.0
  %2038 = vmatmul.mubr.f32.gmra.mrb[0].mxu0 %v1957
  %v2039 = vpop.f32.mrb[0].mxu0
  %v2040 = vadd.f32 0.0, %v2039
  %v2041 = vpop.f32.mrb[0].mxu0
  %2042 = vdwg.mxu0
  %v2043 = vlaneseq
  %v2044 = vand.u32 %v2043, 127
  %vm2045 = vcmp.lt.s32.totalorder %v2044, 13
  %v2046 = vsel %vm2045, %v2040, -inf
  %2047 = vmax.xlane.f32.xlu0 %v2046
  %v2048 = vpop.xlane.xlu0 %2047
  %v2049 = vsub.f32 %v2046, %v2048
  %v2050 = vmul.f32 %v2049, 1.442695
  %v2051 = vpow.pop %v2050
  %2052 = vadd.xlane.f32.xlu0 %v2051
  %v2053 = vpop.xlane.xlu0 %2052
  %v2054 = vrcp.pop %v2053
  %v2055 = vmul.f32 %v2051, %v2054
  %2056 = vst [vmem:[%s5] sm:$0xff] %v2055
  // Predicated region
  $region22: #{cnn_forward.5} parent=0 // pred_check
    _
  $region23: #{cnn_forward.5} parent=0 // pred_check_branch
    %2058 = sbr.rel (0) target = $region25
  $region24: #{cnn_forward.5} parent=0 // pred_region
    _
  $region25: #{cnn_forward.5} parent=0 // pred_fallthru
    _
  // Predicated region
  $region26: #{cnn_forward.5} parent=0 // pred_check
    _
  $region27: #{cnn_forward.5} parent=0 // pred_check_branch
    %2060 = sbr.rel (0) target = $region29
  $region28: #{cnn_forward.5} parent=0 // pred_region
    _
  $region29: #{cnn_forward.5} parent=0 // pred_fallthru
    _

</llo_original>
